<compile_context>
chip_gen: v6e
topology: v6e:2x2x1
jax: 0.10.0
libtpu: 0.0.40
codegen_flags: <defaults>
</compile_context>

<pallas_src>
import jax
import jax.numpy as jnp
from jax import lax
from jax.experimental import pallas as pl
from jax.experimental.pallas import tpu as pltpu


C1 = 8            # conv1 out channels   (scaled-down 64)
C2 = 16           # conv2 out channels   (scaled-down 128..512)
HIDDEN = 128      # classifier hidden    (scaled-down 4096)
NUM_CLASSES = 10  # scaled-down 1000
HW = 16           # input spatial size
K1 = 32           # conv1 im2col contraction width (27 real taps, zero-padded to 32)


# ----------------------------------------------------------------------------
# Fused kernel: conv1+ReLU+pool -> conv2+ReLU+pool -> fc1+BN+ReLU -> fc2+BN+ReLU -> fc3
# ----------------------------------------------------------------------------

def vgg_kernel(x1_ref, w1_ref, b1_ref, w2_ref, b2_ref,
               fc1w_ref, fc1b_ref, g1_ref, beta1_ref,
               fc2w_ref, fc2b_ref, g2_ref, beta2_ref,
               fc3w_ref, fc3b_ref, o_ref, pad_ref):
    f32 = jnp.float32
    B = x1_ref.shape[0]
    c1 = w1_ref.shape[1]          # 8
    c2 = w2_ref.shape[2]          # 16
    hidden = fc1w_ref.shape[2]    # 128

    # ---- Stage 1: Conv2d(3,c1,3,pad=1) as ONE batched MXU matmul (host-built im2col),
    #      + bias + ReLU.  LHS is already bf16; accumulate in f32.
    lhs1 = x1_ref[...].reshape(B * HW * HW, K1)                       # (B*256, 32) bf16
    y1 = jnp.dot(lhs1, w1_ref[...], preferred_element_type=f32)       # (B*256, c1) f32
    y1 = jnp.maximum(y1 + b1_ref[...], 0.0)
    # MaxPool2d(2,2): only leading-dim reshapes (lane dim = channels stays unchanged).
    y1 = y1.reshape(B * 8, 2, 8, 2, c1)
    y1 = jnp.maximum(y1[:, 0], y1[:, 1])
    y1 = jnp.maximum(y1[:, :, 0, :], y1[:, :, 1, :])                  # (B*8, 8, c1)

    # ---- Stage 2: Conv2d(c1,c2,3,pad=1) over a zero-haloed VMEM buffer.  Contraction is
    #      the REAL c1=8 channels (not padded to 128).  9 small dots, tiny (B*64,c2) f32
    #      accumulator -> no register-pressure / spill issue.
    pad_ref[...] = jnp.zeros(pad_ref.shape, pad_ref.dtype)            # zero halo once
    pad_ref[:, 1:9, 1:9, :] = y1.reshape(B, 8, 8, c1)
    xp = pad_ref[...]                                                 # (B, 10, 10, c1) f32
    w2 = w2_ref[...]                                                  # (9, c1, c2) bf16
    acc = jnp.zeros((B * 64, c2), f32)
    for t in range(9):
        dy, dx = t // 3, t % 3
        lhs = xp[:, dy:dy + 8, dx:dx + 8, :].reshape(B * 64, c1)      # f32 slice (proven path)
        acc = acc + jnp.dot(lhs.astype(jnp.bfloat16), w2[t],          # cast is 1 KiB/tap: noise
                            preferred_element_type=f32)
    y2 = jnp.maximum(acc + b2_ref[...], 0.0)                          # bias + ReLU
    # MaxPool2d(2,2) -> (B, 4, 4, c2) -> (B, 16, c2)   [p = h*4+w in dim 1]
    y2 = y2.reshape(B * 4, 2, 4, 2, c2)
    y2 = jnp.maximum(y2[:, 0], y2[:, 1])
    y2 = jnp.maximum(y2[:, :, 0, :], y2[:, :, 1, :])                  # (B*4, 4, c2)
    hsp = y2.reshape(B, 16, c2)                                       # (B, p, c)

    # ---- Classifier (all in VMEM).  fc1 = sum over the 16 pooled spatial positions:
    #      z[b,n] = sum_p sum_c hsp[b,p,c] * W1[p,c,n]  -- avoids a lane-merging
    #      (4,4,16)->(1,256) reshape; W1 was pre-permuted to (p, c, n) at init so this is
    #      numerically identical to PyTorch's NCHW x.view(B,-1) @ fc1.weight.T.
    w1c = fc1w_ref[...]                                               # (16, c2, hidden) bf16
    z = jnp.zeros((B, hidden), f32)
    for p in range(16):
        z = z + jnp.dot(hsp[:, p, :].astype(jnp.bfloat16), w1c[p],
                        preferred_element_type=f32)
    z = z + fc1b_ref[...]

    def bn_relu(y, g_ref, b_ref):
        # BatchNorm1d in training mode: batch statistics, biased variance (like torch).
        m = jnp.mean(y, axis=0, keepdims=True)
        v = jnp.mean(jnp.square(y - m), axis=0, keepdims=True)
        return jnp.maximum((y - m) * lax.rsqrt(v + 1e-5) * g_ref[...] + b_ref[...], 0.0)

    h = bn_relu(z, g1_ref, beta1_ref)
    h = jnp.dot(h.astype(jnp.bfloat16), fc2w_ref[...],
                preferred_element_type=f32) + fc2b_ref[...]
    h = bn_relu(h, g2_ref, beta2_ref)
    out = jnp.dot(h.astype(jnp.bfloat16), fc3w_ref[...],
                  preferred_element_type=f32) + fc3b_ref[...]
    o_ref[...] = out.astype(o_ref.dtype)


# ----------------------------------------------------------------------------
# Host-side wrapper
# ----------------------------------------------------------------------------

def _conv1_im2col(x_nchw):
    """Tiny XLA preamble on the ~6 KB input: NCHW -> 3x3 im2col -> (B, 256, 32) bf16."""
    B, _, H, W = x_nchw.shape
    x = jnp.transpose(x_nchw, (0, 2, 3, 1))                          # (B, H, W, 3)
    xp = jnp.pad(x, ((0, 0), (1, 1), (1, 1), (0, 0)))                # spatial halo
    taps = [xp[:, dy:dy + H, dx:dx + W, :] for dy in range(3) for dx in range(3)]
    col = jnp.concatenate(taps, axis=-1)                             # (B, H, W, 27)
    col = jnp.pad(col, ((0, 0), (0, 0), (0, 0), (0, K1 - 27)))       # K pad 27 -> 32
    return col.reshape(B, H * W, K1).astype(jnp.bfloat16)


def vgg_forward(x_nchw, kp):
    assert x_nchw.shape[2] == x_nchw.shape[3] == HW
    x1 = _conv1_im2col(x_nchw)                                       # (B, 256, 32) bf16
    B = x1.shape[0]
    nc = kp["fc3_b"].shape[1]

    flops = 2 * B * (HW * HW * K1 * C1 + 64 * 9 * C1 * C2
                     + 16 * C2 * HIDDEN + HIDDEN * HIDDEN + HIDDEN * nc)
    bytes_acc = int(x1.size * x1.dtype.itemsize
                    + sum(int(v.size) * v.dtype.itemsize for v in kp.values())
                    + B * nc * 4)

    return pl.pallas_call(
        vgg_kernel,
        out_shape=jax.ShapeDtypeStruct((B, nc), jnp.float32),
        scratch_shapes=[pltpu.VMEM((B, 10, 10, C1), jnp.float32)],    # zero-haloed conv2 input
        cost_estimate=pl.CostEstimate(flops=int(flops),
                                      transcendentals=2 * HIDDEN,
                                      bytes_accessed=bytes_acc),
    )(x1,
      kp["conv1_w"], kp["conv1_b"], kp["conv2_w"], kp["conv2_b"],
      kp["fc1_w"], kp["fc1_b"], kp["bn1_g"], kp["bn1_b"],
      kp["fc2_w"], kp["fc2_b"], kp["bn2_g"], kp["bn2_b"],
      kp["fc3_w"], kp["fc3_b"])


# ----------------------------------------------------------------------------
# Parameter init (mirrors VGG._initialize_weights; torch layouts) + kernel packing
# ----------------------------------------------------------------------------

def init_torch_params(key, num_classes=NUM_CLASSES):
    ks = jax.random.split(key, 5)

    def kaiming_conv(k, cout, cin):
        std = (2.0 / (cout * 9)) ** 0.5            # fan_out mode, relu
        return jax.random.normal(k, (cout, cin, 3, 3), jnp.float32) * std

    def linear_w(k, fan_out, fan_in):
        return jax.random.normal(k, (fan_out, fan_in), jnp.float32) * 0.01

    z, o = (lambda n: jnp.zeros((n,), jnp.float32)), (lambda n: jnp.ones((n,), jnp.float32))
    return {
        "conv1_w": kaiming_conv(ks[0], C1, 3),  "conv1_b": z(C1),
        "conv2_w": kaiming_conv(ks[1], C2, C1), "conv2_b": z(C2),
        "fc1_w": linear_w(ks[2], HIDDEN, C2 * 4 * 4), "fc1_b": z(HIDDEN),
        "bn1_g": o(HIDDEN), "bn1_b": z(HIDDEN),
        "fc2_w": linear_w(ks[3], HIDDEN, HIDDEN), "fc2_b": z(HIDDEN),
        "bn2_g": o(HIDDEN), "bn2_b": z(HIDDEN),
        "fc3_w": linear_w(ks[4], num_classes, HIDDEN), "fc3_b": z(num_classes),
    }


def pack_params(tp):
    """Torch-layout f32 params -> kernel layouts (bf16 weights, f32 biases/BN)."""
    bf16 = jnp.bfloat16
    row = lambda v: v.reshape(1, -1)
    # conv1: (cout,cin,3,3) -> rows (ky*3+kx)*3+cin (matches host im2col), pad 27->32.
    w1 = jnp.transpose(tp["conv1_w"], (2, 3, 1, 0)).reshape(27, C1)
    w1 = jnp.pad(w1, ((0, K1 - 27), (0, 0))).astype(bf16)             # (32, c1)
    # conv2: (cout,cin,3,3) -> (9, cin, cout), REAL channel counts (no K padding).
    w2 = jnp.transpose(tp["conv2_w"], (2, 3, 1, 0)).reshape(9, C1, C2).astype(bf16)
    # fc1: torch rows are NCHW-flatten (c,h,w) -> kernel layout (p=h*4+w, c, n).
    fc1 = tp["fc1_w"].reshape(HIDDEN, C2, 4, 4)                       # (n, c, h, w)
    fc1 = jnp.transpose(fc1, (2, 3, 1, 0)).reshape(16, C2, HIDDEN).astype(bf16)
    fc2 = tp["fc2_w"].T.astype(bf16)                                  # (in, out)
    fc3 = tp["fc3_w"].T.astype(bf16)
    return {
        "conv1_w": w1, "conv1_b": row(tp["conv1_b"]),
        "conv2_w": w2, "conv2_b": row(tp["conv2_b"]),
        "fc1_w": fc1, "fc1_b": row(tp["fc1_b"]),
        "bn1_g": row(tp["bn1_g"]), "bn1_b": row(tp["bn1_b"]),
        "fc2_w": fc2, "fc2_b": row(tp["fc2_b"]),
        "bn2_g": row(tp["bn2_g"]), "bn2_b": row(tp["bn2_b"]),
        "fc3_w": fc3, "fc3_b": row(tp["fc3_b"]),
    }


# ----------------------------------------------------------------------------
# Pure-JAX reference (same bf16 quantization points as the kernel, f32 accumulation)
# ----------------------------------------------------------------------------

def _ref_conv_relu_pool(x, w, b):
    y = lax.conv_general_dilated(
        x.astype(jnp.bfloat16), w.astype(jnp.bfloat16),
        window_strides=(1, 1), padding=((1, 1), (1, 1)),
        dimension_numbers=("NCHW", "OIHW", "NCHW"),
        preferred_element_type=jnp.float32)
    y = jnp.maximum(y + b.reshape(1, -1, 1, 1), 0.0)
    B, C, H, W = y.shape
    return jnp.max(y.reshape(B, C, H // 2, 2, W // 2, 2), axis=(3, 5))


def _ref_linear(h, w, b):
    return jnp.dot(h.astype(jnp.bfloat16), w.T.astype(jnp.bfloat16),
                   preferred_element_type=jnp.float32) + b


def _ref_bn_relu(h, g, b):
    m = jnp.mean(h, axis=0, keepdims=True)
    v = jnp.mean(jnp.square(h - m), axis=0, keepdims=True)
    return jnp.maximum((h - m) * lax.rsqrt(v + 1e-5) * g + b, 0.0)


def vgg_reference(x_nchw, tp):
    x = _ref_conv_relu_pool(x_nchw, tp["conv1_w"], tp["conv1_b"])
    x = _ref_conv_relu_pool(x, tp["conv2_w"], tp["conv2_b"])
    x = x.reshape(x.shape[0], -1)                                     # torch NCHW flatten
    h = _ref_bn_relu(_ref_linear(x, tp["fc1_w"], tp["fc1_b"]), tp["bn1_g"], tp["bn1_b"])
    h = _ref_bn_relu(_ref_linear(h, tp["fc2_w"], tp["fc2_b"]), tp["bn2_g"], tp["bn2_b"])
    return _ref_linear(h, tp["fc3_w"], tp["fc3_b"])


# ----------------------------------------------------------------------------

if __name__ == "__main__":
    key = jax.random.PRNGKey(0)
    k_param, k_in = jax.random.split(key)
    tp = init_torch_params(k_param, num_classes=NUM_CLASSES)
    kp = pack_params(tp)
    x = jax.random.normal(k_in, (2, 3, HW, HW), jnp.float32)          # NCHW input, batch=2

    out = jax.block_until_ready(jax.jit(vgg_forward)(x, kp))
    assert out.shape == (2, NUM_CLASSES), out.shape
    assert bool(jnp.all(jnp.isfinite(out)))

    ref = jax.block_until_ready(jax.jit(vgg_reference)(x, tp))
    rel_l2 = float(jnp.linalg.norm(out - ref) / (jnp.linalg.norm(ref) + 1e-12))
    # Structural errors (wrong im2col/permutation/pooling) give rel_l2 ~ 1.4; the bound is
    # loose because B=2 train-mode BatchNorm can amplify bf16 rounding on features whose
    # batch variance is ~0 (documented precision caveat, not a structural difference).
    assert rel_l2 < 0.5, rel_l2

    print("KERNEL_OK")
</pallas_src>

<mosaic_0001>
module attributes {stable_mosaic.version = 11 : i64} {
  func.func @vgg_kernel(%arg0: memref<2x256x32xbf16, #tpu.memory_space<vmem>>, %arg1: memref<32x8xbf16, #tpu.memory_space<vmem>>, %arg2: memref<1x8xf32, #tpu.memory_space<vmem>>, %arg3: memref<9x8x16xbf16, #tpu.memory_space<vmem>>, %arg4: memref<1x16xf32, #tpu.memory_space<vmem>>, %arg5: memref<16x16x128xbf16, #tpu.memory_space<vmem>>, %arg6: memref<1x128xf32, #tpu.memory_space<vmem>>, %arg7: memref<1x128xf32, #tpu.memory_space<vmem>>, %arg8: memref<1x128xf32, #tpu.memory_space<vmem>>, %arg9: memref<128x128xbf16, #tpu.memory_space<vmem>>, %arg10: memref<1x128xf32, #tpu.memory_space<vmem>>, %arg11: memref<1x128xf32, #tpu.memory_space<vmem>>, %arg12: memref<1x128xf32, #tpu.memory_space<vmem>>, %arg13: memref<128x10xbf16, #tpu.memory_space<vmem>>, %arg14: memref<1x10xf32, #tpu.memory_space<vmem>>, %arg15: memref<2x10xf32, #tpu.memory_space<vmem>>, %arg16: memref<2x10x10x8xf32, #tpu.memory_space<vmem>>) attributes {dimension_semantics = [], scalar_prefetch = 0 : i64, scratch_operands = 1 : i64, tpu.core_type = #tpu.core_type<tc>} {
    %c0 = arith.constant 0 : index
    %c0_0 = arith.constant 0 : index
    %c0_1 = arith.constant 0 : index
    %0 = vector.load %arg0[%c0, %c0_0, %c0_1] : memref<2x256x32xbf16, #tpu.memory_space<vmem>>, vector<2x256x32xbf16>
    %1 = vector.shape_cast %0 : vector<2x256x32xbf16> to vector<512x32xbf16>
    %c0_2 = arith.constant 0 : index
    %c0_3 = arith.constant 0 : index
    %2 = vector.load %arg1[%c0_2, %c0_3] : memref<32x8xbf16, #tpu.memory_space<vmem>>, vector<32x8xbf16>
    %cst = arith.constant dense<0.000000e+00> : vector<512x8xf32>
    %3 = tpu.matmul %1, %2, %cst {dimension_numbers = #tpu.dot_dimension_numbers<[1], [0], [0], [1], [0, 0, 1, 1], [], []>} : vector<512x32xbf16>, vector<32x8xbf16>, vector<512x8xf32> -> vector<512x8xf32>
    %c0_4 = arith.constant 0 : index
    %c0_5 = arith.constant 0 : index
    %4 = vector.load %arg2[%c0_4, %c0_5] : memref<1x8xf32, #tpu.memory_space<vmem>>, vector<1x8xf32>
    %5 = vector.broadcast %4 : vector<1x8xf32> to vector<512x8xf32>
    %6 = arith.addf %3, %5 : vector<512x8xf32>
    %cst_6 = arith.constant 0.000000e+00 : f32
    %7 = vector.broadcast %cst_6 : f32 to vector<512x8xf32>
    %8 = arith.maximumf %6, %7 : vector<512x8xf32>
    %9 = vector.shape_cast %8 : vector<512x8xf32> to vector<16x2x8x2x8xf32>
    %10 = vector.extract_strided_slice %9 {offsets = [0, 0, 0, 0, 0], sizes = [16, 1, 8, 2, 8], strides = [1, 1, 1, 1, 1]} : vector<16x2x8x2x8xf32> to vector<16x1x8x2x8xf32>
    %11 = vector.shape_cast %10 : vector<16x1x8x2x8xf32> to vector<16x8x2x8xf32>
    %12 = vector.extract_strided_slice %9 {offsets = [0, 1, 0, 0, 0], sizes = [16, 1, 8, 2, 8], strides = [1, 1, 1, 1, 1]} : vector<16x2x8x2x8xf32> to vector<16x1x8x2x8xf32>
    %13 = vector.shape_cast %12 : vector<16x1x8x2x8xf32> to vector<16x8x2x8xf32>
    %14 = arith.maximumf %11, %13 : vector<16x8x2x8xf32>
    %15 = vector.extract_strided_slice %14 {offsets = [0, 0, 0, 0], sizes = [16, 8, 1, 8], strides = [1, 1, 1, 1]} : vector<16x8x2x8xf32> to vector<16x8x1x8xf32>
    %16 = vector.shape_cast %15 : vector<16x8x1x8xf32> to vector<16x8x8xf32>
    %17 = vector.extract_strided_slice %14 {offsets = [0, 0, 1, 0], sizes = [16, 8, 1, 8], strides = [1, 1, 1, 1]} : vector<16x8x2x8xf32> to vector<16x8x1x8xf32>
    %18 = vector.shape_cast %17 : vector<16x8x1x8xf32> to vector<16x8x8xf32>
    %19 = arith.maximumf %16, %18 : vector<16x8x8xf32>
    %cst_7 = arith.constant 0.000000e+00 : f32
    %20 = vector.broadcast %cst_7 : f32 to vector<2x10x10x8xf32>
    %c0_8 = arith.constant 0 : index
    %c0_9 = arith.constant 0 : index
    %c0_10 = arith.constant 0 : index
    %c0_11 = arith.constant 0 : index
    %21 = vector.load %arg16[%c0_8, %c0_9, %c0_10, %c0_11] : memref<2x10x10x8xf32, #tpu.memory_space<vmem>>, vector<2x10x10x8xf32>
    tpu.vector_store %arg16[%c0_8, %c0_9, %c0_10, %c0_11], %20 {strides = array<i32>} : memref<2x10x10x8xf32, #tpu.memory_space<vmem>>, vector<2x10x10x8xf32>,
    %22 = vector.shape_cast %19 : vector<16x8x8xf32> to vector<2x8x8x8xf32>
    %c0_12 = arith.constant 0 : index
    %c1 = arith.constant 1 : index
    %c1_13 = arith.constant 1 : index
    %c0_14 = arith.constant 0 : index
    %23 = vector.load %arg16[%c0_12, %c1, %c1_13, %c0_14] : memref<2x10x10x8xf32, #tpu.memory_space<vmem>>, vector<2x8x8x8xf32>
    tpu.vector_store %arg16[%c0_12, %c1, %c1_13, %c0_14], %22 {strides = array<i32>} : memref<2x10x10x8xf32, #tpu.memory_space<vmem>>, vector<2x8x8x8xf32>,
    %c0_15 = arith.constant 0 : index
    %c0_16 = arith.constant 0 : index
    %c0_17 = arith.constant 0 : index
    %c0_18 = arith.constant 0 : index
    %24 = vector.load %arg16[%c0_15, %c0_16, %c0_17, %c0_18] : memref<2x10x10x8xf32, #tpu.memory_space<vmem>>, vector<2x10x10x8xf32>
    %c0_19 = arith.constant 0 : index
    %c0_20 = arith.constant 0 : index
    %c0_21 = arith.constant 0 : index
    %25 = vector.load %arg3[%c0_19, %c0_20, %c0_21] : memref<9x8x16xbf16, #tpu.memory_space<vmem>>, vector<9x8x16xbf16>
    %cst_22 = arith.constant 0.000000e+00 : f32
    %26 = vector.broadcast %cst_22 : f32 to vector<128x16xf32>
    %27 = vector.extract_strided_slice %24 {offsets = [0, 0, 0, 0], sizes = [2, 8, 8, 8], strides = [1, 1, 1, 1]} : vector<2x10x10x8xf32> to vector<2x8x8x8xf32>
    %28 = vector.shape_cast %27 : vector<2x8x8x8xf32> to vector<128x8xf32>
    %29 = arith.truncf %28 : vector<128x8xf32> to vector<128x8xbf16>
    %30 = vector.extract_strided_slice %25 {offsets = [0, 0, 0], sizes = [1, 8, 16], strides = [1, 1, 1]} : vector<9x8x16xbf16> to vector<1x8x16xbf16>
    %31 = vector.shape_cast %30 : vector<1x8x16xbf16> to vector<8x16xbf16>
    %cst_23 = arith.constant dense<0.000000e+00> : vector<128x16xf32>
    %32 = tpu.matmul %29, %31, %cst_23 {dimension_numbers = #tpu.dot_dimension_numbers<[1], [0], [0], [1], [0, 0, 1, 1], [], []>} : vector<128x8xbf16>, vector<8x16xbf16>, vector<128x16xf32> -> vector<128x16xf32>
    %33 = arith.addf %26, %32 : vector<128x16xf32>
    %34 = vector.extract_strided_slice %24 {offsets = [0, 0, 1, 0], sizes = [2, 8, 8, 8], strides = [1, 1, 1, 1]} : vector<2x10x10x8xf32> to vector<2x8x8x8xf32>
    %35 = vector.shape_cast %34 : vector<2x8x8x8xf32> to vector<128x8xf32>
    %36 = arith.truncf %35 : vector<128x8xf32> to vector<128x8xbf16>
    %37 = vector.extract_strided_slice %25 {offsets = [1, 0, 0], sizes = [1, 8, 16], strides = [1, 1, 1]} : vector<9x8x16xbf16> to vector<1x8x16xbf16>
    %38 = vector.shape_cast %37 : vector<1x8x16xbf16> to vector<8x16xbf16>
    %cst_24 = arith.constant dense<0.000000e+00> : vector<128x16xf32>
    %39 = tpu.matmul %36, %38, %cst_24 {dimension_numbers = #tpu.dot_dimension_numbers<[1], [0], [0], [1], [0, 0, 1, 1], [], []>} : vector<128x8xbf16>, vector<8x16xbf16>, vector<128x16xf32> -> vector<128x16xf32>
    %40 = arith.addf %33, %39 : vector<128x16xf32>
    %41 = vector.extract_strided_slice %24 {offsets = [0, 0, 2, 0], sizes = [2, 8, 8, 8], strides = [1, 1, 1, 1]} : vector<2x10x10x8xf32> to vector<2x8x8x8xf32>
    %42 = vector.shape_cast %41 : vector<2x8x8x8xf32> to vector<128x8xf32>
    %43 = arith.truncf %42 : vector<128x8xf32> to vector<128x8xbf16>
    %44 = vector.extract_strided_slice %25 {offsets = [2, 0, 0], sizes = [1, 8, 16], strides = [1, 1, 1]} : vector<9x8x16xbf16> to vector<1x8x16xbf16>
    %45 = vector.shape_cast %44 : vector<1x8x16xbf16> to vector<8x16xbf16>
    %cst_25 = arith.constant dense<0.000000e+00> : vector<128x16xf32>
    %46 = tpu.matmul %43, %45, %cst_25 {dimension_numbers = #tpu.dot_dimension_numbers<[1], [0], [0], [1], [0, 0, 1, 1], [], []>} : vector<128x8xbf16>, vector<8x16xbf16>, vector<128x16xf32> -> vector<128x16xf32>
    %47 = arith.addf %40, %46 : vector<128x16xf32>
    %48 = vector.extract_strided_slice %24 {offsets = [0, 1, 0, 0], sizes = [2, 8, 8, 8], strides = [1, 1, 1, 1]} : vector<2x10x10x8xf32> to vector<2x8x8x8xf32>
    %49 = vector.shape_cast %48 : vector<2x8x8x8xf32> to vector<128x8xf32>
    %50 = arith.truncf %49 : vector<128x8xf32> to vector<128x8xbf16>
    %51 = vector.extract_strided_slice %25 {offsets = [3, 0, 0], sizes = [1, 8, 16], strides = [1, 1, 1]} : vector<9x8x16xbf16> to vector<1x8x16xbf16>
    %52 = vector.shape_cast %51 : vector<1x8x16xbf16> to vector<8x16xbf16>
    %cst_26 = arith.constant dense<0.000000e+00> : vector<128x16xf32>
    %53 = tpu.matmul %50, %52, %cst_26 {dimension_numbers = #tpu.dot_dimension_numbers<[1], [0], [0], [1], [0, 0, 1, 1], [], []>} : vector<128x8xbf16>, vector<8x16xbf16>, vector<128x16xf32> -> vector<128x16xf32>
    %54 = arith.addf %47, %53 : vector<128x16xf32>
    %55 = vector.extract_strided_slice %24 {offsets = [0, 1, 1, 0], sizes = [2, 8, 8, 8], strides = [1, 1, 1, 1]} : vector<2x10x10x8xf32> to vector<2x8x8x8xf32>
    %56 = vector.shape_cast %55 : vector<2x8x8x8xf32> to vector<128x8xf32>
    %57 = arith.truncf %56 : vector<128x8xf32> to vector<128x8xbf16>
    %58 = vector.extract_strided_slice %25 {offsets = [4, 0, 0], sizes = [1, 8, 16], strides = [1, 1, 1]} : vector<9x8x16xbf16> to vector<1x8x16xbf16>
    %59 = vector.shape_cast %58 : vector<1x8x16xbf16> to vector<8x16xbf16>
    %cst_27 = arith.constant dense<0.000000e+00> : vector<128x16xf32>
    %60 = tpu.matmul %57, %59, %cst_27 {dimension_numbers = #tpu.dot_dimension_numbers<[1], [0], [0], [1], [0, 0, 1, 1], [], []>} : vector<128x8xbf16>, vector<8x16xbf16>, vector<128x16xf32> -> vector<128x16xf32>
    %61 = arith.addf %54, %60 : vector<128x16xf32>
    %62 = vector.extract_strided_slice %24 {offsets = [0, 1, 2, 0], sizes = [2, 8, 8, 8], strides = [1, 1, 1, 1]} : vector<2x10x10x8xf32> to vector<2x8x8x8xf32>
    %63 = vector.shape_cast %62 : vector<2x8x8x8xf32> to vector<128x8xf32>
    %64 = arith.truncf %63 : vector<128x8xf32> to vector<128x8xbf16>
    %65 = vector.extract_strided_slice %25 {offsets = [5, 0, 0], sizes = [1, 8, 16], strides = [1, 1, 1]} : vector<9x8x16xbf16> to vector<1x8x16xbf16>
    %66 = vector.shape_cast %65 : vector<1x8x16xbf16> to vector<8x16xbf16>
    %cst_28 = arith.constant dense<0.000000e+00> : vector<128x16xf32>
    %67 = tpu.matmul %64, %66, %cst_28 {dimension_numbers = #tpu.dot_dimension_numbers<[1], [0], [0], [1], [0, 0, 1, 1], [], []>} : vector<128x8xbf16>, vector<8x16xbf16>, vector<128x16xf32> -> vector<128x16xf32>
    %68 = arith.addf %61, %67 : vector<128x16xf32>
    %69 = vector.extract_strided_slice %24 {offsets = [0, 2, 0, 0], sizes = [2, 8, 8, 8], strides = [1, 1, 1, 1]} : vector<2x10x10x8xf32> to vector<2x8x8x8xf32>
    %70 = vector.shape_cast %69 : vector<2x8x8x8xf32> to vector<128x8xf32>
    %71 = arith.truncf %70 : vector<128x8xf32> to vector<128x8xbf16>
    %72 = vector.extract_strided_slice %25 {offsets = [6, 0, 0], sizes = [1, 8, 16], strides = [1, 1, 1]} : vector<9x8x16xbf16> to vector<1x8x16xbf16>
    %73 = vector.shape_cast %72 : vector<1x8x16xbf16> to vector<8x16xbf16>
    %cst_29 = arith.constant dense<0.000000e+00> : vector<128x16xf32>
    %74 = tpu.matmul %71, %73, %cst_29 {dimension_numbers = #tpu.dot_dimension_numbers<[1], [0], [0], [1], [0, 0, 1, 1], [], []>} : vector<128x8xbf16>, vector<8x16xbf16>, vector<128x16xf32> -> vector<128x16xf32>
    %75 = arith.addf %68, %74 : vector<128x16xf32>
    %76 = vector.extract_strided_slice %24 {offsets = [0, 2, 1, 0], sizes = [2, 8, 8, 8], strides = [1, 1, 1, 1]} : vector<2x10x10x8xf32> to vector<2x8x8x8xf32>
    %77 = vector.shape_cast %76 : vector<2x8x8x8xf32> to vector<128x8xf32>
    %78 = arith.truncf %77 : vector<128x8xf32> to vector<128x8xbf16>
    %79 = vector.extract_strided_slice %25 {offsets = [7, 0, 0], sizes = [1, 8, 16], strides = [1, 1, 1]} : vector<9x8x16xbf16> to vector<1x8x16xbf16>
    %80 = vector.shape_cast %79 : vector<1x8x16xbf16> to vector<8x16xbf16>
    %cst_30 = arith.constant dense<0.000000e+00> : vector<128x16xf32>
    %81 = tpu.matmul %78, %80, %cst_30 {dimension_numbers = #tpu.dot_dimension_numbers<[1], [0], [0], [1], [0, 0, 1, 1], [], []>} : vector<128x8xbf16>, vector<8x16xbf16>, vector<128x16xf32> -> vector<128x16xf32>
    %82 = arith.addf %75, %81 : vector<128x16xf32>
    %83 = vector.extract_strided_slice %24 {offsets = [0, 2, 2, 0], sizes = [2, 8, 8, 8], strides = [1, 1, 1, 1]} : vector<2x10x10x8xf32> to vector<2x8x8x8xf32>
    %84 = vector.shape_cast %83 : vector<2x8x8x8xf32> to vector<128x8xf32>
    %85 = arith.truncf %84 : vector<128x8xf32> to vector<128x8xbf16>
    %86 = vector.extract_strided_slice %25 {offsets = [8, 0, 0], sizes = [1, 8, 16], strides = [1, 1, 1]} : vector<9x8x16xbf16> to vector<1x8x16xbf16>
    %87 = vector.shape_cast %86 : vector<1x8x16xbf16> to vector<8x16xbf16>
    %cst_31 = arith.constant dense<0.000000e+00> : vector<128x16xf32>
    %88 = tpu.matmul %85, %87, %cst_31 {dimension_numbers = #tpu.dot_dimension_numbers<[1], [0], [0], [1], [0, 0, 1, 1], [], []>} : vector<128x8xbf16>, vector<8x16xbf16>, vector<128x16xf32> -> vector<128x16xf32>
    %89 = arith.addf %82, %88 : vector<128x16xf32>
    %c0_32 = arith.constant 0 : index
    %c0_33 = arith.constant 0 : index
    %90 = vector.load %arg4[%c0_32, %c0_33] : memref<1x16xf32, #tpu.memory_space<vmem>>, vector<1x16xf32>
    %91 = vector.broadcast %90 : vector<1x16xf32> to vector<128x16xf32>
    %92 = arith.addf %89, %91 : vector<128x16xf32>
    %cst_34 = arith.constant 0.000000e+00 : f32
    %93 = vector.broadcast %cst_34 : f32 to vector<128x16xf32>
    %94 = arith.maximumf %92, %93 : vector<128x16xf32>
    %95 = vector.shape_cast %94 : vector<128x16xf32> to vector<8x2x4x2x16xf32>
    %96 = vector.extract_strided_slice %95 {offsets = [0, 0, 0, 0, 0], sizes = [8, 1, 4, 2, 16], strides = [1, 1, 1, 1, 1]} : vector<8x2x4x2x16xf32> to vector<8x1x4x2x16xf32>
    %97 = vector.shape_cast %96 : vector<8x1x4x2x16xf32> to vector<8x4x2x16xf32>
    %98 = vector.extract_strided_slice %95 {offsets = [0, 1, 0, 0, 0], sizes = [8, 1, 4, 2, 16], strides = [1, 1, 1, 1, 1]} : vector<8x2x4x2x16xf32> to vector<8x1x4x2x16xf32>
    %99 = vector.shape_cast %98 : vector<8x1x4x2x16xf32> to vector<8x4x2x16xf32>
    %100 = arith.maximumf %97, %99 : vector<8x4x2x16xf32>
    %101 = vector.extract_strided_slice %100 {offsets = [0, 0, 0, 0], sizes = [8, 4, 1, 16], strides = [1, 1, 1, 1]} : vector<8x4x2x16xf32> to vector<8x4x1x16xf32>
    %102 = vector.shape_cast %101 : vector<8x4x1x16xf32> to vector<8x4x16xf32>
    %103 = vector.extract_strided_slice %100 {offsets = [0, 0, 1, 0], sizes = [8, 4, 1, 16], strides = [1, 1, 1, 1]} : vector<8x4x2x16xf32> to vector<8x4x1x16xf32>
    %104 = vector.shape_cast %103 : vector<8x4x1x16xf32> to vector<8x4x16xf32>
    %105 = arith.maximumf %102, %104 : vector<8x4x16xf32>
    %106 = vector.shape_cast %105 : vector<8x4x16xf32> to vector<2x16x16xf32>
    %c0_35 = arith.constant 0 : index
    %c0_36 = arith.constant 0 : index
    %c0_37 = arith.constant 0 : index
    %107 = vector.load %arg5[%c0_35, %c0_36, %c0_37] : memref<16x16x128xbf16, #tpu.memory_space<vmem>>, vector<16x16x128xbf16>
    %cst_38 = arith.constant 0.000000e+00 : f32
    %108 = vector.broadcast %cst_38 : f32 to vector<2x128xf32>
    %109 = vector.extract_strided_slice %106 {offsets = [0, 0, 0], sizes = [2, 1, 16], strides = [1, 1, 1]} : vector<2x16x16xf32> to vector<2x1x16xf32>
    %110 = vector.shape_cast %109 : vector<2x1x16xf32> to vector<2x16xf32>
    %111 = arith.truncf %110 : vector<2x16xf32> to vector<2x16xbf16>
    %112 = vector.extract_strided_slice %107 {offsets = [0, 0, 0], sizes = [1, 16, 128], strides = [1, 1, 1]} : vector<16x16x128xbf16> to vector<1x16x128xbf16>
    %113 = vector.shape_cast %112 : vector<1x16x128xbf16> to vector<16x128xbf16>
    %cst_39 = arith.constant dense<0.000000e+00> : vector<2x128xf32>
    %114 = tpu.matmul %111, %113, %cst_39 {dimension_numbers = #tpu.dot_dimension_numbers<[1], [0], [0], [1], [0, 0, 1, 1], [], []>} : vector<2x16xbf16>, vector<16x128xbf16>, vector<2x128xf32> -> vector<2x128xf32>
    %115 = arith.addf %108, %114 : vector<2x128xf32>
    %116 = vector.extract_strided_slice %106 {offsets = [0, 1, 0], sizes = [2, 1, 16], strides = [1, 1, 1]} : vector<2x16x16xf32> to vector<2x1x16xf32>
    %117 = vector.shape_cast %116 : vector<2x1x16xf32> to vector<2x16xf32>
    %118 = arith.truncf %117 : vector<2x16xf32> to vector<2x16xbf16>
    %119 = vector.extract_strided_slice %107 {offsets = [1, 0, 0], sizes = [1, 16, 128], strides = [1, 1, 1]} : vector<16x16x128xbf16> to vector<1x16x128xbf16>
    %120 = vector.shape_cast %119 : vector<1x16x128xbf16> to vector<16x128xbf16>
    %cst_40 = arith.constant dense<0.000000e+00> : vector<2x128xf32>
    %121 = tpu.matmul %118, %120, %cst_40 {dimension_numbers = #tpu.dot_dimension_numbers<[1], [0], [0], [1], [0, 0, 1, 1], [], []>} : vector<2x16xbf16>, vector<16x128xbf16>, vector<2x128xf32> -> vector<2x128xf32>
    %122 = arith.addf %115, %121 : vector<2x128xf32>
    %123 = vector.extract_strided_slice %106 {offsets = [0, 2, 0], sizes = [2, 1, 16], strides = [1, 1, 1]} : vector<2x16x16xf32> to vector<2x1x16xf32>
    %124 = vector.shape_cast %123 : vector<2x1x16xf32> to vector<2x16xf32>
    %125 = arith.truncf %124 : vector<2x16xf32> to vector<2x16xbf16>
    %126 = vector.extract_strided_slice %107 {offsets = [2, 0, 0], sizes = [1, 16, 128], strides = [1, 1, 1]} : vector<16x16x128xbf16> to vector<1x16x128xbf16>
    %127 = vector.shape_cast %126 : vector<1x16x128xbf16> to vector<16x128xbf16>
    %cst_41 = arith.constant dense<0.000000e+00> : vector<2x128xf32>
    %128 = tpu.matmul %125, %127, %cst_41 {dimension_numbers = #tpu.dot_dimension_numbers<[1], [0], [0], [1], [0, 0, 1, 1], [], []>} : vector<2x16xbf16>, vector<16x128xbf16>, vector<2x128xf32> -> vector<2x128xf32>
    %129 = arith.addf %122, %128 : vector<2x128xf32>
    %130 = vector.extract_strided_slice %106 {offsets = [0, 3, 0], sizes = [2, 1, 16], strides = [1, 1, 1]} : vector<2x16x16xf32> to vector<2x1x16xf32>
    %131 = vector.shape_cast %130 : vector<2x1x16xf32> to vector<2x16xf32>
    %132 = arith.truncf %131 : vector<2x16xf32> to vector<2x16xbf16>
    %133 = vector.extract_strided_slice %107 {offsets = [3, 0, 0], sizes = [1, 16, 128], strides = [1, 1, 1]} : vector<16x16x128xbf16> to vector<1x16x128xbf16>
    %134 = vector.shape_cast %133 : vector<1x16x128xbf16> to vector<16x128xbf16>
    %cst_42 = arith.constant dense<0.000000e+00> : vector<2x128xf32>
    %135 = tpu.matmul %132, %134, %cst_42 {dimension_numbers = #tpu.dot_dimension_numbers<[1], [0], [0], [1], [0, 0, 1, 1], [], []>} : vector<2x16xbf16>, vector<16x128xbf16>, vector<2x128xf32> -> vector<2x128xf32>
    %136 = arith.addf %129, %135 : vector<2x128xf32>
    %137 = vector.extract_strided_slice %106 {offsets = [0, 4, 0], sizes = [2, 1, 16], strides = [1, 1, 1]} : vector<2x16x16xf32> to vector<2x1x16xf32>
    %138 = vector.shape_cast %137 : vector<2x1x16xf32> to vector<2x16xf32>
    %139 = arith.truncf %138 : vector<2x16xf32> to vector<2x16xbf16>
    %140 = vector.extract_strided_slice %107 {offsets = [4, 0, 0], sizes = [1, 16, 128], strides = [1, 1, 1]} : vector<16x16x128xbf16> to vector<1x16x128xbf16>
    %141 = vector.shape_cast %140 : vector<1x16x128xbf16> to vector<16x128xbf16>
    %cst_43 = arith.constant dense<0.000000e+00> : vector<2x128xf32>
    %142 = tpu.matmul %139, %141, %cst_43 {dimension_numbers = #tpu.dot_dimension_numbers<[1], [0], [0], [1], [0, 0, 1, 1], [], []>} : vector<2x16xbf16>, vector<16x128xbf16>, vector<2x128xf32> -> vector<2x128xf32>
    %143 = arith.addf %136, %142 : vector<2x128xf32>
    %144 = vector.extract_strided_slice %106 {offsets = [0, 5, 0], sizes = [2, 1, 16], strides = [1, 1, 1]} : vector<2x16x16xf32> to vector<2x1x16xf32>
    %145 = vector.shape_cast %144 : vector<2x1x16xf32> to vector<2x16xf32>
    %146 = arith.truncf %145 : vector<2x16xf32> to vector<2x16xbf16>
    %147 = vector.extract_strided_slice %107 {offsets = [5, 0, 0], sizes = [1, 16, 128], strides = [1, 1, 1]} : vector<16x16x128xbf16> to vector<1x16x128xbf16>
    %148 = vector.shape_cast %147 : vector<1x16x128xbf16> to vector<16x128xbf16>
    %cst_44 = arith.constant dense<0.000000e+00> : vector<2x128xf32>
    %149 = tpu.matmul %146, %148, %cst_44 {dimension_numbers = #tpu.dot_dimension_numbers<[1], [0], [0], [1], [0, 0, 1, 1], [], []>} : vector<2x16xbf16>, vector<16x128xbf16>, vector<2x128xf32> -> vector<2x128xf32>
    %150 = arith.addf %143, %149 : vector<2x128xf32>
    %151 = vector.extract_strided_slice %106 {offsets = [0, 6, 0], sizes = [2, 1, 16], strides = [1, 1, 1]} : vector<2x16x16xf32> to vector<2x1x16xf32>
    %152 = vector.shape_cast %151 : vector<2x1x16xf32> to vector<2x16xf32>
    %153 = arith.truncf %152 : vector<2x16xf32> to vector<2x16xbf16>
    %154 = vector.extract_strided_slice %107 {offsets = [6, 0, 0], sizes = [1, 16, 128], strides = [1, 1, 1]} : vector<16x16x128xbf16> to vector<1x16x128xbf16>
    %155 = vector.shape_cast %154 : vector<1x16x128xbf16> to vector<16x128xbf16>
    %cst_45 = arith.constant dense<0.000000e+00> : vector<2x128xf32>
    %156 = tpu.matmul %153, %155, %cst_45 {dimension_numbers = #tpu.dot_dimension_numbers<[1], [0], [0], [1], [0, 0, 1, 1], [], []>} : vector<2x16xbf16>, vector<16x128xbf16>, vector<2x128xf32> -> vector<2x128xf32>
    %157 = arith.addf %150, %156 : vector<2x128xf32>
    %158 = vector.extract_strided_slice %106 {offsets = [0, 7, 0], sizes = [2, 1, 16], strides = [1, 1, 1]} : vector<2x16x16xf32> to vector<2x1x16xf32>
    %159 = vector.shape_cast %158 : vector<2x1x16xf32> to vector<2x16xf32>
    %160 = arith.truncf %159 : vector<2x16xf32> to vector<2x16xbf16>
    %161 = vector.extract_strided_slice %107 {offsets = [7, 0, 0], sizes = [1, 16, 128], strides = [1, 1, 1]} : vector<16x16x128xbf16> to vector<1x16x128xbf16>
    %162 = vector.shape_cast %161 : vector<1x16x128xbf16> to vector<16x128xbf16>
    %cst_46 = arith.constant dense<0.000000e+00> : vector<2x128xf32>
    %163 = tpu.matmul %160, %162, %cst_46 {dimension_numbers = #tpu.dot_dimension_numbers<[1], [0], [0], [1], [0, 0, 1, 1], [], []>} : vector<2x16xbf16>, vector<16x128xbf16>, vector<2x128xf32> -> vector<2x128xf32>
    %164 = arith.addf %157, %163 : vector<2x128xf32>
    %165 = vector.extract_strided_slice %106 {offsets = [0, 8, 0], sizes = [2, 1, 16], strides = [1, 1, 1]} : vector<2x16x16xf32> to vector<2x1x16xf32>
    %166 = vector.shape_cast %165 : vector<2x1x16xf32> to vector<2x16xf32>
    %167 = arith.truncf %166 : vector<2x16xf32> to vector<2x16xbf16>
    %168 = vector.extract_strided_slice %107 {offsets = [8, 0, 0], sizes = [1, 16, 128], strides = [1, 1, 1]} : vector<16x16x128xbf16> to vector<1x16x128xbf16>
    %169 = vector.shape_cast %168 : vector<1x16x128xbf16> to vector<16x128xbf16>
    %cst_47 = arith.constant dense<0.000000e+00> : vector<2x128xf32>
    %170 = tpu.matmul %167, %169, %cst_47 {dimension_numbers = #tpu.dot_dimension_numbers<[1], [0], [0], [1], [0, 0, 1, 1], [], []>} : vector<2x16xbf16>, vector<16x128xbf16>, vector<2x128xf32> -> vector<2x128xf32>
    %171 = arith.addf %164, %170 : vector<2x128xf32>
    %172 = vector.extract_strided_slice %106 {offsets = [0, 9, 0], sizes = [2, 1, 16], strides = [1, 1, 1]} : vector<2x16x16xf32> to vector<2x1x16xf32>
    %173 = vector.shape_cast %172 : vector<2x1x16xf32> to vector<2x16xf32>
    %174 = arith.truncf %173 : vector<2x16xf32> to vector<2x16xbf16>
    %175 = vector.extract_strided_slice %107 {offsets = [9, 0, 0], sizes = [1, 16, 128], strides = [1, 1, 1]} : vector<16x16x128xbf16> to vector<1x16x128xbf16>
    %176 = vector.shape_cast %175 : vector<1x16x128xbf16> to vector<16x128xbf16>
    %cst_48 = arith.constant dense<0.000000e+00> : vector<2x128xf32>
    %177 = tpu.matmul %174, %176, %cst_48 {dimension_numbers = #tpu.dot_dimension_numbers<[1], [0], [0], [1], [0, 0, 1, 1], [], []>} : vector<2x16xbf16>, vector<16x128xbf16>, vector<2x128xf32> -> vector<2x128xf32>
    %178 = arith.addf %171, %177 : vector<2x128xf32>
    %179 = vector.extract_strided_slice %106 {offsets = [0, 10, 0], sizes = [2, 1, 16], strides = [1, 1, 1]} : vector<2x16x16xf32> to vector<2x1x16xf32>
    %180 = vector.shape_cast %179 : vector<2x1x16xf32> to vector<2x16xf32>
    %181 = arith.truncf %180 : vector<2x16xf32> to vector<2x16xbf16>
    %182 = vector.extract_strided_slice %107 {offsets = [10, 0, 0], sizes = [1, 16, 128], strides = [1, 1, 1]} : vector<16x16x128xbf16> to vector<1x16x128xbf16>
    %183 = vector.shape_cast %182 : vector<1x16x128xbf16> to vector<16x128xbf16>
    %cst_49 = arith.constant dense<0.000000e+00> : vector<2x128xf32>
    %184 = tpu.matmul %181, %183, %cst_49 {dimension_numbers = #tpu.dot_dimension_numbers<[1], [0], [0], [1], [0, 0, 1, 1], [], []>} : vector<2x16xbf16>, vector<16x128xbf16>, vector<2x128xf32> -> vector<2x128xf32>
    %185 = arith.addf %178, %184 : vector<2x128xf32>
    %186 = vector.extract_strided_slice %106 {offsets = [0, 11, 0], sizes = [2, 1, 16], strides = [1, 1, 1]} : vector<2x16x16xf32> to vector<2x1x16xf32>
    %187 = vector.shape_cast %186 : vector<2x1x16xf32> to vector<2x16xf32>
    %188 = arith.truncf %187 : vector<2x16xf32> to vector<2x16xbf16>
    %189 = vector.extract_strided_slice %107 {offsets = [11, 0, 0], sizes = [1, 16, 128], strides = [1, 1, 1]} : vector<16x16x128xbf16> to vector<1x16x128xbf16>
    %190 = vector.shape_cast %189 : vector<1x16x128xbf16> to vector<16x128xbf16>
    %cst_50 = arith.constant dense<0.000000e+00> : vector<2x128xf32>
    %191 = tpu.matmul %188, %190, %cst_50 {dimension_numbers = #tpu.dot_dimension_numbers<[1], [0], [0], [1], [0, 0, 1, 1], [], []>} : vector<2x16xbf16>, vector<16x128xbf16>, vector<2x128xf32> -> vector<2x128xf32>
    %192 = arith.addf %185, %191 : vector<2x128xf32>
    %193 = vector.extract_strided_slice %106 {offsets = [0, 12, 0], sizes = [2, 1, 16], strides = [1, 1, 1]} : vector<2x16x16xf32> to vector<2x1x16xf32>
    %194 = vector.shape_cast %193 : vector<2x1x16xf32> to vector<2x16xf32>
    %195 = arith.truncf %194 : vector<2x16xf32> to vector<2x16xbf16>
    %196 = vector.extract_strided_slice %107 {offsets = [12, 0, 0], sizes = [1, 16, 128], strides = [1, 1, 1]} : vector<16x16x128xbf16> to vector<1x16x128xbf16>
    %197 = vector.shape_cast %196 : vector<1x16x128xbf16> to vector<16x128xbf16>
    %cst_51 = arith.constant dense<0.000000e+00> : vector<2x128xf32>
    %198 = tpu.matmul %195, %197, %cst_51 {dimension_numbers = #tpu.dot_dimension_numbers<[1], [0], [0], [1], [0, 0, 1, 1], [], []>} : vector<2x16xbf16>, vector<16x128xbf16>, vector<2x128xf32> -> vector<2x128xf32>
    %199 = arith.addf %192, %198 : vector<2x128xf32>
    %200 = vector.extract_strided_slice %106 {offsets = [0, 13, 0], sizes = [2, 1, 16], strides = [1, 1, 1]} : vector<2x16x16xf32> to vector<2x1x16xf32>
    %201 = vector.shape_cast %200 : vector<2x1x16xf32> to vector<2x16xf32>
    %202 = arith.truncf %201 : vector<2x16xf32> to vector<2x16xbf16>
    %203 = vector.extract_strided_slice %107 {offsets = [13, 0, 0], sizes = [1, 16, 128], strides = [1, 1, 1]} : vector<16x16x128xbf16> to vector<1x16x128xbf16>
    %204 = vector.shape_cast %203 : vector<1x16x128xbf16> to vector<16x128xbf16>
    %cst_52 = arith.constant dense<0.000000e+00> : vector<2x128xf32>
    %205 = tpu.matmul %202, %204, %cst_52 {dimension_numbers = #tpu.dot_dimension_numbers<[1], [0], [0], [1], [0, 0, 1, 1], [], []>} : vector<2x16xbf16>, vector<16x128xbf16>, vector<2x128xf32> -> vector<2x128xf32>
    %206 = arith.addf %199, %205 : vector<2x128xf32>
    %207 = vector.extract_strided_slice %106 {offsets = [0, 14, 0], sizes = [2, 1, 16], strides = [1, 1, 1]} : vector<2x16x16xf32> to vector<2x1x16xf32>
    %208 = vector.shape_cast %207 : vector<2x1x16xf32> to vector<2x16xf32>
    %209 = arith.truncf %208 : vector<2x16xf32> to vector<2x16xbf16>
    %210 = vector.extract_strided_slice %107 {offsets = [14, 0, 0], sizes = [1, 16, 128], strides = [1, 1, 1]} : vector<16x16x128xbf16> to vector<1x16x128xbf16>
    %211 = vector.shape_cast %210 : vector<1x16x128xbf16> to vector<16x128xbf16>
    %cst_53 = arith.constant dense<0.000000e+00> : vector<2x128xf32>
    %212 = tpu.matmul %209, %211, %cst_53 {dimension_numbers = #tpu.dot_dimension_numbers<[1], [0], [0], [1], [0, 0, 1, 1], [], []>} : vector<2x16xbf16>, vector<16x128xbf16>, vector<2x128xf32> -> vector<2x128xf32>
    %213 = arith.addf %206, %212 : vector<2x128xf32>
    %214 = vector.extract_strided_slice %106 {offsets = [0, 15, 0], sizes = [2, 1, 16], strides = [1, 1, 1]} : vector<2x16x16xf32> to vector<2x1x16xf32>
    %215 = vector.shape_cast %214 : vector<2x1x16xf32> to vector<2x16xf32>
    %216 = arith.truncf %215 : vector<2x16xf32> to vector<2x16xbf16>
    %217 = vector.extract_strided_slice %107 {offsets = [15, 0, 0], sizes = [1, 16, 128], strides = [1, 1, 1]} : vector<16x16x128xbf16> to vector<1x16x128xbf16>
    %218 = vector.shape_cast %217 : vector<1x16x128xbf16> to vector<16x128xbf16>
    %cst_54 = arith.constant dense<0.000000e+00> : vector<2x128xf32>
    %219 = tpu.matmul %216, %218, %cst_54 {dimension_numbers = #tpu.dot_dimension_numbers<[1], [0], [0], [1], [0, 0, 1, 1], [], []>} : vector<2x16xbf16>, vector<16x128xbf16>, vector<2x128xf32> -> vector<2x128xf32>
    %220 = arith.addf %213, %219 : vector<2x128xf32>
    %c0_55 = arith.constant 0 : index
    %c0_56 = arith.constant 0 : index
    %221 = vector.load %arg6[%c0_55, %c0_56] : memref<1x128xf32, #tpu.memory_space<vmem>>, vector<1x128xf32>
    %222 = vector.broadcast %221 : vector<1x128xf32> to vector<2x128xf32>
    %223 = arith.addf %220, %222 : vector<2x128xf32>
    %cst_57 = arith.constant dense<0.000000e+00> : vector<128xf32>
    %224 = vector.multi_reduction <add>, %223, %cst_57 [0] : vector<2x128xf32> to vector<128xf32>
    %225 = vector.shape_cast %224 : vector<128xf32> to vector<1x128xf32>
    %cst_58 = arith.constant 2.000000e+00 : f32
    %226 = vector.broadcast %cst_58 : f32 to vector<1x128xf32>
    %227 = arith.divf %225, %226 : vector<1x128xf32>
    %228 = vector.broadcast %227 : vector<1x128xf32> to vector<2x128xf32>
    %229 = arith.subf %223, %228 : vector<2x128xf32>
    %230 = arith.mulf %229, %229 : vector<2x128xf32>
    %cst_59 = arith.constant dense<0.000000e+00> : vector<128xf32>
    %231 = vector.multi_reduction <add>, %230, %cst_59 [0] : vector<2x128xf32> to vector<128xf32>
    %232 = vector.shape_cast %231 : vector<128xf32> to vector<1x128xf32>
    %cst_60 = arith.constant 2.000000e+00 : f32
    %233 = vector.broadcast %cst_60 : f32 to vector<1x128xf32>
    %234 = arith.divf %232, %233 : vector<1x128xf32>
    %235 = vector.broadcast %227 : vector<1x128xf32> to vector<2x128xf32>
    %236 = arith.subf %223, %235 : vector<2x128xf32>
    %cst_61 = arith.constant 9.99999974E-6 : f32
    %237 = vector.broadcast %cst_61 : f32 to vector<1x128xf32>
    %238 = arith.addf %234, %237 : vector<1x128xf32>
    %239 = math.rsqrt %238 : vector<1x128xf32>
    %240 = vector.broadcast %239 : vector<1x128xf32> to vector<2x128xf32>
    %241 = arith.mulf %236, %240 : vector<2x128xf32>
    %c0_62 = arith.constant 0 : index
    %c0_63 = arith.constant 0 : index
    %242 = vector.load %arg7[%c0_62, %c0_63] : memref<1x128xf32, #tpu.memory_space<vmem>>, vector<1x128xf32>
    %243 = vector.broadcast %242 : vector<1x128xf32> to vector<2x128xf32>
    %244 = arith.mulf %241, %243 : vector<2x128xf32>
    %c0_64 = arith.constant 0 : index
    %c0_65 = arith.constant 0 : index
    %245 = vector.load %arg8[%c0_64, %c0_65] : memref<1x128xf32, #tpu.memory_space<vmem>>, vector<1x128xf32>
    %246 = vector.broadcast %245 : vector<1x128xf32> to vector<2x128xf32>
    %247 = arith.addf %244, %246 : vector<2x128xf32>
    %cst_66 = arith.constant 0.000000e+00 : f32
    %248 = vector.broadcast %cst_66 : f32 to vector<2x128xf32>
    %249 = arith.maximumf %247, %248 : vector<2x128xf32>
    %250 = arith.truncf %249 : vector<2x128xf32> to vector<2x128xbf16>
    %c0_67 = arith.constant 0 : index
    %c0_68 = arith.constant 0 : index
    %251 = vector.load %arg9[%c0_67, %c0_68] : memref<128x128xbf16, #tpu.memory_space<vmem>>, vector<128x128xbf16>
    %cst_69 = arith.constant dense<0.000000e+00> : vector<2x128xf32>
    %252 = tpu.matmul %250, %251, %cst_69 {dimension_numbers = #tpu.dot_dimension_numbers<[1], [0], [0], [1], [0, 0, 1, 1], [], []>} : vector<2x128xbf16>, vector<128x128xbf16>, vector<2x128xf32> -> vector<2x128xf32>
    %c0_70 = arith.constant 0 : index
    %c0_71 = arith.constant 0 : index
    %253 = vector.load %arg10[%c0_70, %c0_71] : memref<1x128xf32, #tpu.memory_space<vmem>>, vector<1x128xf32>
    %254 = vector.broadcast %253 : vector<1x128xf32> to vector<2x128xf32>
    %255 = arith.addf %252, %254 : vector<2x128xf32>
    %cst_72 = arith.constant dense<0.000000e+00> : vector<128xf32>
    %256 = vector.multi_reduction <add>, %255, %cst_72 [0] : vector<2x128xf32> to vector<128xf32>
    %257 = vector.shape_cast %256 : vector<128xf32> to vector<1x128xf32>
    %cst_73 = arith.constant 2.000000e+00 : f32
    %258 = vector.broadcast %cst_73 : f32 to vector<1x128xf32>
    %259 = arith.divf %257, %258 : vector<1x128xf32>
    %260 = vector.broadcast %259 : vector<1x128xf32> to vector<2x128xf32>
    %261 = arith.subf %255, %260 : vector<2x128xf32>
    %262 = arith.mulf %261, %261 : vector<2x128xf32>
    %cst_74 = arith.constant dense<0.000000e+00> : vector<128xf32>
    %263 = vector.multi_reduction <add>, %262, %cst_74 [0] : vector<2x128xf32> to vector<128xf32>
    %264 = vector.shape_cast %263 : vector<128xf32> to vector<1x128xf32>
    %cst_75 = arith.constant 2.000000e+00 : f32
    %265 = vector.broadcast %cst_75 : f32 to vector<1x128xf32>
    %266 = arith.divf %264, %265 : vector<1x128xf32>
    %267 = vector.broadcast %259 : vector<1x128xf32> to vector<2x128xf32>
    %268 = arith.subf %255, %267 : vector<2x128xf32>
    %cst_76 = arith.constant 9.99999974E-6 : f32
    %269 = vector.broadcast %cst_76 : f32 to vector<1x128xf32>
    %270 = arith.addf %266, %269 : vector<1x128xf32>
    %271 = math.rsqrt %270 : vector<1x128xf32>
    %272 = vector.broadcast %271 : vector<1x128xf32> to vector<2x128xf32>
    %273 = arith.mulf %268, %272 : vector<2x128xf32>
    %c0_77 = arith.constant 0 : index
    %c0_78 = arith.constant 0 : index
    %274 = vector.load %arg11[%c0_77, %c0_78] : memref<1x128xf32, #tpu.memory_space<vmem>>, vector<1x128xf32>
    %275 = vector.broadcast %274 : vector<1x128xf32> to vector<2x128xf32>
    %276 = arith.mulf %273, %275 : vector<2x128xf32>
    %c0_79 = arith.constant 0 : index
    %c0_80 = arith.constant 0 : index
    %277 = vector.load %arg12[%c0_79, %c0_80] : memref<1x128xf32, #tpu.memory_space<vmem>>, vector<1x128xf32>
    %278 = vector.broadcast %277 : vector<1x128xf32> to vector<2x128xf32>
    %279 = arith.addf %276, %278 : vector<2x128xf32>
    %cst_81 = arith.constant 0.000000e+00 : f32
    %280 = vector.broadcast %cst_81 : f32 to vector<2x128xf32>
    %281 = arith.maximumf %279, %280 : vector<2x128xf32>
    %282 = arith.truncf %281 : vector<2x128xf32> to vector<2x128xbf16>
    %c0_82 = arith.constant 0 : index
    %c0_83 = arith.constant 0 : index
    %283 = vector.load %arg13[%c0_82, %c0_83] : memref<128x10xbf16, #tpu.memory_space<vmem>>, vector<128x10xbf16>
    %cst_84 = arith.constant dense<0.000000e+00> : vector<2x10xf32>
    %284 = tpu.matmul %282, %283, %cst_84 {dimension_numbers = #tpu.dot_dimension_numbers<[1], [0], [0], [1], [0, 0, 1, 1], [], []>} : vector<2x128xbf16>, vector<128x10xbf16>, vector<2x10xf32> -> vector<2x10xf32>
    %c0_85 = arith.constant 0 : index
    %c0_86 = arith.constant 0 : index
    %285 = vector.load %arg14[%c0_85, %c0_86] : memref<1x10xf32, #tpu.memory_space<vmem>>, vector<1x10xf32>
    %286 = vector.broadcast %285 : vector<1x10xf32> to vector<2x10xf32>
    %287 = arith.addf %284, %286 : vector<2x10xf32>
    %c0_87 = arith.constant 0 : index
    %c0_88 = arith.constant 0 : index
    %288 = vector.load %arg15[%c0_87, %c0_88] : memref<2x10xf32, #tpu.memory_space<vmem>>, vector<2x10xf32>
    tpu.vector_store %arg15[%c0_87, %c0_88], %287 {strides = array<i32>} : memref<2x10xf32, #tpu.memory_space<vmem>>, vector<2x10xf32>,
    return
  }
}

</mosaic_0001>

<llo_original>
// kernel: vgg_forward.1
$region0: #{vgg_forward.1}
  #allocation0 [shape = 'u32[]', space=smem, size = 0x4, offset = 0x4, fixed_abs, tag = 'smem constant byte address 0x4 - core index']
  #allocation1 [shape = 'u32[144,128]{1,0:T(1,128)}', space=vmem, size = 0x12000, scoped, tag = 'internal scratch']
  #allocation2 [shape = 'f32[2,10,10,8]{3,2,1,0:T(8,128)}', space=vmem, size = 0x28000, scoped, tag = 'scratch operand']
  %s0 = inlined_call_operand.vmem [shape: bf16[2,256,32], index: 0, kind: input, shape index: {}]
  %s1 = inlined_call_operand.vmem [shape: bf16[32,8], index: 1, kind: input, shape index: {}]
  %s2 = inlined_call_operand.vmem [shape: f32[1,8], index: 2, kind: input, shape index: {}]
  %s3 = inlined_call_operand.vmem [shape: bf16[9,8,16], index: 3, kind: input, shape index: {}]
  %s4 = inlined_call_operand.vmem [shape: f32[1,16], index: 4, kind: input, shape index: {}]
  %s5 = inlined_call_operand.vmem [shape: bf16[16,16,128], index: 5, kind: input, shape index: {}]
  %s6 = inlined_call_operand.vmem [shape: f32[1,128], index: 6, kind: input, shape index: {}]
  %s7 = inlined_call_operand.vmem [shape: f32[1,128], index: 7, kind: input, shape index: {}]
  %s8 = inlined_call_operand.vmem [shape: f32[1,128], index: 8, kind: input, shape index: {}]
  %s9 = inlined_call_operand.vmem [shape: bf16[128,128], index: 9, kind: input, shape index: {}]
  %s10 = inlined_call_operand.vmem [shape: f32[1,128], index: 10, kind: input, shape index: {}]
  %s11 = inlined_call_operand.vmem [shape: f32[1,128], index: 11, kind: input, shape index: {}]
  %s12 = inlined_call_operand.vmem [shape: f32[1,128], index: 12, kind: input, shape index: {}]
  %s13 = inlined_call_operand.vmem [shape: bf16[128,10], index: 13, kind: input, shape index: {}]
  %s14 = inlined_call_operand.vmem [shape: f32[1,10], index: 14, kind: input, shape index: {}]
  %s15 = inlined_call_operand.hbm [shape: f32[2,10], index: 15, kind: output, shape index: {}]
  %s16 = sld [smem:[#allocation0]]
  $region70: #{vgg_forward.1} parent=0
    _
  %s18 = ssub.s32 1, %s16
  %s19 = scalar_select 0, %s18, %s16
  $region1: #{vgg_forward.1} parent=0
    #allocation3 [shape = 'u8[1024]{0}', space=vmem, size = 0x400, scoped, tag = 'output window, operand 0, single buffered']
    #allocation4 [shape = 's32[1]{0}', space=sflag, size = 0x4, scoped, tag = 'scoped memory for vgg_forward.1']
    %20 = vsyncpa [#allocation4], 0
    // Predicated region
    $region2: #{vgg_forward.1} parent=1 // pred_check
      _
    $region3: #{vgg_forward.1} parent=1 // pred_check_branch
      %22 = sbr.rel (0) target = $region5
    $region4: #{vgg_forward.1} parent=1 // pred_region
      _
    $region5: #{vgg_forward.1} parent=1 // pred_fallthru
      _
    // Predicated region
    $region6: #{vgg_forward.1} parent=1 // pred_check
      _
    $region7: #{vgg_forward.1} parent=1 // pred_check_branch
      %24 = sbr.rel (0) target = $region9
    $region8: #{vgg_forward.1} parent=1 // pred_region
      _
    $region9: #{vgg_forward.1} parent=1 // pred_fallthru
      _
    // Predicated region
    $region10: #{vgg_forward.1} parent=1 // pred_check
      _
    $region11: #{vgg_forward.1} parent=1 // pred_check_branch
      %26 = sbr.rel (0) target = $region13
    $region12: #{vgg_forward.1} parent=1 // pred_region
      _
    $region13: #{vgg_forward.1} parent=1 // pred_fallthru
      _
    // Predicated region
    $region14: #{vgg_forward.1} parent=1 // pred_check
      _
    $region15: #{vgg_forward.1} parent=1 // pred_check_branch
      %28 = sbr.rel (0) target = $region17
    $region16: #{vgg_forward.1} parent=1 // pred_region
      _
    $region17: #{vgg_forward.1} parent=1 // pred_fallthru
      _
    // Predicated region
    $region18: #{vgg_forward.1} parent=1 // pred_check
      _
    $region19: #{vgg_forward.1} parent=1 // pred_check_branch
      %30 = sbr.rel (0) target = $region21
    $region20: #{vgg_forward.1} parent=1 // pred_region
      _
    $region21: #{vgg_forward.1} parent=1 // pred_fallthru
      _
    // Predicated region
    $region22: #{vgg_forward.1} parent=1 // pred_check
      _
    $region23: #{vgg_forward.1} parent=1 // pred_check_branch
      %32 = sbr.rel (0) target = $region25
    $region24: #{vgg_forward.1} parent=1 // pred_region
      _
    $region25: #{vgg_forward.1} parent=1 // pred_fallthru
      _
    // Predicated region
    $region26: #{vgg_forward.1} parent=1 // pred_check
      _
    $region27: #{vgg_forward.1} parent=1 // pred_check_branch
      %34 = sbr.rel (0) target = $region29
    $region28: #{vgg_forward.1} parent=1 // pred_region
      _
    $region29: #{vgg_forward.1} parent=1 // pred_fallthru
      _
    // Predicated region
    $region30: #{vgg_forward.1} parent=1 // pred_check
      _
    $region31: #{vgg_forward.1} parent=1 // pred_check_branch
      %36 = sbr.rel (0) target = $region33
    $region32: #{vgg_forward.1} parent=1 // pred_region
      _
    $region33: #{vgg_forward.1} parent=1 // pred_fallthru
      _
    // Predicated region
    $region34: #{vgg_forward.1} parent=1 // pred_check
      _
    $region35: #{vgg_forward.1} parent=1 // pred_check_branch
      %38 = sbr.rel (0) target = $region37
    $region36: #{vgg_forward.1} parent=1 // pred_region
      _
    $region37: #{vgg_forward.1} parent=1 // pred_fallthru
      _
    // Predicated region
    $region38: #{vgg_forward.1} parent=1 // pred_check
      _
    $region39: #{vgg_forward.1} parent=1 // pred_check_branch
      %40 = sbr.rel (0) target = $region41
    $region40: #{vgg_forward.1} parent=1 // pred_region
      _
    $region41: #{vgg_forward.1} parent=1 // pred_fallthru
      _
    // Predicated region
    $region42: #{vgg_forward.1} parent=1 // pred_check
      _
    $region43: #{vgg_forward.1} parent=1 // pred_check_branch
      %42 = sbr.rel (0) target = $region45
    $region44: #{vgg_forward.1} parent=1 // pred_region
      _
    $region45: #{vgg_forward.1} parent=1 // pred_fallthru
      _
    // Predicated region
    $region46: #{vgg_forward.1} parent=1 // pred_check
      _
    $region47: #{vgg_forward.1} parent=1 // pred_check_branch
      %44 = sbr.rel (0) target = $region49
    $region48: #{vgg_forward.1} parent=1 // pred_region
      _
    $region49: #{vgg_forward.1} parent=1 // pred_fallthru
      _
    // Predicated region
    $region50: #{vgg_forward.1} parent=1 // pred_check
      _
    $region51: #{vgg_forward.1} parent=1 // pred_check_branch
      %46 = sbr.rel (0) target = $region53
    $region52: #{vgg_forward.1} parent=1 // pred_region
      _
    $region53: #{vgg_forward.1} parent=1 // pred_fallthru
      _
    // Predicated region
    $region54: #{vgg_forward.1} parent=1 // pred_check
      _
    $region55: #{vgg_forward.1} parent=1 // pred_check_branch
      %48 = sbr.rel (0) target = $region57
    $region56: #{vgg_forward.1} parent=1 // pred_region
      _
    $region57: #{vgg_forward.1} parent=1 // pred_fallthru
      _
    // Predicated region
    $region58: #{vgg_forward.1} parent=1 // pred_check
      _
    $region59: #{vgg_forward.1} parent=1 // pred_check_branch
      %50 = sbr.rel (0) target = $region61
    $region60: #{vgg_forward.1} parent=1 // pred_region
      _
    $region61: #{vgg_forward.1} parent=1 // pred_fallthru
      _
    %v52 = vld [vmem:[%s0] sm:$0xf]
    %v53 = vld [vmem:[%s0 + $0x4] sm:$0xf]
    %v54 = vld [vmem:[%s0 + $0x8] sm:$0xf]
    %v55 = vld [vmem:[%s0 + $0xc] sm:$0xf]
    %v56 = vld [vmem:[%s0 + $0x10] sm:$0xf]
    %v57 = vld [vmem:[%s0 + $0x14] sm:$0xf]
    %v58 = vld [vmem:[%s0 + $0x18] sm:$0xf]
    %v59 = vld [vmem:[%s0 + $0x1c] sm:$0xf]
    %v60 = vld [vmem:[%s0 + $0x20] sm:$0xf]
    %v61 = vld [vmem:[%s0 + $0x24] sm:$0xf]
    %v62 = vld [vmem:[%s0 + $0x28] sm:$0xf]
    %v63 = vld [vmem:[%s0 + $0x2c] sm:$0xf]
    %v64 = vld [vmem:[%s0 + $0x30] sm:$0xf]
    %v65 = vld [vmem:[%s0 + $0x34] sm:$0xf]
    %v66 = vld [vmem:[%s0 + $0x38] sm:$0xf]
    %v67 = vld [vmem:[%s0 + $0x3c] sm:$0xf]
    %v68 = vld [vmem:[%s0 + $0x40] sm:$0xf]
    %v69 = vld [vmem:[%s0 + $0x44] sm:$0xf]
    %v70 = vld [vmem:[%s0 + $0x48] sm:$0xf]
    %v71 = vld [vmem:[%s0 + $0x4c] sm:$0xf]
    %v72 = vld [vmem:[%s0 + $0x50] sm:$0xf]
    %v73 = vld [vmem:[%s0 + $0x54] sm:$0xf]
    %v74 = vld [vmem:[%s0 + $0x58] sm:$0xf]
    %v75 = vld [vmem:[%s0 + $0x5c] sm:$0xf]
    %v76 = vld [vmem:[%s0 + $0x60] sm:$0xf]
    %v77 = vld [vmem:[%s0 + $0x64] sm:$0xf]
    %v78 = vld [vmem:[%s0 + $0x68] sm:$0xf]
    %v79 = vld [vmem:[%s0 + $0x6c] sm:$0xf]
    %v80 = vld [vmem:[%s0 + $0x70] sm:$0xf]
    %v81 = vld [vmem:[%s0 + $0x74] sm:$0xf]
    %v82 = vld [vmem:[%s0 + $0x78] sm:$0xf]
    %v83 = vld [vmem:[%s0 + $0x7c] sm:$0xf]
    %v84 = vld [vmem:[%s0 + $0x80] sm:$0xf]
    %v85 = vld [vmem:[%s0 + $0x84] sm:$0xf]
    %v86 = vld [vmem:[%s0 + $0x88] sm:$0xf]
    %v87 = vld [vmem:[%s0 + $0x8c] sm:$0xf]
    %v88 = vld [vmem:[%s0 + $0x90] sm:$0xf]
    %v89 = vld [vmem:[%s0 + $0x94] sm:$0xf]
    %v90 = vld [vmem:[%s0 + $0x98] sm:$0xf]
    %v91 = vld [vmem:[%s0 + $0x9c] sm:$0xf]
    %v92 = vld [vmem:[%s0 + $0xa0] sm:$0xf]
    %v93 = vld [vmem:[%s0 + $0xa4] sm:$0xf]
    %v94 = vld [vmem:[%s0 + $0xa8] sm:$0xf]
    %v95 = vld [vmem:[%s0 + $0xac] sm:$0xf]
    %v96 = vld [vmem:[%s0 + $0xb0] sm:$0xf]
    %v97 = vld [vmem:[%s0 + $0xb4] sm:$0xf]
    %v98 = vld [vmem:[%s0 + $0xb8] sm:$0xf]
    %v99 = vld [vmem:[%s0 + $0xbc] sm:$0xf]
    %v100 = vld [vmem:[%s0 + $0xc0] sm:$0xf]
    %v101 = vld [vmem:[%s0 + $0xc4] sm:$0xf]
    %v102 = vld [vmem:[%s0 + $0xc8] sm:$0xf]
    %v103 = vld [vmem:[%s0 + $0xcc] sm:$0xf]
    %v104 = vld [vmem:[%s0 + $0xd0] sm:$0xf]
    %v105 = vld [vmem:[%s0 + $0xd4] sm:$0xf]
    %v106 = vld [vmem:[%s0 + $0xd8] sm:$0xf]
    %v107 = vld [vmem:[%s0 + $0xdc] sm:$0xf]
    %v108 = vld [vmem:[%s0 + $0xe0] sm:$0xf]
    %v109 = vld [vmem:[%s0 + $0xe4] sm:$0xf]
    %v110 = vld [vmem:[%s0 + $0xe8] sm:$0xf]
    %v111 = vld [vmem:[%s0 + $0xec] sm:$0xf]
    %v112 = vld [vmem:[%s0 + $0xf0] sm:$0xf]
    %v113 = vld [vmem:[%s0 + $0xf4] sm:$0xf]
    %v114 = vld [vmem:[%s0 + $0xf8] sm:$0xf]
    %v115 = vld [vmem:[%s0 + $0xfc] sm:$0xf]
    %v116 = vld [vmem:[%s1] sm:$0xf]
    %v117 = vld [vmem:[%s1 + $0x4] sm:$0xf]
    %v118 = vld [vmem:[%s1 + $0x8] sm:$0xf]
    %v119 = vld [vmem:[%s1 + $0xc] sm:$0xf]
    %v120 = vld [vmem:[%s2] sm:$0x1]
    %v122 = vlaneseq
    %v123 = vshrl.u32 %v122, 7
    %v124 = vsub.s32 0, %v123
    %v125 = vrot.slane %v120, %v124
    %v191 = vunpack.c.l.b16 %v52
    %v192 = vunpack.c.l.b16 %v53
    %v193 = vunpack.c.l.b16 %v54
    %v194 = vunpack.c.l.b16 %v55
    %v195 = vunpack.c.l.b16 %v56
    %v196 = vunpack.c.l.b16 %v57
    %v197 = vunpack.c.l.b16 %v58
    %v198 = vunpack.c.l.b16 %v59
    %v199 = vunpack.c.l.b16 %v60
    %v200 = vunpack.c.l.b16 %v61
    %v201 = vunpack.c.l.b16 %v62
    %v202 = vunpack.c.l.b16 %v63
    %v203 = vunpack.c.l.b16 %v64
    %v204 = vunpack.c.l.b16 %v65
    %v205 = vunpack.c.l.b16 %v66
    %v206 = vunpack.c.l.b16 %v67
    %v207 = vunpack.c.l.b16 %v68
    %v208 = vunpack.c.l.b16 %v69
    %v209 = vunpack.c.l.b16 %v70
    %v210 = vunpack.c.l.b16 %v71
    %v211 = vunpack.c.l.b16 %v72
    %v212 = vunpack.c.l.b16 %v73
    %v213 = vunpack.c.l.b16 %v74
    %v214 = vunpack.c.l.b16 %v75
    %v215 = vunpack.c.l.b16 %v76
    %v216 = vunpack.c.l.b16 %v77
    %v217 = vunpack.c.l.b16 %v78
    %v218 = vunpack.c.l.b16 %v79
    %v219 = vunpack.c.l.b16 %v80
    %v220 = vunpack.c.l.b16 %v81
    %v221 = vunpack.c.l.b16 %v82
    %v222 = vunpack.c.l.b16 %v83
    %v223 = vunpack.c.l.b16 %v84
    %v224 = vunpack.c.l.b16 %v85
    %v225 = vunpack.c.l.b16 %v86
    %v226 = vunpack.c.l.b16 %v87
    %v227 = vunpack.c.l.b16 %v88
    %v228 = vunpack.c.l.b16 %v89
    %v229 = vunpack.c.l.b16 %v90
    %v230 = vunpack.c.l.b16 %v91
    %v231 = vunpack.c.l.b16 %v92
    %v232 = vunpack.c.l.b16 %v93
    %v233 = vunpack.c.l.b16 %v94
    %v234 = vunpack.c.l.b16 %v95
    %v235 = vunpack.c.l.b16 %v96
    %v236 = vunpack.c.l.b16 %v97
    %v237 = vunpack.c.l.b16 %v98
    %v238 = vunpack.c.l.b16 %v99
    %v239 = vunpack.c.l.b16 %v100
    %v240 = vunpack.c.l.b16 %v101
    %v241 = vunpack.c.l.b16 %v102
    %v242 = vunpack.c.l.b16 %v103
    %v243 = vunpack.c.l.b16 %v104
    %v244 = vunpack.c.l.b16 %v105
    %v245 = vunpack.c.l.b16 %v106
    %v246 = vunpack.c.l.b16 %v107
    %v247 = vunpack.c.l.b16 %v108
    %v248 = vunpack.c.l.b16 %v109
    %v249 = vunpack.c.l.b16 %v110
    %v250 = vunpack.c.l.b16 %v111
    %v251 = vunpack.c.l.b16 %v112
    %v252 = vunpack.c.l.b16 %v113
    %v253 = vunpack.c.l.b16 %v114
    %v254 = vunpack.c.l.b16 %v115
    %v255 = vpack.c.b16 %v192, %v191
    %v256 = vpack.c.b16 %v194, %v193
    %v257 = vpack.c.b16 %v196, %v195
    %v258 = vpack.c.b16 %v198, %v197
    %v259 = vpack.c.b16 %v200, %v199
    %v260 = vpack.c.b16 %v202, %v201
    %v261 = vpack.c.b16 %v204, %v203
    %v262 = vpack.c.b16 %v206, %v205
    %v263 = vpack.c.b16 %v208, %v207
    %v264 = vpack.c.b16 %v210, %v209
    %v265 = vpack.c.b16 %v212, %v211
    %v266 = vpack.c.b16 %v214, %v213
    %v267 = vpack.c.b16 %v216, %v215
    %v268 = vpack.c.b16 %v218, %v217
    %v269 = vpack.c.b16 %v220, %v219
    %v270 = vpack.c.b16 %v222, %v221
    %v271 = vpack.c.b16 %v224, %v223
    %v272 = vpack.c.b16 %v226, %v225
    %v273 = vpack.c.b16 %v228, %v227
    %v274 = vpack.c.b16 %v230, %v229
    %v275 = vpack.c.b16 %v232, %v231
    %v276 = vpack.c.b16 %v234, %v233
    %v277 = vpack.c.b16 %v236, %v235
    %v278 = vpack.c.b16 %v238, %v237
    %v279 = vpack.c.b16 %v240, %v239
    %v280 = vpack.c.b16 %v242, %v241
    %v281 = vpack.c.b16 %v244, %v243
    %v282 = vpack.c.b16 %v246, %v245
    %v283 = vpack.c.b16 %v248, %v247
    %v284 = vpack.c.b16 %v250, %v249
    %v285 = vpack.c.b16 %v252, %v251
    %v286 = vpack.c.b16 %v254, %v253
    %v291 = vunpack.c.l.b16 %v116
    %v292 = vunpack.c.l.b16 %v117
    %v293 = vunpack.c.l.b16 %v118
    %v294 = vunpack.c.l.b16 %v119
    %v295 = vpack.c.b16 %v292, %v291
    %v296 = vpack.c.b16 %v294, %v293
    %vm299 = vcmask 261120
    %v301 = vsel %vm299, %v255, 0
    %v304 = vsel %vm299, %v256, 0
    %v307 = vsel %vm299, %v257, 0
    %v310 = vsel %vm299, %v258, 0
    %v313 = vsel %vm299, %v259, 0
    %v316 = vsel %vm299, %v260, 0
    %v319 = vsel %vm299, %v261, 0
    %v322 = vsel %vm299, %v262, 0
    %v325 = vsel %vm299, %v263, 0
    %v328 = vsel %vm299, %v264, 0
    %v331 = vsel %vm299, %v265, 0
    %v334 = vsel %vm299, %v266, 0
    %v337 = vsel %vm299, %v267, 0
    %v340 = vsel %vm299, %v268, 0
    %v343 = vsel %vm299, %v269, 0
    %v346 = vsel %vm299, %v270, 0
    %v349 = vsel %vm299, %v271, 0
    %v352 = vsel %vm299, %v272, 0
    %v355 = vsel %vm299, %v273, 0
    %v358 = vsel %vm299, %v274, 0
    %v361 = vsel %vm299, %v275, 0
    %v364 = vsel %vm299, %v276, 0
    %v367 = vsel %vm299, %v277, 0
    %v370 = vsel %vm299, %v278, 0
    %v373 = vsel %vm299, %v279, 0
    %v376 = vsel %vm299, %v280, 0
    %v379 = vsel %vm299, %v281, 0
    %v382 = vsel %vm299, %v282, 0
    %v385 = vsel %vm299, %v283, 0
    %v388 = vsel %vm299, %v284, 0
    %v391 = vsel %vm299, %v285, 0
    %v394 = vsel %vm299, %v286, 0
    %396 = vmatprep.subr.bf16.mxu0 0
    %397 = vmatpush1.bf16.msra.mxu0 0
    %398 = vmatprep.subr.bf16.mxu0 0
    %399 = vmatpush1.bf16.msra.mxu0 0
    %400 = vmatprep.subr.bf16.mxu0 0
    %401 = vmatpush1.bf16.msra.mxu0 0
    %402 = vmatprep.subr.bf16.mxu0 0
    %403 = vmatpush1.bf16.msra.mxu0 0
    %404 = vmatprep.subr.bf16.mxu0 0
    %405 = vmatpush1.bf16.msra.mxu0 0
    %406 = vmatprep.subr.bf16.mxu0 0
    %407 = vmatpush1.bf16.msra.mxu0 0
    %408 = vmatprep.subr.bf16.mxu0 0
    %409 = vmatpush1.bf16.msra.mxu0 %v296
    %410 = vmatprep.subr.bf16.mxu0 0
    %411 = vmatpush1.bf16.msra.mxu0 %v295
    %412 = vmatprep.subr.bf16.mxu0 0
    %413 = vmatpush2.bf16.msra.mxu0 0
    %414 = vmatprep.subr.bf16.mxu0 0
    %415 = vmatpush2.bf16.msra.mxu0 0
    %416 = vmatprep.subr.bf16.mxu0 0
    %417 = vmatpush2.bf16.msra.mxu0 0
    %418 = vmatprep.subr.bf16.mxu0 0
    %419 = vmatpush2.bf16.msra.mxu0 0
    %420 = vmatprep.subr.bf16.mxu0 0
    %421 = vmatpush2.bf16.msra.mxu0 0
    %422 = vmatprep.subr.bf16.mxu0 0
    %423 = vmatpush2.bf16.msra.mxu0 0
    %424 = vmatprep.subr.bf16.mxu0 0
    %425 = vmatpush2.bf16.msra.mxu0 0
    %426 = vmatprep.subr.bf16.mxu0 0
    %427 = vmatpush2.bf16.msra.mxu0 0
    %428 = vmatprep.mubr.bf16.mxu0 0
    %429 = vmatmul.mubr.bf16.gmra.mxu0 %v301
    %v430 = vpop.f32.mrf.mxu0
    %v431 = vadd.f32 %v125, %v430
    %v432 = vpop.f32.mrf.mxu0
    %v433 = vpop.f32.mrf.mxu0
    %v434 = vadd.f32 %v125, %v433
    %v435 = vpop.f32.mrf.mxu0
    %436 = vmatprep.mubr.bf16.mxu0 0
    %437 = vmatmul.mubr.bf16.gmra.mxu0 %v304
    %v438 = vpop.f32.mrf.mxu0
    %v439 = vadd.f32 %v125, %v438
    %v440 = vpop.f32.mrf.mxu0
    %v441 = vpop.f32.mrf.mxu0
    %v442 = vadd.f32 %v125, %v441
    %v443 = vpop.f32.mrf.mxu0
    %444 = vmatprep.mubr.bf16.mxu0 0
    %445 = vmatmul.mubr.bf16.gmra.mxu0 %v307
    %v446 = vpop.f32.mrf.mxu0
    %v447 = vadd.f32 %v125, %v446
    %v448 = vpop.f32.mrf.mxu0
    %v449 = vpop.f32.mrf.mxu0
    %v450 = vadd.f32 %v125, %v449
    %v451 = vpop.f32.mrf.mxu0
    %452 = vmatprep.mubr.bf16.mxu0 0
    %453 = vmatmul.mubr.bf16.gmra.mxu0 %v310
    %v454 = vpop.f32.mrf.mxu0
    %v455 = vadd.f32 %v125, %v454
    %v456 = vpop.f32.mrf.mxu0
    %v457 = vpop.f32.mrf.mxu0
    %v458 = vadd.f32 %v125, %v457
    %v459 = vpop.f32.mrf.mxu0
    %460 = vmatprep.mubr.bf16.mxu0 0
    %461 = vmatmul.mubr.bf16.gmra.mxu0 %v313
    %v462 = vpop.f32.mrf.mxu0
    %v463 = vadd.f32 %v125, %v462
    %v464 = vpop.f32.mrf.mxu0
    %v465 = vpop.f32.mrf.mxu0
    %v466 = vadd.f32 %v125, %v465
    %v467 = vpop.f32.mrf.mxu0
    %468 = vmatprep.mubr.bf16.mxu0 0
    %469 = vmatmul.mubr.bf16.gmra.mxu0 %v316
    %v470 = vpop.f32.mrf.mxu0
    %v471 = vadd.f32 %v125, %v470
    %v472 = vpop.f32.mrf.mxu0
    %v473 = vpop.f32.mrf.mxu0
    %v474 = vadd.f32 %v125, %v473
    %v475 = vpop.f32.mrf.mxu0
    %476 = vmatprep.mubr.bf16.mxu0 0
    %477 = vmatmul.mubr.bf16.gmra.mxu0 %v319
    %v478 = vpop.f32.mrf.mxu0
    %v479 = vadd.f32 %v125, %v478
    %v480 = vpop.f32.mrf.mxu0
    %v481 = vpop.f32.mrf.mxu0
    %v482 = vadd.f32 %v125, %v481
    %v483 = vpop.f32.mrf.mxu0
    %484 = vmatprep.mubr.bf16.mxu0 0
    %485 = vmatmul.mubr.bf16.gmra.mxu0 %v322
    %v486 = vpop.f32.mrf.mxu0
    %v487 = vadd.f32 %v125, %v486
    %v488 = vpop.f32.mrf.mxu0
    %v489 = vpop.f32.mrf.mxu0
    %v490 = vadd.f32 %v125, %v489
    %v491 = vpop.f32.mrf.mxu0
    %492 = vmatprep.mubr.bf16.mxu0 0
    %493 = vmatmul.mubr.bf16.gmra.mxu0 %v325
    %v494 = vpop.f32.mrf.mxu0
    %v495 = vadd.f32 %v125, %v494
    %v496 = vpop.f32.mrf.mxu0
    %v497 = vpop.f32.mrf.mxu0
    %v498 = vadd.f32 %v125, %v497
    %v499 = vpop.f32.mrf.mxu0
    %500 = vmatprep.mubr.bf16.mxu0 0
    %501 = vmatmul.mubr.bf16.gmra.mxu0 %v328
    %v502 = vpop.f32.mrf.mxu0
    %v503 = vadd.f32 %v125, %v502
    %v504 = vpop.f32.mrf.mxu0
    %v505 = vpop.f32.mrf.mxu0
    %v506 = vadd.f32 %v125, %v505
    %v507 = vpop.f32.mrf.mxu0
    %508 = vmatprep.mubr.bf16.mxu0 0
    %509 = vmatmul.mubr.bf16.gmra.mxu0 %v331
    %v510 = vpop.f32.mrf.mxu0
    %v511 = vadd.f32 %v125, %v510
    %v512 = vpop.f32.mrf.mxu0
    %v513 = vpop.f32.mrf.mxu0
    %v514 = vadd.f32 %v125, %v513
    %v515 = vpop.f32.mrf.mxu0
    %516 = vmatprep.mubr.bf16.mxu0 0
    %517 = vmatmul.mubr.bf16.gmra.mxu0 %v334
    %v518 = vpop.f32.mrf.mxu0
    %v519 = vadd.f32 %v125, %v518
    %v520 = vpop.f32.mrf.mxu0
    %v521 = vpop.f32.mrf.mxu0
    %v522 = vadd.f32 %v125, %v521
    %v523 = vpop.f32.mrf.mxu0
    %524 = vmatprep.mubr.bf16.mxu0 0
    %525 = vmatmul.mubr.bf16.gmra.mxu0 %v337
    %v526 = vpop.f32.mrf.mxu0
    %v527 = vadd.f32 %v125, %v526
    %v528 = vpop.f32.mrf.mxu0
    %v529 = vpop.f32.mrf.mxu0
    %v530 = vadd.f32 %v125, %v529
    %v531 = vpop.f32.mrf.mxu0
    %532 = vmatprep.mubr.bf16.mxu0 0
    %533 = vmatmul.mubr.bf16.gmra.mxu0 %v340
    %v534 = vpop.f32.mrf.mxu0
    %v535 = vadd.f32 %v125, %v534
    %v536 = vpop.f32.mrf.mxu0
    %v537 = vpop.f32.mrf.mxu0
    %v538 = vadd.f32 %v125, %v537
    %v539 = vpop.f32.mrf.mxu0
    %540 = vmatprep.mubr.bf16.mxu0 0
    %541 = vmatmul.mubr.bf16.gmra.mxu0 %v343
    %v542 = vpop.f32.mrf.mxu0
    %v543 = vadd.f32 %v125, %v542
    %v544 = vpop.f32.mrf.mxu0
    %v545 = vpop.f32.mrf.mxu0
    %v546 = vadd.f32 %v125, %v545
    %v547 = vpop.f32.mrf.mxu0
    %548 = vmatprep.mubr.bf16.mxu0 0
    %549 = vmatmul.mubr.bf16.gmra.mxu0 %v346
    %v550 = vpop.f32.mrf.mxu0
    %v551 = vadd.f32 %v125, %v550
    %v552 = vpop.f32.mrf.mxu0
    %v553 = vpop.f32.mrf.mxu0
    %v554 = vadd.f32 %v125, %v553
    %v555 = vpop.f32.mrf.mxu0
    %556 = vmatprep.mubr.bf16.mxu0 0
    %557 = vmatmul.mubr.bf16.gmra.mxu0 %v349
    %v558 = vpop.f32.mrf.mxu0
    %v559 = vadd.f32 %v125, %v558
    %v560 = vpop.f32.mrf.mxu0
    %v561 = vpop.f32.mrf.mxu0
    %v562 = vadd.f32 %v125, %v561
    %v563 = vpop.f32.mrf.mxu0
    %564 = vmatprep.mubr.bf16.mxu0 0
    %565 = vmatmul.mubr.bf16.gmra.mxu0 %v352
    %v566 = vpop.f32.mrf.mxu0
    %v567 = vadd.f32 %v125, %v566
    %v568 = vpop.f32.mrf.mxu0
    %v569 = vpop.f32.mrf.mxu0
    %v570 = vadd.f32 %v125, %v569
    %v571 = vpop.f32.mrf.mxu0
    %572 = vmatprep.mubr.bf16.mxu0 0
    %573 = vmatmul.mubr.bf16.gmra.mxu0 %v355
    %v574 = vpop.f32.mrf.mxu0
    %v575 = vadd.f32 %v125, %v574
    %v576 = vpop.f32.mrf.mxu0
    %v577 = vpop.f32.mrf.mxu0
    %v578 = vadd.f32 %v125, %v577
    %v579 = vpop.f32.mrf.mxu0
    %580 = vmatprep.mubr.bf16.mxu0 0
    %581 = vmatmul.mubr.bf16.gmra.mxu0 %v358
    %v582 = vpop.f32.mrf.mxu0
    %v583 = vadd.f32 %v125, %v582
    %v584 = vpop.f32.mrf.mxu0
    %v585 = vpop.f32.mrf.mxu0
    %v586 = vadd.f32 %v125, %v585
    %v587 = vpop.f32.mrf.mxu0
    %588 = vmatprep.mubr.bf16.mxu0 0
    %589 = vmatmul.mubr.bf16.gmra.mxu0 %v361
    %v590 = vpop.f32.mrf.mxu0
    %v591 = vadd.f32 %v125, %v590
    %v592 = vpop.f32.mrf.mxu0
    %v593 = vpop.f32.mrf.mxu0
    %v594 = vadd.f32 %v125, %v593
    %v595 = vpop.f32.mrf.mxu0
    %596 = vmatprep.mubr.bf16.mxu0 0
    %597 = vmatmul.mubr.bf16.gmra.mxu0 %v364
    %v598 = vpop.f32.mrf.mxu0
    %v599 = vadd.f32 %v125, %v598
    %v600 = vpop.f32.mrf.mxu0
    %v601 = vpop.f32.mrf.mxu0
    %v602 = vadd.f32 %v125, %v601
    %v603 = vpop.f32.mrf.mxu0
    %604 = vmatprep.mubr.bf16.mxu0 0
    %605 = vmatmul.mubr.bf16.gmra.mxu0 %v367
    %v606 = vpop.f32.mrf.mxu0
    %v607 = vadd.f32 %v125, %v606
    %v608 = vpop.f32.mrf.mxu0
    %v609 = vpop.f32.mrf.mxu0
    %v610 = vadd.f32 %v125, %v609
    %v611 = vpop.f32.mrf.mxu0
    %612 = vmatprep.mubr.bf16.mxu0 0
    %613 = vmatmul.mubr.bf16.gmra.mxu0 %v370
    %v614 = vpop.f32.mrf.mxu0
    %v615 = vadd.f32 %v125, %v614
    %v616 = vpop.f32.mrf.mxu0
    %v617 = vpop.f32.mrf.mxu0
    %v618 = vadd.f32 %v125, %v617
    %v619 = vpop.f32.mrf.mxu0
    %620 = vmatprep.mubr.bf16.mxu0 0
    %621 = vmatmul.mubr.bf16.gmra.mxu0 %v373
    %v622 = vpop.f32.mrf.mxu0
    %v623 = vadd.f32 %v125, %v622
    %v624 = vpop.f32.mrf.mxu0
    %v625 = vpop.f32.mrf.mxu0
    %v626 = vadd.f32 %v125, %v625
    %v627 = vpop.f32.mrf.mxu0
    %628 = vmatprep.mubr.bf16.mxu0 0
    %629 = vmatmul.mubr.bf16.gmra.mxu0 %v376
    %v630 = vpop.f32.mrf.mxu0
    %v631 = vadd.f32 %v125, %v630
    %v632 = vpop.f32.mrf.mxu0
    %v633 = vpop.f32.mrf.mxu0
    %v634 = vadd.f32 %v125, %v633
    %v635 = vpop.f32.mrf.mxu0
    %636 = vmatprep.mubr.bf16.mxu0 0
    %637 = vmatmul.mubr.bf16.gmra.mxu0 %v379
    %v638 = vpop.f32.mrf.mxu0
    %v639 = vadd.f32 %v125, %v638
    %v640 = vpop.f32.mrf.mxu0
    %v641 = vpop.f32.mrf.mxu0
    %v642 = vadd.f32 %v125, %v641
    %v643 = vpop.f32.mrf.mxu0
    %644 = vmatprep.mubr.bf16.mxu0 0
    %645 = vmatmul.mubr.bf16.gmra.mxu0 %v382
    %v646 = vpop.f32.mrf.mxu0
    %v647 = vadd.f32 %v125, %v646
    %v648 = vpop.f32.mrf.mxu0
    %v649 = vpop.f32.mrf.mxu0
    %v650 = vadd.f32 %v125, %v649
    %v651 = vpop.f32.mrf.mxu0
    %652 = vmatprep.mubr.bf16.mxu0 0
    %653 = vmatmul.mubr.bf16.gmra.mxu0 %v385
    %v654 = vpop.f32.mrf.mxu0
    %v655 = vadd.f32 %v125, %v654
    %v656 = vpop.f32.mrf.mxu0
    %v657 = vpop.f32.mrf.mxu0
    %v658 = vadd.f32 %v125, %v657
    %v659 = vpop.f32.mrf.mxu0
    %660 = vmatprep.mubr.bf16.mxu0 0
    %661 = vmatmul.mubr.bf16.gmra.mxu0 %v388
    %v662 = vpop.f32.mrf.mxu0
    %v663 = vadd.f32 %v125, %v662
    %v664 = vpop.f32.mrf.mxu0
    %v665 = vpop.f32.mrf.mxu0
    %v666 = vadd.f32 %v125, %v665
    %v667 = vpop.f32.mrf.mxu0
    %668 = vmatprep.mubr.bf16.mxu0 0
    %669 = vmatmul.mubr.bf16.gmra.mxu0 %v391
    %v670 = vpop.f32.mrf.mxu0
    %v671 = vadd.f32 %v125, %v670
    %v672 = vpop.f32.mrf.mxu0
    %v673 = vpop.f32.mrf.mxu0
    %v674 = vadd.f32 %v125, %v673
    %v675 = vpop.f32.mrf.mxu0
    %676 = vmatprep.mubr.bf16.mxu0 0
    %677 = vmatmul.mubr.bf16.gmra.mxu0 %v394
    %v678 = vpop.f32.mrf.mxu0
    %v679 = vadd.f32 %v125, %v678
    %v680 = vpop.f32.mrf.mxu0
    %v681 = vpop.f32.mrf.mxu0
    %v682 = vadd.f32 %v125, %v681
    %v683 = vpop.f32.mrf.mxu0
    %684 = vdwg.mxu0
    %v685 = vmax.f32 %v431, 0.0
    %v686 = vmax.f32 %v434, 0.0
    %v687 = vmax.f32 %v439, 0.0
    %v688 = vmax.f32 %v442, 0.0
    %v689 = vmax.f32 %v447, 0.0
    %v690 = vmax.f32 %v450, 0.0
    %v691 = vmax.f32 %v455, 0.0
    %v692 = vmax.f32 %v458, 0.0
    %v693 = vmax.f32 %v463, 0.0
    %v694 = vmax.f32 %v466, 0.0
    %v695 = vmax.f32 %v471, 0.0
    %v696 = vmax.f32 %v474, 0.0
    %v697 = vmax.f32 %v479, 0.0
    %v698 = vmax.f32 %v482, 0.0
    %v699 = vmax.f32 %v487, 0.0
    %v700 = vmax.f32 %v490, 0.0
    %v701 = vmax.f32 %v495, 0.0
    %v702 = vmax.f32 %v498, 0.0
    %v703 = vmax.f32 %v503, 0.0
    %v704 = vmax.f32 %v506, 0.0
    %v705 = vmax.f32 %v511, 0.0
    %v706 = vmax.f32 %v514, 0.0
    %v707 = vmax.f32 %v519, 0.0
    %v708 = vmax.f32 %v522, 0.0
    %v709 = vmax.f32 %v527, 0.0
    %v710 = vmax.f32 %v530, 0.0
    %v711 = vmax.f32 %v535, 0.0
    %v712 = vmax.f32 %v538, 0.0
    %v713 = vmax.f32 %v543, 0.0
    %v714 = vmax.f32 %v546, 0.0
    %v715 = vmax.f32 %v551, 0.0
    %v716 = vmax.f32 %v554, 0.0
    %v717 = vmax.f32 %v559, 0.0
    %v718 = vmax.f32 %v562, 0.0
    %v719 = vmax.f32 %v567, 0.0
    %v720 = vmax.f32 %v570, 0.0
    %v721 = vmax.f32 %v575, 0.0
    %v722 = vmax.f32 %v578, 0.0
    %v723 = vmax.f32 %v583, 0.0
    %v724 = vmax.f32 %v586, 0.0
    %v725 = vmax.f32 %v591, 0.0
    %v726 = vmax.f32 %v594, 0.0
    %v727 = vmax.f32 %v599, 0.0
    %v728 = vmax.f32 %v602, 0.0
    %v729 = vmax.f32 %v607, 0.0
    %v730 = vmax.f32 %v610, 0.0
    %v731 = vmax.f32 %v615, 0.0
    %v732 = vmax.f32 %v618, 0.0
    %v733 = vmax.f32 %v623, 0.0
    %v734 = vmax.f32 %v626, 0.0
    %v735 = vmax.f32 %v631, 0.0
    %v736 = vmax.f32 %v634, 0.0
    %v737 = vmax.f32 %v639, 0.0
    %v738 = vmax.f32 %v642, 0.0
    %v739 = vmax.f32 %v647, 0.0
    %v740 = vmax.f32 %v650, 0.0
    %v741 = vmax.f32 %v655, 0.0
    %v742 = vmax.f32 %v658, 0.0
    %v743 = vmax.f32 %v663, 0.0
    %v744 = vmax.f32 %v666, 0.0
    %v745 = vmax.f32 %v671, 0.0
    %v746 = vmax.f32 %v674, 0.0
    %v747 = vmax.f32 %v679, 0.0
    %v748 = vmax.f32 %v682, 0.0
    %v813 = vcombine.high %v685, %v685
    %v815 = vunpack.c.l.s4 1983009808
    %v816 = vunpack.c.0.s8 %v815
    %v817 = vlaneseq
    %v818 = vshrl.u32 %v817, 7
    %v819 = vsub.s32 %v816, %v818
    %v820 = vrot.slane %v685, %v819
    %v822 = vunpack.c.l.s4 1983009808
    %v823 = vunpack.c.0.s8 %v822
    %v824 = vlaneseq
    %v825 = vshrl.u32 %v824, 7
    %v826 = vsub.s32 %v823, %v825
    %v827 = vrot.slane %v813, %v826
    %v828 = vcombine.high %v820, %v820
    %v829 = vcombine.high %v827, %v827
    %v830 = vcombine.high %v686, %v686
    %v832 = vunpack.c.l.s4 1983009808
    %v833 = vunpack.c.0.s8 %v832
    %v834 = vlaneseq
    %v835 = vshrl.u32 %v834, 7
    %v836 = vsub.s32 %v833, %v835
    %v837 = vrot.slane %v686, %v836
    %v839 = vunpack.c.l.s4 1983009808
    %v840 = vunpack.c.0.s8 %v839
    %v841 = vlaneseq
    %v842 = vshrl.u32 %v841, 7
    %v843 = vsub.s32 %v840, %v842
    %v844 = vrot.slane %v830, %v843
    %v845 = vcombine.high %v837, %v837
    %v846 = vcombine.high %v844, %v844
    %v847 = vcombine.high %v687, %v687
    %v849 = vunpack.c.l.s4 1983009808
    %v850 = vunpack.c.0.s8 %v849
    %v851 = vlaneseq
    %v852 = vshrl.u32 %v851, 7
    %v853 = vsub.s32 %v850, %v852
    %v854 = vrot.slane %v687, %v853
    %v856 = vunpack.c.l.s4 1983009808
    %v857 = vunpack.c.0.s8 %v856
    %v858 = vlaneseq
    %v859 = vshrl.u32 %v858, 7
    %v860 = vsub.s32 %v857, %v859
    %v861 = vrot.slane %v847, %v860
    %v862 = vcombine.high %v854, %v854
    %v863 = vcombine.high %v861, %v861
    %v864 = vcombine.high %v688, %v688
    %v866 = vunpack.c.l.s4 1983009808
    %v867 = vunpack.c.0.s8 %v866
    %v868 = vlaneseq
    %v869 = vshrl.u32 %v868, 7
    %v870 = vsub.s32 %v867, %v869
    %v871 = vrot.slane %v688, %v870
    %v873 = vunpack.c.l.s4 1983009808
    %v874 = vunpack.c.0.s8 %v873
    %v875 = vlaneseq
    %v876 = vshrl.u32 %v875, 7
    %v877 = vsub.s32 %v874, %v876
    %v878 = vrot.slane %v864, %v877
    %v879 = vcombine.high %v871, %v871
    %v880 = vcombine.high %v878, %v878
    %v881 = vcombine.high %v689, %v689
    %v883 = vunpack.c.l.s4 1983009808
    %v884 = vunpack.c.0.s8 %v883
    %v885 = vlaneseq
    %v886 = vshrl.u32 %v885, 7
    %v887 = vsub.s32 %v884, %v886
    %v888 = vrot.slane %v689, %v887
    %v890 = vunpack.c.l.s4 1983009808
    %v891 = vunpack.c.0.s8 %v890
    %v892 = vlaneseq
    %v893 = vshrl.u32 %v892, 7
    %v894 = vsub.s32 %v891, %v893
    %v895 = vrot.slane %v881, %v894
    %v896 = vcombine.high %v888, %v888
    %v897 = vcombine.high %v895, %v895
    %v898 = vcombine.high %v690, %v690
    %v900 = vunpack.c.l.s4 1983009808
    %v901 = vunpack.c.0.s8 %v900
    %v902 = vlaneseq
    %v903 = vshrl.u32 %v902, 7
    %v904 = vsub.s32 %v901, %v903
    %v905 = vrot.slane %v690, %v904
    %v907 = vunpack.c.l.s4 1983009808
    %v908 = vunpack.c.0.s8 %v907
    %v909 = vlaneseq
    %v910 = vshrl.u32 %v909, 7
    %v911 = vsub.s32 %v908, %v910
    %v912 = vrot.slane %v898, %v911
    %v913 = vcombine.high %v905, %v905
    %v914 = vcombine.high %v912, %v912
    %v915 = vcombine.high %v691, %v691
    %v917 = vunpack.c.l.s4 1983009808
    %v918 = vunpack.c.0.s8 %v917
    %v919 = vlaneseq
    %v920 = vshrl.u32 %v919, 7
    %v921 = vsub.s32 %v918, %v920
    %v922 = vrot.slane %v691, %v921
    %v924 = vunpack.c.l.s4 1983009808
    %v925 = vunpack.c.0.s8 %v924
    %v926 = vlaneseq
    %v927 = vshrl.u32 %v926, 7
    %v928 = vsub.s32 %v925, %v927
    %v929 = vrot.slane %v915, %v928
    %v930 = vcombine.high %v922, %v922
    %v931 = vcombine.high %v929, %v929
    %v932 = vcombine.high %v692, %v692
    %v934 = vunpack.c.l.s4 1983009808
    %v935 = vunpack.c.0.s8 %v934
    %v936 = vlaneseq
    %v937 = vshrl.u32 %v936, 7
    %v938 = vsub.s32 %v935, %v937
    %v939 = vrot.slane %v692, %v938
    %v941 = vunpack.c.l.s4 1983009808
    %v942 = vunpack.c.0.s8 %v941
    %v943 = vlaneseq
    %v944 = vshrl.u32 %v943, 7
    %v945 = vsub.s32 %v942, %v944
    %v946 = vrot.slane %v932, %v945
    %v947 = vcombine.high %v939, %v939
    %v948 = vcombine.high %v946, %v946
    %v949 = vcombine.high %v693, %v693
    %v951 = vunpack.c.l.s4 1983009808
    %v952 = vunpack.c.0.s8 %v951
    %v953 = vlaneseq
    %v954 = vshrl.u32 %v953, 7
    %v955 = vsub.s32 %v952, %v954
    %v956 = vrot.slane %v693, %v955
    %v958 = vunpack.c.l.s4 1983009808
    %v959 = vunpack.c.0.s8 %v958
    %v960 = vlaneseq
    %v961 = vshrl.u32 %v960, 7
    %v962 = vsub.s32 %v959, %v961
    %v963 = vrot.slane %v949, %v962
    %v964 = vcombine.high %v956, %v956
    %v965 = vcombine.high %v963, %v963
    %v966 = vcombine.high %v694, %v694
    %v968 = vunpack.c.l.s4 1983009808
    %v969 = vunpack.c.0.s8 %v968
    %v970 = vlaneseq
    %v971 = vshrl.u32 %v970, 7
    %v972 = vsub.s32 %v969, %v971
    %v973 = vrot.slane %v694, %v972
    %v975 = vunpack.c.l.s4 1983009808
    %v976 = vunpack.c.0.s8 %v975
    %v977 = vlaneseq
    %v978 = vshrl.u32 %v977, 7
    %v979 = vsub.s32 %v976, %v978
    %v980 = vrot.slane %v966, %v979
    %v981 = vcombine.high %v973, %v973
    %v982 = vcombine.high %v980, %v980
    %v983 = vcombine.high %v695, %v695
    %v985 = vunpack.c.l.s4 1983009808
    %v986 = vunpack.c.0.s8 %v985
    %v987 = vlaneseq
    %v988 = vshrl.u32 %v987, 7
    %v989 = vsub.s32 %v986, %v988
    %v990 = vrot.slane %v695, %v989
    %v992 = vunpack.c.l.s4 1983009808
    %v993 = vunpack.c.0.s8 %v992
    %v994 = vlaneseq
    %v995 = vshrl.u32 %v994, 7
    %v996 = vsub.s32 %v993, %v995
    %v997 = vrot.slane %v983, %v996
    %v998 = vcombine.high %v990, %v990
    %v999 = vcombine.high %v997, %v997
    %v1000 = vcombine.high %v696, %v696
    %v1002 = vunpack.c.l.s4 1983009808
    %v1003 = vunpack.c.0.s8 %v1002
    %v1004 = vlaneseq
    %v1005 = vshrl.u32 %v1004, 7
    %v1006 = vsub.s32 %v1003, %v1005
    %v1007 = vrot.slane %v696, %v1006
    %v1009 = vunpack.c.l.s4 1983009808
    %v1010 = vunpack.c.0.s8 %v1009
    %v1011 = vlaneseq
    %v1012 = vshrl.u32 %v1011, 7
    %v1013 = vsub.s32 %v1010, %v1012
    %v1014 = vrot.slane %v1000, %v1013
    %v1015 = vcombine.high %v1007, %v1007
    %v1016 = vcombine.high %v1014, %v1014
    %v1017 = vcombine.high %v697, %v697
    %v1019 = vunpack.c.l.s4 1983009808
    %v1020 = vunpack.c.0.s8 %v1019
    %v1021 = vlaneseq
    %v1022 = vshrl.u32 %v1021, 7
    %v1023 = vsub.s32 %v1020, %v1022
    %v1024 = vrot.slane %v697, %v1023
    %v1026 = vunpack.c.l.s4 1983009808
    %v1027 = vunpack.c.0.s8 %v1026
    %v1028 = vlaneseq
    %v1029 = vshrl.u32 %v1028, 7
    %v1030 = vsub.s32 %v1027, %v1029
    %v1031 = vrot.slane %v1017, %v1030
    %v1032 = vcombine.high %v1024, %v1024
    %v1033 = vcombine.high %v1031, %v1031
    %v1034 = vcombine.high %v698, %v698
    %v1036 = vunpack.c.l.s4 1983009808
    %v1037 = vunpack.c.0.s8 %v1036
    %v1038 = vlaneseq
    %v1039 = vshrl.u32 %v1038, 7
    %v1040 = vsub.s32 %v1037, %v1039
    %v1041 = vrot.slane %v698, %v1040
    %v1043 = vunpack.c.l.s4 1983009808
    %v1044 = vunpack.c.0.s8 %v1043
    %v1045 = vlaneseq
    %v1046 = vshrl.u32 %v1045, 7
    %v1047 = vsub.s32 %v1044, %v1046
    %v1048 = vrot.slane %v1034, %v1047
    %v1049 = vcombine.high %v1041, %v1041
    %v1050 = vcombine.high %v1048, %v1048
    %v1051 = vcombine.high %v699, %v699
    %v1053 = vunpack.c.l.s4 1983009808
    %v1054 = vunpack.c.0.s8 %v1053
    %v1055 = vlaneseq
    %v1056 = vshrl.u32 %v1055, 7
    %v1057 = vsub.s32 %v1054, %v1056
    %v1058 = vrot.slane %v699, %v1057
    %v1060 = vunpack.c.l.s4 1983009808
    %v1061 = vunpack.c.0.s8 %v1060
    %v1062 = vlaneseq
    %v1063 = vshrl.u32 %v1062, 7
    %v1064 = vsub.s32 %v1061, %v1063
    %v1065 = vrot.slane %v1051, %v1064
    %v1066 = vcombine.high %v1058, %v1058
    %v1067 = vcombine.high %v1065, %v1065
    %v1068 = vcombine.high %v700, %v700
    %v1070 = vunpack.c.l.s4 1983009808
    %v1071 = vunpack.c.0.s8 %v1070
    %v1072 = vlaneseq
    %v1073 = vshrl.u32 %v1072, 7
    %v1074 = vsub.s32 %v1071, %v1073
    %v1075 = vrot.slane %v700, %v1074
    %v1077 = vunpack.c.l.s4 1983009808
    %v1078 = vunpack.c.0.s8 %v1077
    %v1079 = vlaneseq
    %v1080 = vshrl.u32 %v1079, 7
    %v1081 = vsub.s32 %v1078, %v1080
    %v1082 = vrot.slane %v1068, %v1081
    %v1083 = vcombine.high %v1075, %v1075
    %v1084 = vcombine.high %v1082, %v1082
    %v1085 = vcombine.high %v701, %v701
    %v1087 = vunpack.c.l.s4 1983009808
    %v1088 = vunpack.c.0.s8 %v1087
    %v1089 = vlaneseq
    %v1090 = vshrl.u32 %v1089, 7
    %v1091 = vsub.s32 %v1088, %v1090
    %v1092 = vrot.slane %v701, %v1091
    %v1094 = vunpack.c.l.s4 1983009808
    %v1095 = vunpack.c.0.s8 %v1094
    %v1096 = vlaneseq
    %v1097 = vshrl.u32 %v1096, 7
    %v1098 = vsub.s32 %v1095, %v1097
    %v1099 = vrot.slane %v1085, %v1098
    %v1100 = vcombine.high %v1092, %v1092
    %v1101 = vcombine.high %v1099, %v1099
    %v1102 = vcombine.high %v702, %v702
    %v1104 = vunpack.c.l.s4 1983009808
    %v1105 = vunpack.c.0.s8 %v1104
    %v1106 = vlaneseq
    %v1107 = vshrl.u32 %v1106, 7
    %v1108 = vsub.s32 %v1105, %v1107
    %v1109 = vrot.slane %v702, %v1108
    %v1111 = vunpack.c.l.s4 1983009808
    %v1112 = vunpack.c.0.s8 %v1111
    %v1113 = vlaneseq
    %v1114 = vshrl.u32 %v1113, 7
    %v1115 = vsub.s32 %v1112, %v1114
    %v1116 = vrot.slane %v1102, %v1115
    %v1117 = vcombine.high %v1109, %v1109
    %v1118 = vcombine.high %v1116, %v1116
    %v1119 = vcombine.high %v703, %v703
    %v1121 = vunpack.c.l.s4 1983009808
    %v1122 = vunpack.c.0.s8 %v1121
    %v1123 = vlaneseq
    %v1124 = vshrl.u32 %v1123, 7
    %v1125 = vsub.s32 %v1122, %v1124
    %v1126 = vrot.slane %v703, %v1125
    %v1128 = vunpack.c.l.s4 1983009808
    %v1129 = vunpack.c.0.s8 %v1128
    %v1130 = vlaneseq
    %v1131 = vshrl.u32 %v1130, 7
    %v1132 = vsub.s32 %v1129, %v1131
    %v1133 = vrot.slane %v1119, %v1132
    %v1134 = vcombine.high %v1126, %v1126
    %v1135 = vcombine.high %v1133, %v1133
    %v1136 = vcombine.high %v704, %v704
    %v1138 = vunpack.c.l.s4 1983009808
    %v1139 = vunpack.c.0.s8 %v1138
    %v1140 = vlaneseq
    %v1141 = vshrl.u32 %v1140, 7
    %v1142 = vsub.s32 %v1139, %v1141
    %v1143 = vrot.slane %v704, %v1142
    %v1145 = vunpack.c.l.s4 1983009808
    %v1146 = vunpack.c.0.s8 %v1145
    %v1147 = vlaneseq
    %v1148 = vshrl.u32 %v1147, 7
    %v1149 = vsub.s32 %v1146, %v1148
    %v1150 = vrot.slane %v1136, %v1149
    %v1151 = vcombine.high %v1143, %v1143
    %v1152 = vcombine.high %v1150, %v1150
    %v1153 = vcombine.high %v705, %v705
    %v1155 = vunpack.c.l.s4 1983009808
    %v1156 = vunpack.c.0.s8 %v1155
    %v1157 = vlaneseq
    %v1158 = vshrl.u32 %v1157, 7
    %v1159 = vsub.s32 %v1156, %v1158
    %v1160 = vrot.slane %v705, %v1159
    %v1162 = vunpack.c.l.s4 1983009808
    %v1163 = vunpack.c.0.s8 %v1162
    %v1164 = vlaneseq
    %v1165 = vshrl.u32 %v1164, 7
    %v1166 = vsub.s32 %v1163, %v1165
    %v1167 = vrot.slane %v1153, %v1166
    %v1168 = vcombine.high %v1160, %v1160
    %v1169 = vcombine.high %v1167, %v1167
    %v1170 = vcombine.high %v706, %v706
    %v1172 = vunpack.c.l.s4 1983009808
    %v1173 = vunpack.c.0.s8 %v1172
    %v1174 = vlaneseq
    %v1175 = vshrl.u32 %v1174, 7
    %v1176 = vsub.s32 %v1173, %v1175
    %v1177 = vrot.slane %v706, %v1176
    %v1179 = vunpack.c.l.s4 1983009808
    %v1180 = vunpack.c.0.s8 %v1179
    %v1181 = vlaneseq
    %v1182 = vshrl.u32 %v1181, 7
    %v1183 = vsub.s32 %v1180, %v1182
    %v1184 = vrot.slane %v1170, %v1183
    %v1185 = vcombine.high %v1177, %v1177
    %v1186 = vcombine.high %v1184, %v1184
    %v1187 = vcombine.high %v707, %v707
    %v1189 = vunpack.c.l.s4 1983009808
    %v1190 = vunpack.c.0.s8 %v1189
    %v1191 = vlaneseq
    %v1192 = vshrl.u32 %v1191, 7
    %v1193 = vsub.s32 %v1190, %v1192
    %v1194 = vrot.slane %v707, %v1193
    %v1196 = vunpack.c.l.s4 1983009808
    %v1197 = vunpack.c.0.s8 %v1196
    %v1198 = vlaneseq
    %v1199 = vshrl.u32 %v1198, 7
    %v1200 = vsub.s32 %v1197, %v1199
    %v1201 = vrot.slane %v1187, %v1200
    %v1202 = vcombine.high %v1194, %v1194
    %v1203 = vcombine.high %v1201, %v1201
    %v1204 = vcombine.high %v708, %v708
    %v1206 = vunpack.c.l.s4 1983009808
    %v1207 = vunpack.c.0.s8 %v1206
    %v1208 = vlaneseq
    %v1209 = vshrl.u32 %v1208, 7
    %v1210 = vsub.s32 %v1207, %v1209
    %v1211 = vrot.slane %v708, %v1210
    %v1213 = vunpack.c.l.s4 1983009808
    %v1214 = vunpack.c.0.s8 %v1213
    %v1215 = vlaneseq
    %v1216 = vshrl.u32 %v1215, 7
    %v1217 = vsub.s32 %v1214, %v1216
    %v1218 = vrot.slane %v1204, %v1217
    %v1219 = vcombine.high %v1211, %v1211
    %v1220 = vcombine.high %v1218, %v1218
    %v1221 = vcombine.high %v709, %v709
    %v1223 = vunpack.c.l.s4 1983009808
    %v1224 = vunpack.c.0.s8 %v1223
    %v1225 = vlaneseq
    %v1226 = vshrl.u32 %v1225, 7
    %v1227 = vsub.s32 %v1224, %v1226
    %v1228 = vrot.slane %v709, %v1227
    %v1230 = vunpack.c.l.s4 1983009808
    %v1231 = vunpack.c.0.s8 %v1230
    %v1232 = vlaneseq
    %v1233 = vshrl.u32 %v1232, 7
    %v1234 = vsub.s32 %v1231, %v1233
    %v1235 = vrot.slane %v1221, %v1234
    %v1236 = vcombine.high %v1228, %v1228
    %v1237 = vcombine.high %v1235, %v1235
    %v1238 = vcombine.high %v710, %v710
    %v1240 = vunpack.c.l.s4 1983009808
    %v1241 = vunpack.c.0.s8 %v1240
    %v1242 = vlaneseq
    %v1243 = vshrl.u32 %v1242, 7
    %v1244 = vsub.s32 %v1241, %v1243
    %v1245 = vrot.slane %v710, %v1244
    %v1247 = vunpack.c.l.s4 1983009808
    %v1248 = vunpack.c.0.s8 %v1247
    %v1249 = vlaneseq
    %v1250 = vshrl.u32 %v1249, 7
    %v1251 = vsub.s32 %v1248, %v1250
    %v1252 = vrot.slane %v1238, %v1251
    %v1253 = vcombine.high %v1245, %v1245
    %v1254 = vcombine.high %v1252, %v1252
    %v1255 = vcombine.high %v711, %v711
    %v1257 = vunpack.c.l.s4 1983009808
    %v1258 = vunpack.c.0.s8 %v1257
    %v1259 = vlaneseq
    %v1260 = vshrl.u32 %v1259, 7
    %v1261 = vsub.s32 %v1258, %v1260
    %v1262 = vrot.slane %v711, %v1261
    %v1264 = vunpack.c.l.s4 1983009808
    %v1265 = vunpack.c.0.s8 %v1264
    %v1266 = vlaneseq
    %v1267 = vshrl.u32 %v1266, 7
    %v1268 = vsub.s32 %v1265, %v1267
    %v1269 = vrot.slane %v1255, %v1268
    %v1270 = vcombine.high %v1262, %v1262
    %v1271 = vcombine.high %v1269, %v1269
    %v1272 = vcombine.high %v712, %v712
    %v1274 = vunpack.c.l.s4 1983009808
    %v1275 = vunpack.c.0.s8 %v1274
    %v1276 = vlaneseq
    %v1277 = vshrl.u32 %v1276, 7
    %v1278 = vsub.s32 %v1275, %v1277
    %v1279 = vrot.slane %v712, %v1278
    %v1281 = vunpack.c.l.s4 1983009808
    %v1282 = vunpack.c.0.s8 %v1281
    %v1283 = vlaneseq
    %v1284 = vshrl.u32 %v1283, 7
    %v1285 = vsub.s32 %v1282, %v1284
    %v1286 = vrot.slane %v1272, %v1285
    %v1287 = vcombine.high %v1279, %v1279
    %v1288 = vcombine.high %v1286, %v1286
    %v1289 = vcombine.high %v713, %v713
    %v1291 = vunpack.c.l.s4 1983009808
    %v1292 = vunpack.c.0.s8 %v1291
    %v1293 = vlaneseq
    %v1294 = vshrl.u32 %v1293, 7
    %v1295 = vsub.s32 %v1292, %v1294
    %v1296 = vrot.slane %v713, %v1295
    %v1298 = vunpack.c.l.s4 1983009808
    %v1299 = vunpack.c.0.s8 %v1298
    %v1300 = vlaneseq
    %v1301 = vshrl.u32 %v1300, 7
    %v1302 = vsub.s32 %v1299, %v1301
    %v1303 = vrot.slane %v1289, %v1302
    %v1304 = vcombine.high %v1296, %v1296
    %v1305 = vcombine.high %v1303, %v1303
    %v1306 = vcombine.high %v714, %v714
    %v1308 = vunpack.c.l.s4 1983009808
    %v1309 = vunpack.c.0.s8 %v1308
    %v1310 = vlaneseq
    %v1311 = vshrl.u32 %v1310, 7
    %v1312 = vsub.s32 %v1309, %v1311
    %v1313 = vrot.slane %v714, %v1312
    %v1315 = vunpack.c.l.s4 1983009808
    %v1316 = vunpack.c.0.s8 %v1315
    %v1317 = vlaneseq
    %v1318 = vshrl.u32 %v1317, 7
    %v1319 = vsub.s32 %v1316, %v1318
    %v1320 = vrot.slane %v1306, %v1319
    %v1321 = vcombine.high %v1313, %v1313
    %v1322 = vcombine.high %v1320, %v1320
    %v1323 = vcombine.high %v715, %v715
    %v1325 = vunpack.c.l.s4 1983009808
    %v1326 = vunpack.c.0.s8 %v1325
    %v1327 = vlaneseq
    %v1328 = vshrl.u32 %v1327, 7
    %v1329 = vsub.s32 %v1326, %v1328
    %v1330 = vrot.slane %v715, %v1329
    %v1332 = vunpack.c.l.s4 1983009808
    %v1333 = vunpack.c.0.s8 %v1332
    %v1334 = vlaneseq
    %v1335 = vshrl.u32 %v1334, 7
    %v1336 = vsub.s32 %v1333, %v1335
    %v1337 = vrot.slane %v1323, %v1336
    %v1338 = vcombine.high %v1330, %v1330
    %v1339 = vcombine.high %v1337, %v1337
    %v1340 = vcombine.high %v716, %v716
    %v1342 = vunpack.c.l.s4 1983009808
    %v1343 = vunpack.c.0.s8 %v1342
    %v1344 = vlaneseq
    %v1345 = vshrl.u32 %v1344, 7
    %v1346 = vsub.s32 %v1343, %v1345
    %v1347 = vrot.slane %v716, %v1346
    %v1349 = vunpack.c.l.s4 1983009808
    %v1350 = vunpack.c.0.s8 %v1349
    %v1351 = vlaneseq
    %v1352 = vshrl.u32 %v1351, 7
    %v1353 = vsub.s32 %v1350, %v1352
    %v1354 = vrot.slane %v1340, %v1353
    %v1355 = vcombine.high %v1347, %v1347
    %v1356 = vcombine.high %v1354, %v1354
    %v1357 = vcombine.high %v717, %v717
    %v1359 = vunpack.c.l.s4 1983009808
    %v1360 = vunpack.c.0.s8 %v1359
    %v1361 = vlaneseq
    %v1362 = vshrl.u32 %v1361, 7
    %v1363 = vsub.s32 %v1360, %v1362
    %v1364 = vrot.slane %v717, %v1363
    %v1366 = vunpack.c.l.s4 1983009808
    %v1367 = vunpack.c.0.s8 %v1366
    %v1368 = vlaneseq
    %v1369 = vshrl.u32 %v1368, 7
    %v1370 = vsub.s32 %v1367, %v1369
    %v1371 = vrot.slane %v1357, %v1370
    %v1372 = vcombine.high %v1364, %v1364
    %v1373 = vcombine.high %v1371, %v1371
    %v1374 = vcombine.high %v718, %v718
    %v1376 = vunpack.c.l.s4 1983009808
    %v1377 = vunpack.c.0.s8 %v1376
    %v1378 = vlaneseq
    %v1379 = vshrl.u32 %v1378, 7
    %v1380 = vsub.s32 %v1377, %v1379
    %v1381 = vrot.slane %v718, %v1380
    %v1383 = vunpack.c.l.s4 1983009808
    %v1384 = vunpack.c.0.s8 %v1383
    %v1385 = vlaneseq
    %v1386 = vshrl.u32 %v1385, 7
    %v1387 = vsub.s32 %v1384, %v1386
    %v1388 = vrot.slane %v1374, %v1387
    %v1389 = vcombine.high %v1381, %v1381
    %v1390 = vcombine.high %v1388, %v1388
    %v1391 = vcombine.high %v719, %v719
    %v1393 = vunpack.c.l.s4 1983009808
    %v1394 = vunpack.c.0.s8 %v1393
    %v1395 = vlaneseq
    %v1396 = vshrl.u32 %v1395, 7
    %v1397 = vsub.s32 %v1394, %v1396
    %v1398 = vrot.slane %v719, %v1397
    %v1400 = vunpack.c.l.s4 1983009808
    %v1401 = vunpack.c.0.s8 %v1400
    %v1402 = vlaneseq
    %v1403 = vshrl.u32 %v1402, 7
    %v1404 = vsub.s32 %v1401, %v1403
    %v1405 = vrot.slane %v1391, %v1404
    %v1406 = vcombine.high %v1398, %v1398
    %v1407 = vcombine.high %v1405, %v1405
    %v1408 = vcombine.high %v720, %v720
    %v1410 = vunpack.c.l.s4 1983009808
    %v1411 = vunpack.c.0.s8 %v1410
    %v1412 = vlaneseq
    %v1413 = vshrl.u32 %v1412, 7
    %v1414 = vsub.s32 %v1411, %v1413
    %v1415 = vrot.slane %v720, %v1414
    %v1417 = vunpack.c.l.s4 1983009808
    %v1418 = vunpack.c.0.s8 %v1417
    %v1419 = vlaneseq
    %v1420 = vshrl.u32 %v1419, 7
    %v1421 = vsub.s32 %v1418, %v1420
    %v1422 = vrot.slane %v1408, %v1421
    %v1423 = vcombine.high %v1415, %v1415
    %v1424 = vcombine.high %v1422, %v1422
    %v1425 = vcombine.high %v721, %v721
    %v1427 = vunpack.c.l.s4 1983009808
    %v1428 = vunpack.c.0.s8 %v1427
    %v1429 = vlaneseq
    %v1430 = vshrl.u32 %v1429, 7
    %v1431 = vsub.s32 %v1428, %v1430
    %v1432 = vrot.slane %v721, %v1431
    %v1434 = vunpack.c.l.s4 1983009808
    %v1435 = vunpack.c.0.s8 %v1434
    %v1436 = vlaneseq
    %v1437 = vshrl.u32 %v1436, 7
    %v1438 = vsub.s32 %v1435, %v1437
    %v1439 = vrot.slane %v1425, %v1438
    %v1440 = vcombine.high %v1432, %v1432
    %v1441 = vcombine.high %v1439, %v1439
    %v1442 = vcombine.high %v722, %v722
    %v1444 = vunpack.c.l.s4 1983009808
    %v1445 = vunpack.c.0.s8 %v1444
    %v1446 = vlaneseq
    %v1447 = vshrl.u32 %v1446, 7
    %v1448 = vsub.s32 %v1445, %v1447
    %v1449 = vrot.slane %v722, %v1448
    %v1451 = vunpack.c.l.s4 1983009808
    %v1452 = vunpack.c.0.s8 %v1451
    %v1453 = vlaneseq
    %v1454 = vshrl.u32 %v1453, 7
    %v1455 = vsub.s32 %v1452, %v1454
    %v1456 = vrot.slane %v1442, %v1455
    %v1457 = vcombine.high %v1449, %v1449
    %v1458 = vcombine.high %v1456, %v1456
    %v1459 = vcombine.high %v723, %v723
    %v1461 = vunpack.c.l.s4 1983009808
    %v1462 = vunpack.c.0.s8 %v1461
    %v1463 = vlaneseq
    %v1464 = vshrl.u32 %v1463, 7
    %v1465 = vsub.s32 %v1462, %v1464
    %v1466 = vrot.slane %v723, %v1465
    %v1468 = vunpack.c.l.s4 1983009808
    %v1469 = vunpack.c.0.s8 %v1468
    %v1470 = vlaneseq
    %v1471 = vshrl.u32 %v1470, 7
    %v1472 = vsub.s32 %v1469, %v1471
    %v1473 = vrot.slane %v1459, %v1472
    %v1474 = vcombine.high %v1466, %v1466
    %v1475 = vcombine.high %v1473, %v1473
    %v1476 = vcombine.high %v724, %v724
    %v1478 = vunpack.c.l.s4 1983009808
    %v1479 = vunpack.c.0.s8 %v1478
    %v1480 = vlaneseq
    %v1481 = vshrl.u32 %v1480, 7
    %v1482 = vsub.s32 %v1479, %v1481
    %v1483 = vrot.slane %v724, %v1482
    %v1485 = vunpack.c.l.s4 1983009808
    %v1486 = vunpack.c.0.s8 %v1485
    %v1487 = vlaneseq
    %v1488 = vshrl.u32 %v1487, 7
    %v1489 = vsub.s32 %v1486, %v1488
    %v1490 = vrot.slane %v1476, %v1489
    %v1491 = vcombine.high %v1483, %v1483
    %v1492 = vcombine.high %v1490, %v1490
    %v1493 = vcombine.high %v725, %v725
    %v1495 = vunpack.c.l.s4 1983009808
    %v1496 = vunpack.c.0.s8 %v1495
    %v1497 = vlaneseq
    %v1498 = vshrl.u32 %v1497, 7
    %v1499 = vsub.s32 %v1496, %v1498
    %v1500 = vrot.slane %v725, %v1499
    %v1502 = vunpack.c.l.s4 1983009808
    %v1503 = vunpack.c.0.s8 %v1502
    %v1504 = vlaneseq
    %v1505 = vshrl.u32 %v1504, 7
    %v1506 = vsub.s32 %v1503, %v1505
    %v1507 = vrot.slane %v1493, %v1506
    %v1508 = vcombine.high %v1500, %v1500
    %v1509 = vcombine.high %v1507, %v1507
    %v1510 = vcombine.high %v726, %v726
    %v1512 = vunpack.c.l.s4 1983009808
    %v1513 = vunpack.c.0.s8 %v1512
    %v1514 = vlaneseq
    %v1515 = vshrl.u32 %v1514, 7
    %v1516 = vsub.s32 %v1513, %v1515
    %v1517 = vrot.slane %v726, %v1516
    %v1519 = vunpack.c.l.s4 1983009808
    %v1520 = vunpack.c.0.s8 %v1519
    %v1521 = vlaneseq
    %v1522 = vshrl.u32 %v1521, 7
    %v1523 = vsub.s32 %v1520, %v1522
    %v1524 = vrot.slane %v1510, %v1523
    %v1525 = vcombine.high %v1517, %v1517
    %v1526 = vcombine.high %v1524, %v1524
    %v1527 = vcombine.high %v727, %v727
    %v1529 = vunpack.c.l.s4 1983009808
    %v1530 = vunpack.c.0.s8 %v1529
    %v1531 = vlaneseq
    %v1532 = vshrl.u32 %v1531, 7
    %v1533 = vsub.s32 %v1530, %v1532
    %v1534 = vrot.slane %v727, %v1533
    %v1536 = vunpack.c.l.s4 1983009808
    %v1537 = vunpack.c.0.s8 %v1536
    %v1538 = vlaneseq
    %v1539 = vshrl.u32 %v1538, 7
    %v1540 = vsub.s32 %v1537, %v1539
    %v1541 = vrot.slane %v1527, %v1540
    %v1542 = vcombine.high %v1534, %v1534
    %v1543 = vcombine.high %v1541, %v1541
    %v1544 = vcombine.high %v728, %v728
    %v1546 = vunpack.c.l.s4 1983009808
    %v1547 = vunpack.c.0.s8 %v1546
    %v1548 = vlaneseq
    %v1549 = vshrl.u32 %v1548, 7
    %v1550 = vsub.s32 %v1547, %v1549
    %v1551 = vrot.slane %v728, %v1550
    %v1553 = vunpack.c.l.s4 1983009808
    %v1554 = vunpack.c.0.s8 %v1553
    %v1555 = vlaneseq
    %v1556 = vshrl.u32 %v1555, 7
    %v1557 = vsub.s32 %v1554, %v1556
    %v1558 = vrot.slane %v1544, %v1557
    %v1559 = vcombine.high %v1551, %v1551
    %v1560 = vcombine.high %v1558, %v1558
    %v1561 = vcombine.high %v729, %v729
    %v1563 = vunpack.c.l.s4 1983009808
    %v1564 = vunpack.c.0.s8 %v1563
    %v1565 = vlaneseq
    %v1566 = vshrl.u32 %v1565, 7
    %v1567 = vsub.s32 %v1564, %v1566
    %v1568 = vrot.slane %v729, %v1567
    %v1570 = vunpack.c.l.s4 1983009808
    %v1571 = vunpack.c.0.s8 %v1570
    %v1572 = vlaneseq
    %v1573 = vshrl.u32 %v1572, 7
    %v1574 = vsub.s32 %v1571, %v1573
    %v1575 = vrot.slane %v1561, %v1574
    %v1576 = vcombine.high %v1568, %v1568
    %v1577 = vcombine.high %v1575, %v1575
    %v1578 = vcombine.high %v730, %v730
    %v1580 = vunpack.c.l.s4 1983009808
    %v1581 = vunpack.c.0.s8 %v1580
    %v1582 = vlaneseq
    %v1583 = vshrl.u32 %v1582, 7
    %v1584 = vsub.s32 %v1581, %v1583
    %v1585 = vrot.slane %v730, %v1584
    %v1587 = vunpack.c.l.s4 1983009808
    %v1588 = vunpack.c.0.s8 %v1587
    %v1589 = vlaneseq
    %v1590 = vshrl.u32 %v1589, 7
    %v1591 = vsub.s32 %v1588, %v1590
    %v1592 = vrot.slane %v1578, %v1591
    %v1593 = vcombine.high %v1585, %v1585
    %v1594 = vcombine.high %v1592, %v1592
    %v1595 = vcombine.high %v731, %v731
    %v1597 = vunpack.c.l.s4 1983009808
    %v1598 = vunpack.c.0.s8 %v1597
    %v1599 = vlaneseq
    %v1600 = vshrl.u32 %v1599, 7
    %v1601 = vsub.s32 %v1598, %v1600
    %v1602 = vrot.slane %v731, %v1601
    %v1604 = vunpack.c.l.s4 1983009808
    %v1605 = vunpack.c.0.s8 %v1604
    %v1606 = vlaneseq
    %v1607 = vshrl.u32 %v1606, 7
    %v1608 = vsub.s32 %v1605, %v1607
    %v1609 = vrot.slane %v1595, %v1608
    %v1610 = vcombine.high %v1602, %v1602
    %v1611 = vcombine.high %v1609, %v1609
    %v1612 = vcombine.high %v732, %v732
    %v1614 = vunpack.c.l.s4 1983009808
    %v1615 = vunpack.c.0.s8 %v1614
    %v1616 = vlaneseq
    %v1617 = vshrl.u32 %v1616, 7
    %v1618 = vsub.s32 %v1615, %v1617
    %v1619 = vrot.slane %v732, %v1618
    %v1621 = vunpack.c.l.s4 1983009808
    %v1622 = vunpack.c.0.s8 %v1621
    %v1623 = vlaneseq
    %v1624 = vshrl.u32 %v1623, 7
    %v1625 = vsub.s32 %v1622, %v1624
    %v1626 = vrot.slane %v1612, %v1625
    %v1627 = vcombine.high %v1619, %v1619
    %v1628 = vcombine.high %v1626, %v1626
    %v1629 = vcombine.high %v733, %v733
    %v1631 = vunpack.c.l.s4 1983009808
    %v1632 = vunpack.c.0.s8 %v1631
    %v1633 = vlaneseq
    %v1634 = vshrl.u32 %v1633, 7
    %v1635 = vsub.s32 %v1632, %v1634
    %v1636 = vrot.slane %v733, %v1635
    %v1638 = vunpack.c.l.s4 1983009808
    %v1639 = vunpack.c.0.s8 %v1638
    %v1640 = vlaneseq
    %v1641 = vshrl.u32 %v1640, 7
    %v1642 = vsub.s32 %v1639, %v1641
    %v1643 = vrot.slane %v1629, %v1642
    %v1644 = vcombine.high %v1636, %v1636
    %v1645 = vcombine.high %v1643, %v1643
    %v1646 = vcombine.high %v734, %v734
    %v1648 = vunpack.c.l.s4 1983009808
    %v1649 = vunpack.c.0.s8 %v1648
    %v1650 = vlaneseq
    %v1651 = vshrl.u32 %v1650, 7
    %v1652 = vsub.s32 %v1649, %v1651
    %v1653 = vrot.slane %v734, %v1652
    %v1655 = vunpack.c.l.s4 1983009808
    %v1656 = vunpack.c.0.s8 %v1655
    %v1657 = vlaneseq
    %v1658 = vshrl.u32 %v1657, 7
    %v1659 = vsub.s32 %v1656, %v1658
    %v1660 = vrot.slane %v1646, %v1659
    %v1661 = vcombine.high %v1653, %v1653
    %v1662 = vcombine.high %v1660, %v1660
    %v1663 = vcombine.high %v735, %v735
    %v1665 = vunpack.c.l.s4 1983009808
    %v1666 = vunpack.c.0.s8 %v1665
    %v1667 = vlaneseq
    %v1668 = vshrl.u32 %v1667, 7
    %v1669 = vsub.s32 %v1666, %v1668
    %v1670 = vrot.slane %v735, %v1669
    %v1672 = vunpack.c.l.s4 1983009808
    %v1673 = vunpack.c.0.s8 %v1672
    %v1674 = vlaneseq
    %v1675 = vshrl.u32 %v1674, 7
    %v1676 = vsub.s32 %v1673, %v1675
    %v1677 = vrot.slane %v1663, %v1676
    %v1678 = vcombine.high %v1670, %v1670
    %v1679 = vcombine.high %v1677, %v1677
    %v1680 = vcombine.high %v736, %v736
    %v1682 = vunpack.c.l.s4 1983009808
    %v1683 = vunpack.c.0.s8 %v1682
    %v1684 = vlaneseq
    %v1685 = vshrl.u32 %v1684, 7
    %v1686 = vsub.s32 %v1683, %v1685
    %v1687 = vrot.slane %v736, %v1686
    %v1689 = vunpack.c.l.s4 1983009808
    %v1690 = vunpack.c.0.s8 %v1689
    %v1691 = vlaneseq
    %v1692 = vshrl.u32 %v1691, 7
    %v1693 = vsub.s32 %v1690, %v1692
    %v1694 = vrot.slane %v1680, %v1693
    %v1695 = vcombine.high %v1687, %v1687
    %v1696 = vcombine.high %v1694, %v1694
    %v1697 = vcombine.high %v737, %v737
    %v1699 = vunpack.c.l.s4 1983009808
    %v1700 = vunpack.c.0.s8 %v1699
    %v1701 = vlaneseq
    %v1702 = vshrl.u32 %v1701, 7
    %v1703 = vsub.s32 %v1700, %v1702
    %v1704 = vrot.slane %v737, %v1703
    %v1706 = vunpack.c.l.s4 1983009808
    %v1707 = vunpack.c.0.s8 %v1706
    %v1708 = vlaneseq
    %v1709 = vshrl.u32 %v1708, 7
    %v1710 = vsub.s32 %v1707, %v1709
    %v1711 = vrot.slane %v1697, %v1710
    %v1712 = vcombine.high %v1704, %v1704
    %v1713 = vcombine.high %v1711, %v1711
    %v1714 = vcombine.high %v738, %v738
    %v1716 = vunpack.c.l.s4 1983009808
    %v1717 = vunpack.c.0.s8 %v1716
    %v1718 = vlaneseq
    %v1719 = vshrl.u32 %v1718, 7
    %v1720 = vsub.s32 %v1717, %v1719
    %v1721 = vrot.slane %v738, %v1720
    %v1723 = vunpack.c.l.s4 1983009808
    %v1724 = vunpack.c.0.s8 %v1723
    %v1725 = vlaneseq
    %v1726 = vshrl.u32 %v1725, 7
    %v1727 = vsub.s32 %v1724, %v1726
    %v1728 = vrot.slane %v1714, %v1727
    %v1729 = vcombine.high %v1721, %v1721
    %v1730 = vcombine.high %v1728, %v1728
    %v1731 = vcombine.high %v739, %v739
    %v1733 = vunpack.c.l.s4 1983009808
    %v1734 = vunpack.c.0.s8 %v1733
    %v1735 = vlaneseq
    %v1736 = vshrl.u32 %v1735, 7
    %v1737 = vsub.s32 %v1734, %v1736
    %v1738 = vrot.slane %v739, %v1737
    %v1740 = vunpack.c.l.s4 1983009808
    %v1741 = vunpack.c.0.s8 %v1740
    %v1742 = vlaneseq
    %v1743 = vshrl.u32 %v1742, 7
    %v1744 = vsub.s32 %v1741, %v1743
    %v1745 = vrot.slane %v1731, %v1744
    %v1746 = vcombine.high %v1738, %v1738
    %v1747 = vcombine.high %v1745, %v1745
    %v1748 = vcombine.high %v740, %v740
    %v1750 = vunpack.c.l.s4 1983009808
    %v1751 = vunpack.c.0.s8 %v1750
    %v1752 = vlaneseq
    %v1753 = vshrl.u32 %v1752, 7
    %v1754 = vsub.s32 %v1751, %v1753
    %v1755 = vrot.slane %v740, %v1754
    %v1757 = vunpack.c.l.s4 1983009808
    %v1758 = vunpack.c.0.s8 %v1757
    %v1759 = vlaneseq
    %v1760 = vshrl.u32 %v1759, 7
    %v1761 = vsub.s32 %v1758, %v1760
    %v1762 = vrot.slane %v1748, %v1761
    %v1763 = vcombine.high %v1755, %v1755
    %v1764 = vcombine.high %v1762, %v1762
    %v1765 = vcombine.high %v741, %v741
    %v1767 = vunpack.c.l.s4 1983009808
    %v1768 = vunpack.c.0.s8 %v1767
    %v1769 = vlaneseq
    %v1770 = vshrl.u32 %v1769, 7
    %v1771 = vsub.s32 %v1768, %v1770
    %v1772 = vrot.slane %v741, %v1771
    %v1774 = vunpack.c.l.s4 1983009808
    %v1775 = vunpack.c.0.s8 %v1774
    %v1776 = vlaneseq
    %v1777 = vshrl.u32 %v1776, 7
    %v1778 = vsub.s32 %v1775, %v1777
    %v1779 = vrot.slane %v1765, %v1778
    %v1780 = vcombine.high %v1772, %v1772
    %v1781 = vcombine.high %v1779, %v1779
    %v1782 = vcombine.high %v742, %v742
    %v1784 = vunpack.c.l.s4 1983009808
    %v1785 = vunpack.c.0.s8 %v1784
    %v1786 = vlaneseq
    %v1787 = vshrl.u32 %v1786, 7
    %v1788 = vsub.s32 %v1785, %v1787
    %v1789 = vrot.slane %v742, %v1788
    %v1791 = vunpack.c.l.s4 1983009808
    %v1792 = vunpack.c.0.s8 %v1791
    %v1793 = vlaneseq
    %v1794 = vshrl.u32 %v1793, 7
    %v1795 = vsub.s32 %v1792, %v1794
    %v1796 = vrot.slane %v1782, %v1795
    %v1797 = vcombine.high %v1789, %v1789
    %v1798 = vcombine.high %v1796, %v1796
    %v1799 = vcombine.high %v743, %v743
    %v1801 = vunpack.c.l.s4 1983009808
    %v1802 = vunpack.c.0.s8 %v1801
    %v1803 = vlaneseq
    %v1804 = vshrl.u32 %v1803, 7
    %v1805 = vsub.s32 %v1802, %v1804
    %v1806 = vrot.slane %v743, %v1805
    %v1808 = vunpack.c.l.s4 1983009808
    %v1809 = vunpack.c.0.s8 %v1808
    %v1810 = vlaneseq
    %v1811 = vshrl.u32 %v1810, 7
    %v1812 = vsub.s32 %v1809, %v1811
    %v1813 = vrot.slane %v1799, %v1812
    %v1814 = vcombine.high %v1806, %v1806
    %v1815 = vcombine.high %v1813, %v1813
    %v1816 = vcombine.high %v744, %v744
    %v1818 = vunpack.c.l.s4 1983009808
    %v1819 = vunpack.c.0.s8 %v1818
    %v1820 = vlaneseq
    %v1821 = vshrl.u32 %v1820, 7
    %v1822 = vsub.s32 %v1819, %v1821
    %v1823 = vrot.slane %v744, %v1822
    %v1825 = vunpack.c.l.s4 1983009808
    %v1826 = vunpack.c.0.s8 %v1825
    %v1827 = vlaneseq
    %v1828 = vshrl.u32 %v1827, 7
    %v1829 = vsub.s32 %v1826, %v1828
    %v1830 = vrot.slane %v1816, %v1829
    %v1831 = vcombine.high %v1823, %v1823
    %v1832 = vcombine.high %v1830, %v1830
    %v1833 = vcombine.high %v745, %v745
    %v1835 = vunpack.c.l.s4 1983009808
    %v1836 = vunpack.c.0.s8 %v1835
    %v1837 = vlaneseq
    %v1838 = vshrl.u32 %v1837, 7
    %v1839 = vsub.s32 %v1836, %v1838
    %v1840 = vrot.slane %v745, %v1839
    %v1842 = vunpack.c.l.s4 1983009808
    %v1843 = vunpack.c.0.s8 %v1842
    %v1844 = vlaneseq
    %v1845 = vshrl.u32 %v1844, 7
    %v1846 = vsub.s32 %v1843, %v1845
    %v1847 = vrot.slane %v1833, %v1846
    %v1848 = vcombine.high %v1840, %v1840
    %v1849 = vcombine.high %v1847, %v1847
    %v1850 = vcombine.high %v746, %v746
    %v1852 = vunpack.c.l.s4 1983009808
    %v1853 = vunpack.c.0.s8 %v1852
    %v1854 = vlaneseq
    %v1855 = vshrl.u32 %v1854, 7
    %v1856 = vsub.s32 %v1853, %v1855
    %v1857 = vrot.slane %v746, %v1856
    %v1859 = vunpack.c.l.s4 1983009808
    %v1860 = vunpack.c.0.s8 %v1859
    %v1861 = vlaneseq
    %v1862 = vshrl.u32 %v1861, 7
    %v1863 = vsub.s32 %v1860, %v1862
    %v1864 = vrot.slane %v1850, %v1863
    %v1865 = vcombine.high %v1857, %v1857
    %v1866 = vcombine.high %v1864, %v1864
    %v1867 = vcombine.high %v747, %v747
    %v1869 = vunpack.c.l.s4 1983009808
    %v1870 = vunpack.c.0.s8 %v1869
    %v1871 = vlaneseq
    %v1872 = vshrl.u32 %v1871, 7
    %v1873 = vsub.s32 %v1870, %v1872
    %v1874 = vrot.slane %v747, %v1873
    %v1876 = vunpack.c.l.s4 1983009808
    %v1877 = vunpack.c.0.s8 %v1876
    %v1878 = vlaneseq
    %v1879 = vshrl.u32 %v1878, 7
    %v1880 = vsub.s32 %v1877, %v1879
    %v1881 = vrot.slane %v1867, %v1880
    %v1882 = vcombine.high %v1874, %v1874
    %v1883 = vcombine.high %v1881, %v1881
    %v1884 = vcombine.high %v748, %v748
    %v1886 = vunpack.c.l.s4 1983009808
    %v1887 = vunpack.c.0.s8 %v1886
    %v1888 = vlaneseq
    %v1889 = vshrl.u32 %v1888, 7
    %v1890 = vsub.s32 %v1887, %v1889
    %v1891 = vrot.slane %v748, %v1890
    %v1893 = vunpack.c.l.s4 1983009808
    %v1894 = vunpack.c.0.s8 %v1893
    %v1895 = vlaneseq
    %v1896 = vshrl.u32 %v1895, 7
    %v1897 = vsub.s32 %v1894, %v1896
    %v1898 = vrot.slane %v1884, %v1897
    %v1899 = vcombine.high %v1891, %v1891
    %v1900 = vcombine.high %v1898, %v1898
    %v2157 = vmax.f32 %v820, %v854
    %v2158 = vmax.f32 %v828, %v862
    %v2159 = vmax.f32 %v827, %v861
    %v2160 = vmax.f32 %v829, %v863
    %v2161 = vmax.f32 %v837, %v871
    %v2162 = vmax.f32 %v845, %v879
    %v2163 = vmax.f32 %v844, %v878
    %v2164 = vmax.f32 %v846, %v880
    %v2165 = vmax.f32 %v888, %v922
    %v2166 = vmax.f32 %v896, %v930
    %v2167 = vmax.f32 %v895, %v929
    %v2168 = vmax.f32 %v897, %v931
    %v2169 = vmax.f32 %v905, %v939
    %v2170 = vmax.f32 %v913, %v947
    %v2171 = vmax.f32 %v912, %v946
    %v2172 = vmax.f32 %v914, %v948
    %v2173 = vmax.f32 %v956, %v990
    %v2174 = vmax.f32 %v964, %v998
    %v2175 = vmax.f32 %v963, %v997
    %v2176 = vmax.f32 %v965, %v999
    %v2177 = vmax.f32 %v973, %v1007
    %v2178 = vmax.f32 %v981, %v1015
    %v2179 = vmax.f32 %v980, %v1014
    %v2180 = vmax.f32 %v982, %v1016
    %v2181 = vmax.f32 %v1024, %v1058
    %v2182 = vmax.f32 %v1032, %v1066
    %v2183 = vmax.f32 %v1031, %v1065
    %v2184 = vmax.f32 %v1033, %v1067
    %v2185 = vmax.f32 %v1041, %v1075
    %v2186 = vmax.f32 %v1049, %v1083
    %v2187 = vmax.f32 %v1048, %v1082
    %v2188 = vmax.f32 %v1050, %v1084
    %v2189 = vmax.f32 %v1092, %v1126
    %v2190 = vmax.f32 %v1100, %v1134
    %v2191 = vmax.f32 %v1099, %v1133
    %v2192 = vmax.f32 %v1101, %v1135
    %v2193 = vmax.f32 %v1109, %v1143
    %v2194 = vmax.f32 %v1117, %v1151
    %v2195 = vmax.f32 %v1116, %v1150
    %v2196 = vmax.f32 %v1118, %v1152
    %v2197 = vmax.f32 %v1160, %v1194
    %v2198 = vmax.f32 %v1168, %v1202
    %v2199 = vmax.f32 %v1167, %v1201
    %v2200 = vmax.f32 %v1169, %v1203
    %v2201 = vmax.f32 %v1177, %v1211
    %v2202 = vmax.f32 %v1185, %v1219
    %v2203 = vmax.f32 %v1184, %v1218
    %v2204 = vmax.f32 %v1186, %v1220
    %v2205 = vmax.f32 %v1228, %v1262
    %v2206 = vmax.f32 %v1236, %v1270
    %v2207 = vmax.f32 %v1235, %v1269
    %v2208 = vmax.f32 %v1237, %v1271
    %v2209 = vmax.f32 %v1245, %v1279
    %v2210 = vmax.f32 %v1253, %v1287
    %v2211 = vmax.f32 %v1252, %v1286
    %v2212 = vmax.f32 %v1254, %v1288
    %v2213 = vmax.f32 %v1296, %v1330
    %v2214 = vmax.f32 %v1304, %v1338
    %v2215 = vmax.f32 %v1303, %v1337
    %v2216 = vmax.f32 %v1305, %v1339
    %v2217 = vmax.f32 %v1313, %v1347
    %v2218 = vmax.f32 %v1321, %v1355
    %v2219 = vmax.f32 %v1320, %v1354
    %v2220 = vmax.f32 %v1322, %v1356
    %v2221 = vmax.f32 %v1364, %v1398
    %v2222 = vmax.f32 %v1372, %v1406
    %v2223 = vmax.f32 %v1371, %v1405
    %v2224 = vmax.f32 %v1373, %v1407
    %v2225 = vmax.f32 %v1381, %v1415
    %v2226 = vmax.f32 %v1389, %v1423
    %v2227 = vmax.f32 %v1388, %v1422
    %v2228 = vmax.f32 %v1390, %v1424
    %v2229 = vmax.f32 %v1432, %v1466
    %v2230 = vmax.f32 %v1440, %v1474
    %v2231 = vmax.f32 %v1439, %v1473
    %v2232 = vmax.f32 %v1441, %v1475
    %v2233 = vmax.f32 %v1449, %v1483
    %v2234 = vmax.f32 %v1457, %v1491
    %v2235 = vmax.f32 %v1456, %v1490
    %v2236 = vmax.f32 %v1458, %v1492
    %v2237 = vmax.f32 %v1500, %v1534
    %v2238 = vmax.f32 %v1508, %v1542
    %v2239 = vmax.f32 %v1507, %v1541
    %v2240 = vmax.f32 %v1509, %v1543
    %v2241 = vmax.f32 %v1517, %v1551
    %v2242 = vmax.f32 %v1525, %v1559
    %v2243 = vmax.f32 %v1524, %v1558
    %v2244 = vmax.f32 %v1526, %v1560
    %v2245 = vmax.f32 %v1568, %v1602
    %v2246 = vmax.f32 %v1576, %v1610
    %v2247 = vmax.f32 %v1575, %v1609
    %v2248 = vmax.f32 %v1577, %v1611
    %v2249 = vmax.f32 %v1585, %v1619
    %v2250 = vmax.f32 %v1593, %v1627
    %v2251 = vmax.f32 %v1592, %v1626
    %v2252 = vmax.f32 %v1594, %v1628
    %v2253 = vmax.f32 %v1636, %v1670
    %v2254 = vmax.f32 %v1644, %v1678
    %v2255 = vmax.f32 %v1643, %v1677
    %v2256 = vmax.f32 %v1645, %v1679
    %v2257 = vmax.f32 %v1653, %v1687
    %v2258 = vmax.f32 %v1661, %v1695
    %v2259 = vmax.f32 %v1660, %v1694
    %v2260 = vmax.f32 %v1662, %v1696
    %v2261 = vmax.f32 %v1704, %v1738
    %v2262 = vmax.f32 %v1712, %v1746
    %v2263 = vmax.f32 %v1711, %v1745
    %v2264 = vmax.f32 %v1713, %v1747
    %v2265 = vmax.f32 %v1721, %v1755
    %v2266 = vmax.f32 %v1729, %v1763
    %v2267 = vmax.f32 %v1728, %v1762
    %v2268 = vmax.f32 %v1730, %v1764
    %v2269 = vmax.f32 %v1772, %v1806
    %v2270 = vmax.f32 %v1780, %v1814
    %v2271 = vmax.f32 %v1779, %v1813
    %v2272 = vmax.f32 %v1781, %v1815
    %v2273 = vmax.f32 %v1789, %v1823
    %v2274 = vmax.f32 %v1797, %v1831
    %v2275 = vmax.f32 %v1796, %v1830
    %v2276 = vmax.f32 %v1798, %v1832
    %v2277 = vmax.f32 %v1840, %v1874
    %v2278 = vmax.f32 %v1848, %v1882
    %v2279 = vmax.f32 %v1847, %v1881
    %v2280 = vmax.f32 %v1849, %v1883
    %v2281 = vmax.f32 %v1857, %v1891
    %v2282 = vmax.f32 %v1865, %v1899
    %v2283 = vmax.f32 %v1864, %v1898
    %v2284 = vmax.f32 %v1866, %v1900
    %v2413 = vrot.slane %v2157, 7
    %v2414 = vrot.slane %v2413, 2
    %v2415 = vrot.slane %v2158, 7
    %v2416 = vrot.slane %v2415, 2
    %v2417 = vrot.slane %v2159, 7
    %v2418 = vrot.slane %v2417, 2
    %v2419 = vrot.slane %v2160, 7
    %v2420 = vrot.slane %v2419, 2
    %v2421 = vrot.slane %v2161, 7
    %v2422 = vrot.slane %v2421, 2
    %v2423 = vrot.slane %v2162, 7
    %v2424 = vrot.slane %v2423, 2
    %v2425 = vrot.slane %v2163, 7
    %v2426 = vrot.slane %v2425, 2
    %v2427 = vrot.slane %v2164, 7
    %v2428 = vrot.slane %v2427, 2
    %v2429 = vrot.slane %v2165, 7
    %v2430 = vrot.slane %v2429, 2
    %v2431 = vrot.slane %v2166, 7
    %v2432 = vrot.slane %v2431, 2
    %v2433 = vrot.slane %v2167, 7
    %v2434 = vrot.slane %v2433, 2
    %v2435 = vrot.slane %v2168, 7
    %v2436 = vrot.slane %v2435, 2
    %v2437 = vrot.slane %v2169, 7
    %v2438 = vrot.slane %v2437, 2
    %v2439 = vrot.slane %v2170, 7
    %v2440 = vrot.slane %v2439, 2
    %v2441 = vrot.slane %v2171, 7
    %v2442 = vrot.slane %v2441, 2
    %v2443 = vrot.slane %v2172, 7
    %v2444 = vrot.slane %v2443, 2
    %v2445 = vrot.slane %v2173, 7
    %v2446 = vrot.slane %v2445, 2
    %v2447 = vrot.slane %v2174, 7
    %v2448 = vrot.slane %v2447, 2
    %v2449 = vrot.slane %v2175, 7
    %v2450 = vrot.slane %v2449, 2
    %v2451 = vrot.slane %v2176, 7
    %v2452 = vrot.slane %v2451, 2
    %v2453 = vrot.slane %v2177, 7
    %v2454 = vrot.slane %v2453, 2
    %v2455 = vrot.slane %v2178, 7
    %v2456 = vrot.slane %v2455, 2
    %v2457 = vrot.slane %v2179, 7
    %v2458 = vrot.slane %v2457, 2
    %v2459 = vrot.slane %v2180, 7
    %v2460 = vrot.slane %v2459, 2
    %v2461 = vrot.slane %v2181, 7
    %v2462 = vrot.slane %v2461, 2
    %v2463 = vrot.slane %v2182, 7
    %v2464 = vrot.slane %v2463, 2
    %v2465 = vrot.slane %v2183, 7
    %v2466 = vrot.slane %v2465, 2
    %v2467 = vrot.slane %v2184, 7
    %v2468 = vrot.slane %v2467, 2
    %v2469 = vrot.slane %v2185, 7
    %v2470 = vrot.slane %v2469, 2
    %v2471 = vrot.slane %v2186, 7
    %v2472 = vrot.slane %v2471, 2
    %v2473 = vrot.slane %v2187, 7
    %v2474 = vrot.slane %v2473, 2
    %v2475 = vrot.slane %v2188, 7
    %v2476 = vrot.slane %v2475, 2
    %v2477 = vrot.slane %v2189, 7
    %v2478 = vrot.slane %v2477, 2
    %v2479 = vrot.slane %v2190, 7
    %v2480 = vrot.slane %v2479, 2
    %v2481 = vrot.slane %v2191, 7
    %v2482 = vrot.slane %v2481, 2
    %v2483 = vrot.slane %v2192, 7
    %v2484 = vrot.slane %v2483, 2
    %v2485 = vrot.slane %v2193, 7
    %v2486 = vrot.slane %v2485, 2
    %v2487 = vrot.slane %v2194, 7
    %v2488 = vrot.slane %v2487, 2
    %v2489 = vrot.slane %v2195, 7
    %v2490 = vrot.slane %v2489, 2
    %v2491 = vrot.slane %v2196, 7
    %v2492 = vrot.slane %v2491, 2
    %v2493 = vrot.slane %v2197, 7
    %v2494 = vrot.slane %v2493, 2
    %v2495 = vrot.slane %v2198, 7
    %v2496 = vrot.slane %v2495, 2
    %v2497 = vrot.slane %v2199, 7
    %v2498 = vrot.slane %v2497, 2
    %v2499 = vrot.slane %v2200, 7
    %v2500 = vrot.slane %v2499, 2
    %v2501 = vrot.slane %v2201, 7
    %v2502 = vrot.slane %v2501, 2
    %v2503 = vrot.slane %v2202, 7
    %v2504 = vrot.slane %v2503, 2
    %v2505 = vrot.slane %v2203, 7
    %v2506 = vrot.slane %v2505, 2
    %v2507 = vrot.slane %v2204, 7
    %v2508 = vrot.slane %v2507, 2
    %v2509 = vrot.slane %v2205, 7
    %v2510 = vrot.slane %v2509, 2
    %v2511 = vrot.slane %v2206, 7
    %v2512 = vrot.slane %v2511, 2
    %v2513 = vrot.slane %v2207, 7
    %v2514 = vrot.slane %v2513, 2
    %v2515 = vrot.slane %v2208, 7
    %v2516 = vrot.slane %v2515, 2
    %v2517 = vrot.slane %v2209, 7
    %v2518 = vrot.slane %v2517, 2
    %v2519 = vrot.slane %v2210, 7
    %v2520 = vrot.slane %v2519, 2
    %v2521 = vrot.slane %v2211, 7
    %v2522 = vrot.slane %v2521, 2
    %v2523 = vrot.slane %v2212, 7
    %v2524 = vrot.slane %v2523, 2
    %v2525 = vrot.slane %v2213, 7
    %v2526 = vrot.slane %v2525, 2
    %v2527 = vrot.slane %v2214, 7
    %v2528 = vrot.slane %v2527, 2
    %v2529 = vrot.slane %v2215, 7
    %v2530 = vrot.slane %v2529, 2
    %v2531 = vrot.slane %v2216, 7
    %v2532 = vrot.slane %v2531, 2
    %v2533 = vrot.slane %v2217, 7
    %v2534 = vrot.slane %v2533, 2
    %v2535 = vrot.slane %v2218, 7
    %v2536 = vrot.slane %v2535, 2
    %v2537 = vrot.slane %v2219, 7
    %v2538 = vrot.slane %v2537, 2
    %v2539 = vrot.slane %v2220, 7
    %v2540 = vrot.slane %v2539, 2
    %v2541 = vrot.slane %v2221, 7
    %v2542 = vrot.slane %v2541, 2
    %v2543 = vrot.slane %v2222, 7
    %v2544 = vrot.slane %v2543, 2
    %v2545 = vrot.slane %v2223, 7
    %v2546 = vrot.slane %v2545, 2
    %v2547 = vrot.slane %v2224, 7
    %v2548 = vrot.slane %v2547, 2
    %v2549 = vrot.slane %v2225, 7
    %v2550 = vrot.slane %v2549, 2
    %v2551 = vrot.slane %v2226, 7
    %v2552 = vrot.slane %v2551, 2
    %v2553 = vrot.slane %v2227, 7
    %v2554 = vrot.slane %v2553, 2
    %v2555 = vrot.slane %v2228, 7
    %v2556 = vrot.slane %v2555, 2
    %v2557 = vrot.slane %v2229, 7
    %v2558 = vrot.slane %v2557, 2
    %v2559 = vrot.slane %v2230, 7
    %v2560 = vrot.slane %v2559, 2
    %v2561 = vrot.slane %v2231, 7
    %v2562 = vrot.slane %v2561, 2
    %v2563 = vrot.slane %v2232, 7
    %v2564 = vrot.slane %v2563, 2
    %v2565 = vrot.slane %v2233, 7
    %v2566 = vrot.slane %v2565, 2
    %v2567 = vrot.slane %v2234, 7
    %v2568 = vrot.slane %v2567, 2
    %v2569 = vrot.slane %v2235, 7
    %v2570 = vrot.slane %v2569, 2
    %v2571 = vrot.slane %v2236, 7
    %v2572 = vrot.slane %v2571, 2
    %v2573 = vrot.slane %v2237, 7
    %v2574 = vrot.slane %v2573, 2
    %v2575 = vrot.slane %v2238, 7
    %v2576 = vrot.slane %v2575, 2
    %v2577 = vrot.slane %v2239, 7
    %v2578 = vrot.slane %v2577, 2
    %v2579 = vrot.slane %v2240, 7
    %v2580 = vrot.slane %v2579, 2
    %v2581 = vrot.slane %v2241, 7
    %v2582 = vrot.slane %v2581, 2
    %v2583 = vrot.slane %v2242, 7
    %v2584 = vrot.slane %v2583, 2
    %v2585 = vrot.slane %v2243, 7
    %v2586 = vrot.slane %v2585, 2
    %v2587 = vrot.slane %v2244, 7
    %v2588 = vrot.slane %v2587, 2
    %v2589 = vrot.slane %v2245, 7
    %v2590 = vrot.slane %v2589, 2
    %v2591 = vrot.slane %v2246, 7
    %v2592 = vrot.slane %v2591, 2
    %v2593 = vrot.slane %v2247, 7
    %v2594 = vrot.slane %v2593, 2
    %v2595 = vrot.slane %v2248, 7
    %v2596 = vrot.slane %v2595, 2
    %v2597 = vrot.slane %v2249, 7
    %v2598 = vrot.slane %v2597, 2
    %v2599 = vrot.slane %v2250, 7
    %v2600 = vrot.slane %v2599, 2
    %v2601 = vrot.slane %v2251, 7
    %v2602 = vrot.slane %v2601, 2
    %v2603 = vrot.slane %v2252, 7
    %v2604 = vrot.slane %v2603, 2
    %v2605 = vrot.slane %v2253, 7
    %v2606 = vrot.slane %v2605, 2
    %v2607 = vrot.slane %v2254, 7
    %v2608 = vrot.slane %v2607, 2
    %v2609 = vrot.slane %v2255, 7
    %v2610 = vrot.slane %v2609, 2
    %v2611 = vrot.slane %v2256, 7
    %v2612 = vrot.slane %v2611, 2
    %v2613 = vrot.slane %v2257, 7
    %v2614 = vrot.slane %v2613, 2
    %v2615 = vrot.slane %v2258, 7
    %v2616 = vrot.slane %v2615, 2
    %v2617 = vrot.slane %v2259, 7
    %v2618 = vrot.slane %v2617, 2
    %v2619 = vrot.slane %v2260, 7
    %v2620 = vrot.slane %v2619, 2
    %v2621 = vrot.slane %v2261, 7
    %v2622 = vrot.slane %v2621, 2
    %v2623 = vrot.slane %v2262, 7
    %v2624 = vrot.slane %v2623, 2
    %v2625 = vrot.slane %v2263, 7
    %v2626 = vrot.slane %v2625, 2
    %v2627 = vrot.slane %v2264, 7
    %v2628 = vrot.slane %v2627, 2
    %v2629 = vrot.slane %v2265, 7
    %v2630 = vrot.slane %v2629, 2
    %v2631 = vrot.slane %v2266, 7
    %v2632 = vrot.slane %v2631, 2
    %v2633 = vrot.slane %v2267, 7
    %v2634 = vrot.slane %v2633, 2
    %v2635 = vrot.slane %v2268, 7
    %v2636 = vrot.slane %v2635, 2
    %v2637 = vrot.slane %v2269, 7
    %v2638 = vrot.slane %v2637, 2
    %v2639 = vrot.slane %v2270, 7
    %v2640 = vrot.slane %v2639, 2
    %v2641 = vrot.slane %v2271, 7
    %v2642 = vrot.slane %v2641, 2
    %v2643 = vrot.slane %v2272, 7
    %v2644 = vrot.slane %v2643, 2
    %v2645 = vrot.slane %v2273, 7
    %v2646 = vrot.slane %v2645, 2
    %v2647 = vrot.slane %v2274, 7
    %v2648 = vrot.slane %v2647, 2
    %v2649 = vrot.slane %v2275, 7
    %v2650 = vrot.slane %v2649, 2
    %v2651 = vrot.slane %v2276, 7
    %v2652 = vrot.slane %v2651, 2
    %v2653 = vrot.slane %v2277, 7
    %v2654 = vrot.slane %v2653, 2
    %v2655 = vrot.slane %v2278, 7
    %v2656 = vrot.slane %v2655, 2
    %v2657 = vrot.slane %v2279, 7
    %v2658 = vrot.slane %v2657, 2
    %v2659 = vrot.slane %v2280, 7
    %v2660 = vrot.slane %v2659, 2
    %v2661 = vrot.slane %v2281, 7
    %v2662 = vrot.slane %v2661, 2
    %v2663 = vrot.slane %v2282, 7
    %v2664 = vrot.slane %v2663, 2
    %v2665 = vrot.slane %v2283, 7
    %v2666 = vrot.slane %v2665, 2
    %v2667 = vrot.slane %v2284, 7
    %v2668 = vrot.slane %v2667, 2
    %v2797 = vmax.f32 %v2157, %v2414
    %v2798 = vmax.f32 %v2158, %v2416
    %v2799 = vmax.f32 %v2159, %v2418
    %v2800 = vmax.f32 %v2160, %v2420
    %v2801 = vmax.f32 %v2161, %v2422
    %v2802 = vmax.f32 %v2162, %v2424
    %v2803 = vmax.f32 %v2163, %v2426
    %v2804 = vmax.f32 %v2164, %v2428
    %v2805 = vmax.f32 %v2165, %v2430
    %v2806 = vmax.f32 %v2166, %v2432
    %v2807 = vmax.f32 %v2167, %v2434
    %v2808 = vmax.f32 %v2168, %v2436
    %v2809 = vmax.f32 %v2169, %v2438
    %v2810 = vmax.f32 %v2170, %v2440
    %v2811 = vmax.f32 %v2171, %v2442
    %v2812 = vmax.f32 %v2172, %v2444
    %v2813 = vmax.f32 %v2173, %v2446
    %v2814 = vmax.f32 %v2174, %v2448
    %v2815 = vmax.f32 %v2175, %v2450
    %v2816 = vmax.f32 %v2176, %v2452
    %v2817 = vmax.f32 %v2177, %v2454
    %v2818 = vmax.f32 %v2178, %v2456
    %v2819 = vmax.f32 %v2179, %v2458
    %v2820 = vmax.f32 %v2180, %v2460
    %v2821 = vmax.f32 %v2181, %v2462
    %v2822 = vmax.f32 %v2182, %v2464
    %v2823 = vmax.f32 %v2183, %v2466
    %v2824 = vmax.f32 %v2184, %v2468
    %v2825 = vmax.f32 %v2185, %v2470
    %v2826 = vmax.f32 %v2186, %v2472
    %v2827 = vmax.f32 %v2187, %v2474
    %v2828 = vmax.f32 %v2188, %v2476
    %v2829 = vmax.f32 %v2189, %v2478
    %v2830 = vmax.f32 %v2190, %v2480
    %v2831 = vmax.f32 %v2191, %v2482
    %v2832 = vmax.f32 %v2192, %v2484
    %v2833 = vmax.f32 %v2193, %v2486
    %v2834 = vmax.f32 %v2194, %v2488
    %v2835 = vmax.f32 %v2195, %v2490
    %v2836 = vmax.f32 %v2196, %v2492
    %v2837 = vmax.f32 %v2197, %v2494
    %v2838 = vmax.f32 %v2198, %v2496
    %v2839 = vmax.f32 %v2199, %v2498
    %v2840 = vmax.f32 %v2200, %v2500
    %v2841 = vmax.f32 %v2201, %v2502
    %v2842 = vmax.f32 %v2202, %v2504
    %v2843 = vmax.f32 %v2203, %v2506
    %v2844 = vmax.f32 %v2204, %v2508
    %v2845 = vmax.f32 %v2205, %v2510
    %v2846 = vmax.f32 %v2206, %v2512
    %v2847 = vmax.f32 %v2207, %v2514
    %v2848 = vmax.f32 %v2208, %v2516
    %v2849 = vmax.f32 %v2209, %v2518
    %v2850 = vmax.f32 %v2210, %v2520
    %v2851 = vmax.f32 %v2211, %v2522
    %v2852 = vmax.f32 %v2212, %v2524
    %v2853 = vmax.f32 %v2213, %v2526
    %v2854 = vmax.f32 %v2214, %v2528
    %v2855 = vmax.f32 %v2215, %v2530
    %v2856 = vmax.f32 %v2216, %v2532
    %v2857 = vmax.f32 %v2217, %v2534
    %v2858 = vmax.f32 %v2218, %v2536
    %v2859 = vmax.f32 %v2219, %v2538
    %v2860 = vmax.f32 %v2220, %v2540
    %v2861 = vmax.f32 %v2221, %v2542
    %v2862 = vmax.f32 %v2222, %v2544
    %v2863 = vmax.f32 %v2223, %v2546
    %v2864 = vmax.f32 %v2224, %v2548
    %v2865 = vmax.f32 %v2225, %v2550
    %v2866 = vmax.f32 %v2226, %v2552
    %v2867 = vmax.f32 %v2227, %v2554
    %v2868 = vmax.f32 %v2228, %v2556
    %v2869 = vmax.f32 %v2229, %v2558
    %v2870 = vmax.f32 %v2230, %v2560
    %v2871 = vmax.f32 %v2231, %v2562
    %v2872 = vmax.f32 %v2232, %v2564
    %v2873 = vmax.f32 %v2233, %v2566
    %v2874 = vmax.f32 %v2234, %v2568
    %v2875 = vmax.f32 %v2235, %v2570
    %v2876 = vmax.f32 %v2236, %v2572
    %v2877 = vmax.f32 %v2237, %v2574
    %v2878 = vmax.f32 %v2238, %v2576
    %v2879 = vmax.f32 %v2239, %v2578
    %v2880 = vmax.f32 %v2240, %v2580
    %v2881 = vmax.f32 %v2241, %v2582
    %v2882 = vmax.f32 %v2242, %v2584
    %v2883 = vmax.f32 %v2243, %v2586
    %v2884 = vmax.f32 %v2244, %v2588
    %v2885 = vmax.f32 %v2245, %v2590
    %v2886 = vmax.f32 %v2246, %v2592
    %v2887 = vmax.f32 %v2247, %v2594
    %v2888 = vmax.f32 %v2248, %v2596
    %v2889 = vmax.f32 %v2249, %v2598
    %v2890 = vmax.f32 %v2250, %v2600
    %v2891 = vmax.f32 %v2251, %v2602
    %v2892 = vmax.f32 %v2252, %v2604
    %v2893 = vmax.f32 %v2253, %v2606
    %v2894 = vmax.f32 %v2254, %v2608
    %v2895 = vmax.f32 %v2255, %v2610
    %v2896 = vmax.f32 %v2256, %v2612
    %v2897 = vmax.f32 %v2257, %v2614
    %v2898 = vmax.f32 %v2258, %v2616
    %v2899 = vmax.f32 %v2259, %v2618
    %v2900 = vmax.f32 %v2260, %v2620
    %v2901 = vmax.f32 %v2261, %v2622
    %v2902 = vmax.f32 %v2262, %v2624
    %v2903 = vmax.f32 %v2263, %v2626
    %v2904 = vmax.f32 %v2264, %v2628
    %v2905 = vmax.f32 %v2265, %v2630
    %v2906 = vmax.f32 %v2266, %v2632
    %v2907 = vmax.f32 %v2267, %v2634
    %v2908 = vmax.f32 %v2268, %v2636
    %v2909 = vmax.f32 %v2269, %v2638
    %v2910 = vmax.f32 %v2270, %v2640
    %v2911 = vmax.f32 %v2271, %v2642
    %v2912 = vmax.f32 %v2272, %v2644
    %v2913 = vmax.f32 %v2273, %v2646
    %v2914 = vmax.f32 %v2274, %v2648
    %v2915 = vmax.f32 %v2275, %v2650
    %v2916 = vmax.f32 %v2276, %v2652
    %v2917 = vmax.f32 %v2277, %v2654
    %v2918 = vmax.f32 %v2278, %v2656
    %v2919 = vmax.f32 %v2279, %v2658
    %v2920 = vmax.f32 %v2280, %v2660
    %v2921 = vmax.f32 %v2281, %v2662
    %v2922 = vmax.f32 %v2282, %v2664
    %v2923 = vmax.f32 %v2283, %v2666
    %v2924 = vmax.f32 %v2284, %v2668
    %vm2925 = vcmask 64512
    %2926 = vst.msk [vmem:[#allocation2] sm:$0xff] %vm2925, 0.0
    %vm2927 = vcmask 58368
    %2928 = vst.msk [vmem:[#allocation2 + $0x8] sm:$0x3] %vm2927, 0.0
    %2929 = vst.msk [vmem:[#allocation2 + $0x10] sm:$0xff] %vm2925, 0.0
    %2930 = vst.msk [vmem:[#allocation2 + $0x18] sm:$0x3] %vm2927, 0.0
    %2931 = vst.msk [vmem:[#allocation2 + $0x20] sm:$0xff] %vm2925, 0.0
    %2932 = vst.msk [vmem:[#allocation2 + $0x28] sm:$0x3] %vm2927, 0.0
    %2933 = vst.msk [vmem:[#allocation2 + $0x30] sm:$0xff] %vm2925, 0.0
    %2934 = vst.msk [vmem:[#allocation2 + $0x38] sm:$0x3] %vm2927, 0.0
    %2935 = vst.msk [vmem:[#allocation2 + $0x40] sm:$0xff] %vm2925, 0.0
    %2936 = vst.msk [vmem:[#allocation2 + $0x48] sm:$0x3] %vm2927, 0.0
    %2937 = vst.msk [vmem:[#allocation2 + $0x50] sm:$0xff] %vm2925, 0.0
    %2938 = vst.msk [vmem:[#allocation2 + $0x58] sm:$0x3] %vm2927, 0.0
    %2939 = vst.msk [vmem:[#allocation2 + $0x60] sm:$0xff] %vm2925, 0.0
    %2940 = vst.msk [vmem:[#allocation2 + $0x68] sm:$0x3] %vm2927, 0.0
    %2941 = vst.msk [vmem:[#allocation2 + $0x70] sm:$0xff] %vm2925, 0.0
    %2942 = vst.msk [vmem:[#allocation2 + $0x78] sm:$0x3] %vm2927, 0.0
    %2943 = vst.msk [vmem:[#allocation2 + $0x80] sm:$0xff] %vm2925, 0.0
    %2944 = vst.msk [vmem:[#allocation2 + $0x88] sm:$0x3] %vm2927, 0.0
    %2945 = vst.msk [vmem:[#allocation2 + $0x90] sm:$0xff] %vm2925, 0.0
    %2946 = vst.msk [vmem:[#allocation2 + $0x98] sm:$0x3] %vm2927, 0.0
    %2947 = vst.msk [vmem:[#allocation2 + $0xa0] sm:$0xff] %vm2925, 0.0
    %2948 = vst.msk [vmem:[#allocation2 + $0xa8] sm:$0x3] %vm2927, 0.0
    %2949 = vst.msk [vmem:[#allocation2 + $0xb0] sm:$0xff] %vm2925, 0.0
    %2950 = vst.msk [vmem:[#allocation2 + $0xb8] sm:$0x3] %vm2927, 0.0
    %2951 = vst.msk [vmem:[#allocation2 + $0xc0] sm:$0xff] %vm2925, 0.0
    %2952 = vst.msk [vmem:[#allocation2 + $0xc8] sm:$0x3] %vm2927, 0.0
    %2953 = vst.msk [vmem:[#allocation2 + $0xd0] sm:$0xff] %vm2925, 0.0
    %2954 = vst.msk [vmem:[#allocation2 + $0xd8] sm:$0x3] %vm2927, 0.0
    %2955 = vst.msk [vmem:[#allocation2 + $0xe0] sm:$0xff] %vm2925, 0.0
    %2956 = vst.msk [vmem:[#allocation2 + $0xe8] sm:$0x3] %vm2927, 0.0
    %2957 = vst.msk [vmem:[#allocation2 + $0xf0] sm:$0xff] %vm2925, 0.0
    %2958 = vst.msk [vmem:[#allocation2 + $0xf8] sm:$0x3] %vm2927, 0.0
    %2959 = vst.msk [vmem:[#allocation2 + $0x100] sm:$0xff] %vm2925, 0.0
    %2960 = vst.msk [vmem:[#allocation2 + $0x108] sm:$0x3] %vm2927, 0.0
    %2961 = vst.msk [vmem:[#allocation2 + $0x110] sm:$0xff] %vm2925, 0.0
    %2962 = vst.msk [vmem:[#allocation2 + $0x118] sm:$0x3] %vm2927, 0.0
    %2963 = vst.msk [vmem:[#allocation2 + $0x120] sm:$0xff] %vm2925, 0.0
    %2964 = vst.msk [vmem:[#allocation2 + $0x128] sm:$0x3] %vm2927, 0.0
    %2965 = vst.msk [vmem:[#allocation2 + $0x130] sm:$0xff] %vm2925, 0.0
    %2966 = vst.msk [vmem:[#allocation2 + $0x138] sm:$0x3] %vm2927, 0.0
    %v3095 = vlaneseq
    %v3096 = vshrl.u32 %v3095, 7
    %v3097 = vsub.s32 0, %v3096
    %v3098 = vrot.slane %v2797, %v3097
    %v3099 = vlaneseq
    %v3100 = vshrl.u32 %v3099, 7
    %v3101 = vsub.s32 0, %v3100
    %v3102 = vrot.slane %v2798, %v3101
    %v3103 = vlaneseq
    %v3104 = vshrl.u32 %v3103, 7
    %v3105 = vsub.s32 0, %v3104
    %v3106 = vrot.slane %v2799, %v3105
    %v3107 = vlaneseq
    %v3108 = vshrl.u32 %v3107, 7
    %v3109 = vsub.s32 0, %v3108
    %v3110 = vrot.slane %v2800, %v3109
    %v3111 = vlaneseq
    %v3112 = vshrl.u32 %v3111, 7
    %v3113 = vsub.s32 0, %v3112
    %v3114 = vrot.slane %v2801, %v3113
    %v3115 = vlaneseq
    %v3116 = vshrl.u32 %v3115, 7
    %v3117 = vsub.s32 0, %v3116
    %v3118 = vrot.slane %v2802, %v3117
    %v3119 = vlaneseq
    %v3120 = vshrl.u32 %v3119, 7
    %v3121 = vsub.s32 0, %v3120
    %v3122 = vrot.slane %v2803, %v3121
    %v3123 = vlaneseq
    %v3124 = vshrl.u32 %v3123, 7
    %v3125 = vsub.s32 0, %v3124
    %v3126 = vrot.slane %v2804, %v3125
    %v3127 = vlaneseq
    %v3128 = vshrl.u32 %v3127, 7
    %v3129 = vsub.s32 0, %v3128
    %v3130 = vrot.slane %v2805, %v3129
    %v3131 = vlaneseq
    %v3132 = vshrl.u32 %v3131, 7
    %v3133 = vsub.s32 0, %v3132
    %v3134 = vrot.slane %v2806, %v3133
    %v3135 = vlaneseq
    %v3136 = vshrl.u32 %v3135, 7
    %v3137 = vsub.s32 0, %v3136
    %v3138 = vrot.slane %v2807, %v3137
    %v3139 = vlaneseq
    %v3140 = vshrl.u32 %v3139, 7
    %v3141 = vsub.s32 0, %v3140
    %v3142 = vrot.slane %v2808, %v3141
    %v3143 = vlaneseq
    %v3144 = vshrl.u32 %v3143, 7
    %v3145 = vsub.s32 0, %v3144
    %v3146 = vrot.slane %v2809, %v3145
    %v3147 = vlaneseq
    %v3148 = vshrl.u32 %v3147, 7
    %v3149 = vsub.s32 0, %v3148
    %v3150 = vrot.slane %v2810, %v3149
    %v3151 = vlaneseq
    %v3152 = vshrl.u32 %v3151, 7
    %v3153 = vsub.s32 0, %v3152
    %v3154 = vrot.slane %v2811, %v3153
    %v3155 = vlaneseq
    %v3156 = vshrl.u32 %v3155, 7
    %v3157 = vsub.s32 0, %v3156
    %v3158 = vrot.slane %v2812, %v3157
    %v3159 = vlaneseq
    %v3160 = vshrl.u32 %v3159, 7
    %v3161 = vsub.s32 0, %v3160
    %v3162 = vrot.slane %v2813, %v3161
    %v3163 = vlaneseq
    %v3164 = vshrl.u32 %v3163, 7
    %v3165 = vsub.s32 0, %v3164
    %v3166 = vrot.slane %v2814, %v3165
    %v3167 = vlaneseq
    %v3168 = vshrl.u32 %v3167, 7
    %v3169 = vsub.s32 0, %v3168
    %v3170 = vrot.slane %v2815, %v3169
    %v3171 = vlaneseq
    %v3172 = vshrl.u32 %v3171, 7
    %v3173 = vsub.s32 0, %v3172
    %v3174 = vrot.slane %v2816, %v3173
    %v3175 = vlaneseq
    %v3176 = vshrl.u32 %v3175, 7
    %v3177 = vsub.s32 0, %v3176
    %v3178 = vrot.slane %v2817, %v3177
    %v3179 = vlaneseq
    %v3180 = vshrl.u32 %v3179, 7
    %v3181 = vsub.s32 0, %v3180
    %v3182 = vrot.slane %v2818, %v3181
    %v3183 = vlaneseq
    %v3184 = vshrl.u32 %v3183, 7
    %v3185 = vsub.s32 0, %v3184
    %v3186 = vrot.slane %v2819, %v3185
    %v3187 = vlaneseq
    %v3188 = vshrl.u32 %v3187, 7
    %v3189 = vsub.s32 0, %v3188
    %v3190 = vrot.slane %v2820, %v3189
    %v3191 = vlaneseq
    %v3192 = vshrl.u32 %v3191, 7
    %v3193 = vsub.s32 0, %v3192
    %v3194 = vrot.slane %v2821, %v3193
    %v3195 = vlaneseq
    %v3196 = vshrl.u32 %v3195, 7
    %v3197 = vsub.s32 0, %v3196
    %v3198 = vrot.slane %v2822, %v3197
    %v3199 = vlaneseq
    %v3200 = vshrl.u32 %v3199, 7
    %v3201 = vsub.s32 0, %v3200
    %v3202 = vrot.slane %v2823, %v3201
    %v3203 = vlaneseq
    %v3204 = vshrl.u32 %v3203, 7
    %v3205 = vsub.s32 0, %v3204
    %v3206 = vrot.slane %v2824, %v3205
    %v3207 = vlaneseq
    %v3208 = vshrl.u32 %v3207, 7
    %v3209 = vsub.s32 0, %v3208
    %v3210 = vrot.slane %v2825, %v3209
    %v3211 = vlaneseq
    %v3212 = vshrl.u32 %v3211, 7
    %v3213 = vsub.s32 0, %v3212
    %v3214 = vrot.slane %v2826, %v3213
    %v3215 = vlaneseq
    %v3216 = vshrl.u32 %v3215, 7
    %v3217 = vsub.s32 0, %v3216
    %v3218 = vrot.slane %v2827, %v3217
    %v3219 = vlaneseq
    %v3220 = vshrl.u32 %v3219, 7
    %v3221 = vsub.s32 0, %v3220
    %v3222 = vrot.slane %v2828, %v3221
    %v3223 = vlaneseq
    %v3224 = vshrl.u32 %v3223, 7
    %v3225 = vsub.s32 0, %v3224
    %v3226 = vrot.slane %v2829, %v3225
    %v3227 = vlaneseq
    %v3228 = vshrl.u32 %v3227, 7
    %v3229 = vsub.s32 0, %v3228
    %v3230 = vrot.slane %v2830, %v3229
    %v3231 = vlaneseq
    %v3232 = vshrl.u32 %v3231, 7
    %v3233 = vsub.s32 0, %v3232
    %v3234 = vrot.slane %v2831, %v3233
    %v3235 = vlaneseq
    %v3236 = vshrl.u32 %v3235, 7
    %v3237 = vsub.s32 0, %v3236
    %v3238 = vrot.slane %v2832, %v3237
    %v3239 = vlaneseq
    %v3240 = vshrl.u32 %v3239, 7
    %v3241 = vsub.s32 0, %v3240
    %v3242 = vrot.slane %v2833, %v3241
    %v3243 = vlaneseq
    %v3244 = vshrl.u32 %v3243, 7
    %v3245 = vsub.s32 0, %v3244
    %v3246 = vrot.slane %v2834, %v3245
    %v3247 = vlaneseq
    %v3248 = vshrl.u32 %v3247, 7
    %v3249 = vsub.s32 0, %v3248
    %v3250 = vrot.slane %v2835, %v3249
    %v3251 = vlaneseq
    %v3252 = vshrl.u32 %v3251, 7
    %v3253 = vsub.s32 0, %v3252
    %v3254 = vrot.slane %v2836, %v3253
    %v3255 = vlaneseq
    %v3256 = vshrl.u32 %v3255, 7
    %v3257 = vsub.s32 0, %v3256
    %v3258 = vrot.slane %v2837, %v3257
    %v3259 = vlaneseq
    %v3260 = vshrl.u32 %v3259, 7
    %v3261 = vsub.s32 0, %v3260
    %v3262 = vrot.slane %v2838, %v3261
    %v3263 = vlaneseq
    %v3264 = vshrl.u32 %v3263, 7
    %v3265 = vsub.s32 0, %v3264
    %v3266 = vrot.slane %v2839, %v3265
    %v3267 = vlaneseq
    %v3268 = vshrl.u32 %v3267, 7
    %v3269 = vsub.s32 0, %v3268
    %v3270 = vrot.slane %v2840, %v3269
    %v3271 = vlaneseq
    %v3272 = vshrl.u32 %v3271, 7
    %v3273 = vsub.s32 0, %v3272
    %v3274 = vrot.slane %v2841, %v3273
    %v3275 = vlaneseq
    %v3276 = vshrl.u32 %v3275, 7
    %v3277 = vsub.s32 0, %v3276
    %v3278 = vrot.slane %v2842, %v3277
    %v3279 = vlaneseq
    %v3280 = vshrl.u32 %v3279, 7
    %v3281 = vsub.s32 0, %v3280
    %v3282 = vrot.slane %v2843, %v3281
    %v3283 = vlaneseq
    %v3284 = vshrl.u32 %v3283, 7
    %v3285 = vsub.s32 0, %v3284
    %v3286 = vrot.slane %v2844, %v3285
    %v3287 = vlaneseq
    %v3288 = vshrl.u32 %v3287, 7
    %v3289 = vsub.s32 0, %v3288
    %v3290 = vrot.slane %v2845, %v3289
    %v3291 = vlaneseq
    %v3292 = vshrl.u32 %v3291, 7
    %v3293 = vsub.s32 0, %v3292
    %v3294 = vrot.slane %v2846, %v3293
    %v3295 = vlaneseq
    %v3296 = vshrl.u32 %v3295, 7
    %v3297 = vsub.s32 0, %v3296
    %v3298 = vrot.slane %v2847, %v3297
    %v3299 = vlaneseq
    %v3300 = vshrl.u32 %v3299, 7
    %v3301 = vsub.s32 0, %v3300
    %v3302 = vrot.slane %v2848, %v3301
    %v3303 = vlaneseq
    %v3304 = vshrl.u32 %v3303, 7
    %v3305 = vsub.s32 0, %v3304
    %v3306 = vrot.slane %v2849, %v3305
    %v3307 = vlaneseq
    %v3308 = vshrl.u32 %v3307, 7
    %v3309 = vsub.s32 0, %v3308
    %v3310 = vrot.slane %v2850, %v3309
    %v3311 = vlaneseq
    %v3312 = vshrl.u32 %v3311, 7
    %v3313 = vsub.s32 0, %v3312
    %v3314 = vrot.slane %v2851, %v3313
    %v3315 = vlaneseq
    %v3316 = vshrl.u32 %v3315, 7
    %v3317 = vsub.s32 0, %v3316
    %v3318 = vrot.slane %v2852, %v3317
    %v3319 = vlaneseq
    %v3320 = vshrl.u32 %v3319, 7
    %v3321 = vsub.s32 0, %v3320
    %v3322 = vrot.slane %v2853, %v3321
    %v3323 = vlaneseq
    %v3324 = vshrl.u32 %v3323, 7
    %v3325 = vsub.s32 0, %v3324
    %v3326 = vrot.slane %v2854, %v3325
    %v3327 = vlaneseq
    %v3328 = vshrl.u32 %v3327, 7
    %v3329 = vsub.s32 0, %v3328
    %v3330 = vrot.slane %v2855, %v3329
    %v3331 = vlaneseq
    %v3332 = vshrl.u32 %v3331, 7
    %v3333 = vsub.s32 0, %v3332
    %v3334 = vrot.slane %v2856, %v3333
    %v3335 = vlaneseq
    %v3336 = vshrl.u32 %v3335, 7
    %v3337 = vsub.s32 0, %v3336
    %v3338 = vrot.slane %v2857, %v3337
    %v3339 = vlaneseq
    %v3340 = vshrl.u32 %v3339, 7
    %v3341 = vsub.s32 0, %v3340
    %v3342 = vrot.slane %v2858, %v3341
    %v3343 = vlaneseq
    %v3344 = vshrl.u32 %v3343, 7
    %v3345 = vsub.s32 0, %v3344
    %v3346 = vrot.slane %v2859, %v3345
    %v3347 = vlaneseq
    %v3348 = vshrl.u32 %v3347, 7
    %v3349 = vsub.s32 0, %v3348
    %v3350 = vrot.slane %v2860, %v3349
    %v3351 = vlaneseq
    %v3352 = vshrl.u32 %v3351, 7
    %v3353 = vsub.s32 0, %v3352
    %v3354 = vrot.slane %v2861, %v3353
    %v3355 = vlaneseq
    %v3356 = vshrl.u32 %v3355, 7
    %v3357 = vsub.s32 0, %v3356
    %v3358 = vrot.slane %v2862, %v3357
    %v3359 = vlaneseq
    %v3360 = vshrl.u32 %v3359, 7
    %v3361 = vsub.s32 0, %v3360
    %v3362 = vrot.slane %v2863, %v3361
    %v3363 = vlaneseq
    %v3364 = vshrl.u32 %v3363, 7
    %v3365 = vsub.s32 0, %v3364
    %v3366 = vrot.slane %v2864, %v3365
    %v3367 = vlaneseq
    %v3368 = vshrl.u32 %v3367, 7
    %v3369 = vsub.s32 0, %v3368
    %v3370 = vrot.slane %v2865, %v3369
    %v3371 = vlaneseq
    %v3372 = vshrl.u32 %v3371, 7
    %v3373 = vsub.s32 0, %v3372
    %v3374 = vrot.slane %v2866, %v3373
    %v3375 = vlaneseq
    %v3376 = vshrl.u32 %v3375, 7
    %v3377 = vsub.s32 0, %v3376
    %v3378 = vrot.slane %v2867, %v3377
    %v3379 = vlaneseq
    %v3380 = vshrl.u32 %v3379, 7
    %v3381 = vsub.s32 0, %v3380
    %v3382 = vrot.slane %v2868, %v3381
    %v3383 = vlaneseq
    %v3384 = vshrl.u32 %v3383, 7
    %v3385 = vsub.s32 0, %v3384
    %v3386 = vrot.slane %v2869, %v3385
    %v3387 = vlaneseq
    %v3388 = vshrl.u32 %v3387, 7
    %v3389 = vsub.s32 0, %v3388
    %v3390 = vrot.slane %v2870, %v3389
    %v3391 = vlaneseq
    %v3392 = vshrl.u32 %v3391, 7
    %v3393 = vsub.s32 0, %v3392
    %v3394 = vrot.slane %v2871, %v3393
    %v3395 = vlaneseq
    %v3396 = vshrl.u32 %v3395, 7
    %v3397 = vsub.s32 0, %v3396
    %v3398 = vrot.slane %v2872, %v3397
    %v3399 = vlaneseq
    %v3400 = vshrl.u32 %v3399, 7
    %v3401 = vsub.s32 0, %v3400
    %v3402 = vrot.slane %v2873, %v3401
    %v3403 = vlaneseq
    %v3404 = vshrl.u32 %v3403, 7
    %v3405 = vsub.s32 0, %v3404
    %v3406 = vrot.slane %v2874, %v3405
    %v3407 = vlaneseq
    %v3408 = vshrl.u32 %v3407, 7
    %v3409 = vsub.s32 0, %v3408
    %v3410 = vrot.slane %v2875, %v3409
    %v3411 = vlaneseq
    %v3412 = vshrl.u32 %v3411, 7
    %v3413 = vsub.s32 0, %v3412
    %v3414 = vrot.slane %v2876, %v3413
    %v3415 = vlaneseq
    %v3416 = vshrl.u32 %v3415, 7
    %v3417 = vsub.s32 0, %v3416
    %v3418 = vrot.slane %v2877, %v3417
    %v3419 = vlaneseq
    %v3420 = vshrl.u32 %v3419, 7
    %v3421 = vsub.s32 0, %v3420
    %v3422 = vrot.slane %v2878, %v3421
    %v3423 = vlaneseq
    %v3424 = vshrl.u32 %v3423, 7
    %v3425 = vsub.s32 0, %v3424
    %v3426 = vrot.slane %v2879, %v3425
    %v3427 = vlaneseq
    %v3428 = vshrl.u32 %v3427, 7
    %v3429 = vsub.s32 0, %v3428
    %v3430 = vrot.slane %v2880, %v3429
    %v3431 = vlaneseq
    %v3432 = vshrl.u32 %v3431, 7
    %v3433 = vsub.s32 0, %v3432
    %v3434 = vrot.slane %v2881, %v3433
    %v3435 = vlaneseq
    %v3436 = vshrl.u32 %v3435, 7
    %v3437 = vsub.s32 0, %v3436
    %v3438 = vrot.slane %v2882, %v3437
    %v3439 = vlaneseq
    %v3440 = vshrl.u32 %v3439, 7
    %v3441 = vsub.s32 0, %v3440
    %v3442 = vrot.slane %v2883, %v3441
    %v3443 = vlaneseq
    %v3444 = vshrl.u32 %v3443, 7
    %v3445 = vsub.s32 0, %v3444
    %v3446 = vrot.slane %v2884, %v3445
    %v3447 = vlaneseq
    %v3448 = vshrl.u32 %v3447, 7
    %v3449 = vsub.s32 0, %v3448
    %v3450 = vrot.slane %v2885, %v3449
    %v3451 = vlaneseq
    %v3452 = vshrl.u32 %v3451, 7
    %v3453 = vsub.s32 0, %v3452
    %v3454 = vrot.slane %v2886, %v3453
    %v3455 = vlaneseq
    %v3456 = vshrl.u32 %v3455, 7
    %v3457 = vsub.s32 0, %v3456
    %v3458 = vrot.slane %v2887, %v3457
    %v3459 = vlaneseq
    %v3460 = vshrl.u32 %v3459, 7
    %v3461 = vsub.s32 0, %v3460
    %v3462 = vrot.slane %v2888, %v3461
    %v3463 = vlaneseq
    %v3464 = vshrl.u32 %v3463, 7
    %v3465 = vsub.s32 0, %v3464
    %v3466 = vrot.slane %v2889, %v3465
    %v3467 = vlaneseq
    %v3468 = vshrl.u32 %v3467, 7
    %v3469 = vsub.s32 0, %v3468
    %v3470 = vrot.slane %v2890, %v3469
    %v3471 = vlaneseq
    %v3472 = vshrl.u32 %v3471, 7
    %v3473 = vsub.s32 0, %v3472
    %v3474 = vrot.slane %v2891, %v3473
    %v3475 = vlaneseq
    %v3476 = vshrl.u32 %v3475, 7
    %v3477 = vsub.s32 0, %v3476
    %v3478 = vrot.slane %v2892, %v3477
    %v3479 = vlaneseq
    %v3480 = vshrl.u32 %v3479, 7
    %v3481 = vsub.s32 0, %v3480
    %v3482 = vrot.slane %v2893, %v3481
    %v3483 = vlaneseq
    %v3484 = vshrl.u32 %v3483, 7
    %v3485 = vsub.s32 0, %v3484
    %v3486 = vrot.slane %v2894, %v3485
    %v3487 = vlaneseq
    %v3488 = vshrl.u32 %v3487, 7
    %v3489 = vsub.s32 0, %v3488
    %v3490 = vrot.slane %v2895, %v3489
    %v3491 = vlaneseq
    %v3492 = vshrl.u32 %v3491, 7
    %v3493 = vsub.s32 0, %v3492
    %v3494 = vrot.slane %v2896, %v3493
    %v3495 = vlaneseq
    %v3496 = vshrl.u32 %v3495, 7
    %v3497 = vsub.s32 0, %v3496
    %v3498 = vrot.slane %v2897, %v3497
    %v3499 = vlaneseq
    %v3500 = vshrl.u32 %v3499, 7
    %v3501 = vsub.s32 0, %v3500
    %v3502 = vrot.slane %v2898, %v3501
    %v3503 = vlaneseq
    %v3504 = vshrl.u32 %v3503, 7
    %v3505 = vsub.s32 0, %v3504
    %v3506 = vrot.slane %v2899, %v3505
    %v3507 = vlaneseq
    %v3508 = vshrl.u32 %v3507, 7
    %v3509 = vsub.s32 0, %v3508
    %v3510 = vrot.slane %v2900, %v3509
    %v3511 = vlaneseq
    %v3512 = vshrl.u32 %v3511, 7
    %v3513 = vsub.s32 0, %v3512
    %v3514 = vrot.slane %v2901, %v3513
    %v3515 = vlaneseq
    %v3516 = vshrl.u32 %v3515, 7
    %v3517 = vsub.s32 0, %v3516
    %v3518 = vrot.slane %v2902, %v3517
    %v3519 = vlaneseq
    %v3520 = vshrl.u32 %v3519, 7
    %v3521 = vsub.s32 0, %v3520
    %v3522 = vrot.slane %v2903, %v3521
    %v3523 = vlaneseq
    %v3524 = vshrl.u32 %v3523, 7
    %v3525 = vsub.s32 0, %v3524
    %v3526 = vrot.slane %v2904, %v3525
    %v3527 = vlaneseq
    %v3528 = vshrl.u32 %v3527, 7
    %v3529 = vsub.s32 0, %v3528
    %v3530 = vrot.slane %v2905, %v3529
    %v3531 = vlaneseq
    %v3532 = vshrl.u32 %v3531, 7
    %v3533 = vsub.s32 0, %v3532
    %v3534 = vrot.slane %v2906, %v3533
    %v3535 = vlaneseq
    %v3536 = vshrl.u32 %v3535, 7
    %v3537 = vsub.s32 0, %v3536
    %v3538 = vrot.slane %v2907, %v3537
    %v3539 = vlaneseq
    %v3540 = vshrl.u32 %v3539, 7
    %v3541 = vsub.s32 0, %v3540
    %v3542 = vrot.slane %v2908, %v3541
    %v3543 = vlaneseq
    %v3544 = vshrl.u32 %v3543, 7
    %v3545 = vsub.s32 0, %v3544
    %v3546 = vrot.slane %v2909, %v3545
    %v3547 = vlaneseq
    %v3548 = vshrl.u32 %v3547, 7
    %v3549 = vsub.s32 0, %v3548
    %v3550 = vrot.slane %v2910, %v3549
    %v3551 = vlaneseq
    %v3552 = vshrl.u32 %v3551, 7
    %v3553 = vsub.s32 0, %v3552
    %v3554 = vrot.slane %v2911, %v3553
    %v3555 = vlaneseq
    %v3556 = vshrl.u32 %v3555, 7
    %v3557 = vsub.s32 0, %v3556
    %v3558 = vrot.slane %v2912, %v3557
    %v3559 = vlaneseq
    %v3560 = vshrl.u32 %v3559, 7
    %v3561 = vsub.s32 0, %v3560
    %v3562 = vrot.slane %v2913, %v3561
    %v3563 = vlaneseq
    %v3564 = vshrl.u32 %v3563, 7
    %v3565 = vsub.s32 0, %v3564
    %v3566 = vrot.slane %v2914, %v3565
    %v3567 = vlaneseq
    %v3568 = vshrl.u32 %v3567, 7
    %v3569 = vsub.s32 0, %v3568
    %v3570 = vrot.slane %v2915, %v3569
    %v3571 = vlaneseq
    %v3572 = vshrl.u32 %v3571, 7
    %v3573 = vsub.s32 0, %v3572
    %v3574 = vrot.slane %v2916, %v3573
    %v3575 = vlaneseq
    %v3576 = vshrl.u32 %v3575, 7
    %v3577 = vsub.s32 0, %v3576
    %v3578 = vrot.slane %v2917, %v3577
    %v3579 = vlaneseq
    %v3580 = vshrl.u32 %v3579, 7
    %v3581 = vsub.s32 0, %v3580
    %v3582 = vrot.slane %v2918, %v3581
    %v3583 = vlaneseq
    %v3584 = vshrl.u32 %v3583, 7
    %v3585 = vsub.s32 0, %v3584
    %v3586 = vrot.slane %v2919, %v3585
    %v3587 = vlaneseq
    %v3588 = vshrl.u32 %v3587, 7
    %v3589 = vsub.s32 0, %v3588
    %v3590 = vrot.slane %v2920, %v3589
    %v3591 = vlaneseq
    %v3592 = vshrl.u32 %v3591, 7
    %v3593 = vsub.s32 0, %v3592
    %v3594 = vrot.slane %v2921, %v3593
    %v3595 = vlaneseq
    %v3596 = vshrl.u32 %v3595, 7
    %v3597 = vsub.s32 0, %v3596
    %v3598 = vrot.slane %v2922, %v3597
    %v3599 = vlaneseq
    %v3600 = vshrl.u32 %v3599, 7
    %v3601 = vsub.s32 0, %v3600
    %v3602 = vrot.slane %v2923, %v3601
    %v3603 = vlaneseq
    %v3604 = vshrl.u32 %v3603, 7
    %v3605 = vsub.s32 0, %v3604
    %v3606 = vrot.slane %v2924, %v3605
    %vm3607 = vcmask 1041409
    %v3608 = vsel %vm3607, %v3102, %v3098
    %vm3609 = vcmask 1042434
    %v3610 = vsel %vm3609, %v3106, %v3608
    %vm3611 = vcmask 1043459
    %v3612 = vsel %vm3611, %v3110, %v3610
    %vm3613 = vcmask 1044484
    %v3614 = vsel %vm3613, %v3114, %v3612
    %vm3615 = vcmask 1045509
    %v3616 = vsel %vm3615, %v3118, %v3614
    %vm3617 = vcmask 1046534
    %v3618 = vsel %vm3617, %v3122, %v3616
    %vm3619 = vcmask 1047559
    %v3620 = vsel %vm3619, %v3126, %v3618
    %v3621 = vsel %vm3607, %v3134, %v3130
    %v3622 = vsel %vm3609, %v3138, %v3621
    %v3623 = vsel %vm3611, %v3142, %v3622
    %v3624 = vsel %vm3613, %v3146, %v3623
    %v3625 = vsel %vm3615, %v3150, %v3624
    %v3626 = vsel %vm3617, %v3154, %v3625
    %v3627 = vsel %vm3619, %v3158, %v3626
    %v3628 = vsel %vm3607, %v3166, %v3162
    %v3629 = vsel %vm3609, %v3170, %v3628
    %v3630 = vsel %vm3611, %v3174, %v3629
    %v3631 = vsel %vm3613, %v3178, %v3630
    %v3632 = vsel %vm3615, %v3182, %v3631
    %v3633 = vsel %vm3617, %v3186, %v3632
    %v3634 = vsel %vm3619, %v3190, %v3633
    %v3635 = vsel %vm3607, %v3198, %v3194
    %v3636 = vsel %vm3609, %v3202, %v3635
    %v3637 = vsel %vm3611, %v3206, %v3636
    %v3638 = vsel %vm3613, %v3210, %v3637
    %v3639 = vsel %vm3615, %v3214, %v3638
    %v3640 = vsel %vm3617, %v3218, %v3639
    %v3641 = vsel %vm3619, %v3222, %v3640
    %v3642 = vsel %vm3607, %v3230, %v3226
    %v3643 = vsel %vm3609, %v3234, %v3642
    %v3644 = vsel %vm3611, %v3238, %v3643
    %v3645 = vsel %vm3613, %v3242, %v3644
    %v3646 = vsel %vm3615, %v3246, %v3645
    %v3647 = vsel %vm3617, %v3250, %v3646
    %v3648 = vsel %vm3619, %v3254, %v3647
    %v3649 = vsel %vm3607, %v3262, %v3258
    %v3650 = vsel %vm3609, %v3266, %v3649
    %v3651 = vsel %vm3611, %v3270, %v3650
    %v3652 = vsel %vm3613, %v3274, %v3651
    %v3653 = vsel %vm3615, %v3278, %v3652
    %v3654 = vsel %vm3617, %v3282, %v3653
    %v3655 = vsel %vm3619, %v3286, %v3654
    %v3656 = vsel %vm3607, %v3294, %v3290
    %v3657 = vsel %vm3609, %v3298, %v3656
    %v3658 = vsel %vm3611, %v3302, %v3657
    %v3659 = vsel %vm3613, %v3306, %v3658
    %v3660 = vsel %vm3615, %v3310, %v3659
    %v3661 = vsel %vm3617, %v3314, %v3660
    %v3662 = vsel %vm3619, %v3318, %v3661
    %v3663 = vsel %vm3607, %v3326, %v3322
    %v3664 = vsel %vm3609, %v3330, %v3663
    %v3665 = vsel %vm3611, %v3334, %v3664
    %v3666 = vsel %vm3613, %v3338, %v3665
    %v3667 = vsel %vm3615, %v3342, %v3666
    %v3668 = vsel %vm3617, %v3346, %v3667
    %v3669 = vsel %vm3619, %v3350, %v3668
    %v3670 = vsel %vm3607, %v3358, %v3354
    %v3671 = vsel %vm3609, %v3362, %v3670
    %v3672 = vsel %vm3611, %v3366, %v3671
    %v3673 = vsel %vm3613, %v3370, %v3672
    %v3674 = vsel %vm3615, %v3374, %v3673
    %v3675 = vsel %vm3617, %v3378, %v3674
    %v3676 = vsel %vm3619, %v3382, %v3675
    %v3677 = vsel %vm3607, %v3390, %v3386
    %v3678 = vsel %vm3609, %v3394, %v3677
    %v3679 = vsel %vm3611, %v3398, %v3678
    %v3680 = vsel %vm3613, %v3402, %v3679
    %v3681 = vsel %vm3615, %v3406, %v3680
    %v3682 = vsel %vm3617, %v3410, %v3681
    %v3683 = vsel %vm3619, %v3414, %v3682
    %v3684 = vsel %vm3607, %v3422, %v3418
    %v3685 = vsel %vm3609, %v3426, %v3684
    %v3686 = vsel %vm3611, %v3430, %v3685
    %v3687 = vsel %vm3613, %v3434, %v3686
    %v3688 = vsel %vm3615, %v3438, %v3687
    %v3689 = vsel %vm3617, %v3442, %v3688
    %v3690 = vsel %vm3619, %v3446, %v3689
    %v3691 = vsel %vm3607, %v3454, %v3450
    %v3692 = vsel %vm3609, %v3458, %v3691
    %v3693 = vsel %vm3611, %v3462, %v3692
    %v3694 = vsel %vm3613, %v3466, %v3693
    %v3695 = vsel %vm3615, %v3470, %v3694
    %v3696 = vsel %vm3617, %v3474, %v3695
    %v3697 = vsel %vm3619, %v3478, %v3696
    %v3698 = vsel %vm3607, %v3486, %v3482
    %v3699 = vsel %vm3609, %v3490, %v3698
    %v3700 = vsel %vm3611, %v3494, %v3699
    %v3701 = vsel %vm3613, %v3498, %v3700
    %v3702 = vsel %vm3615, %v3502, %v3701
    %v3703 = vsel %vm3617, %v3506, %v3702
    %v3704 = vsel %vm3619, %v3510, %v3703
    %v3705 = vsel %vm3607, %v3518, %v3514
    %v3706 = vsel %vm3609, %v3522, %v3705
    %v3707 = vsel %vm3611, %v3526, %v3706
    %v3708 = vsel %vm3613, %v3530, %v3707
    %v3709 = vsel %vm3615, %v3534, %v3708
    %v3710 = vsel %vm3617, %v3538, %v3709
    %v3711 = vsel %vm3619, %v3542, %v3710
    %v3712 = vsel %vm3607, %v3550, %v3546
    %v3713 = vsel %vm3609, %v3554, %v3712
    %v3714 = vsel %vm3611, %v3558, %v3713
    %v3715 = vsel %vm3613, %v3562, %v3714
    %v3716 = vsel %vm3615, %v3566, %v3715
    %v3717 = vsel %vm3617, %v3570, %v3716
    %v3718 = vsel %vm3619, %v3574, %v3717
    %v3719 = vsel %vm3607, %v3582, %v3578
    %v3720 = vsel %vm3609, %v3586, %v3719
    %v3721 = vsel %vm3611, %v3590, %v3720
    %v3722 = vsel %vm3613, %v3594, %v3721
    %v3723 = vsel %vm3615, %v3598, %v3722
    %v3724 = vsel %vm3617, %v3602, %v3723
    %v3725 = vsel %vm3619, %v3606, %v3724
    %s3742 = scalar_lea.vmem [#allocation2], 16
    %3743 = vst.msk [vmem:[%s3742 + $0x1] sm:$0xff] %vm2925, %v3620
    %3744 = vst.msk [vmem:[%s3742 + $0x11] sm:$0xff] %vm2925, %v3627
    %3745 = vst.msk [vmem:[%s3742 + $0x21] sm:$0xff] %vm2925, %v3634
    %3746 = vst.msk [vmem:[%s3742 + $0x31] sm:$0xff] %vm2925, %v3641
    %3747 = vst.msk [vmem:[%s3742 + $0x41] sm:$0xff] %vm2925, %v3648
    %3748 = vst.msk [vmem:[%s3742 + $0x51] sm:$0xff] %vm2925, %v3655
    %3749 = vst.msk [vmem:[%s3742 + $0x61] sm:$0xff] %vm2925, %v3662
    %3750 = vst.msk [vmem:[%s3742 + $0x71] sm:$0xff] %vm2925, %v3669
    %3751 = vst.msk [vmem:[%s3742 + $0xa1] sm:$0xff] %vm2925, %v3676
    %3752 = vst.msk [vmem:[%s3742 + $0xb1] sm:$0xff] %vm2925, %v3683
    %3753 = vst.msk [vmem:[%s3742 + $0xc1] sm:$0xff] %vm2925, %v3690
    %3754 = vst.msk [vmem:[%s3742 + $0xd1] sm:$0xff] %vm2925, %v3697
    %3755 = vst.msk [vmem:[%s3742 + $0xe1] sm:$0xff] %vm2925, %v3704
    %3756 = vst.msk [vmem:[%s3742 + $0xf1] sm:$0xff] %vm2925, %v3711
    %3757 = vst.msk [vmem:[%s3742 + $0x101] sm:$0xff] %vm2925, %v3718
    %3758 = vst.msk [vmem:[%s3742 + $0x111] sm:$0xff] %vm2925, %v3725
    %v3759 = vld [vmem:[#allocation2] sm:$0xff]
    %v3760 = vld [vmem:[#allocation2 + $0x8] sm:$0x3]
    %v3761 = vld [vmem:[#allocation2 + $0x10] sm:$0xff]
    %v3762 = vld [vmem:[#allocation2 + $0x18] sm:$0x3]
    %v3763 = vld [vmem:[#allocation2 + $0x20] sm:$0xff]
    %v3764 = vld [vmem:[#allocation2 + $0x28] sm:$0x3]
    %v3765 = vld [vmem:[#allocation2 + $0x30] sm:$0xff]
    %v3766 = vld [vmem:[#allocation2 + $0x38] sm:$0x3]
    %v3767 = vld [vmem:[#allocation2 + $0x40] sm:$0xff]
    %v3768 = vld [vmem:[#allocation2 + $0x48] sm:$0x3]
    %v3769 = vld [vmem:[#allocation2 + $0x50] sm:$0xff]
    %v3770 = vld [vmem:[#allocation2 + $0x58] sm:$0x3]
    %v3771 = vld [vmem:[#allocation2 + $0x60] sm:$0xff]
    %v3772 = vld [vmem:[#allocation2 + $0x68] sm:$0x3]
    %v3773 = vld [vmem:[#allocation2 + $0x70] sm:$0xff]
    %v3774 = vld [vmem:[#allocation2 + $0x78] sm:$0x3]
    %v3775 = vld [vmem:[#allocation2 + $0x80] sm:$0xff]
    %v3776 = vld [vmem:[#allocation2 + $0x88] sm:$0x3]
    %v3777 = vld [vmem:[#allocation2 + $0x90] sm:$0xff]
    %v3778 = vld [vmem:[#allocation2 + $0x98] sm:$0x3]
    %v3779 = vld [vmem:[#allocation2 + $0xa0] sm:$0xff]
    %v3780 = vld [vmem:[#allocation2 + $0xa8] sm:$0x3]
    %v3781 = vld [vmem:[#allocation2 + $0xb0] sm:$0xff]
    %v3782 = vld [vmem:[#allocation2 + $0xb8] sm:$0x3]
    %v3783 = vld [vmem:[#allocation2 + $0xc0] sm:$0xff]
    %v3784 = vld [vmem:[#allocation2 + $0xc8] sm:$0x3]
    %v3785 = vld [vmem:[#allocation2 + $0xd0] sm:$0xff]
    %v3786 = vld [vmem:[#allocation2 + $0xd8] sm:$0x3]
    %v3787 = vld [vmem:[#allocation2 + $0xe0] sm:$0xff]
    %v3788 = vld [vmem:[#allocation2 + $0xe8] sm:$0x3]
    %v3789 = vld [vmem:[#allocation2 + $0xf0] sm:$0xff]
    %v3790 = vld [vmem:[#allocation2 + $0xf8] sm:$0x3]
    %v3791 = vld [vmem:[#allocation2 + $0x100] sm:$0xff]
    %v3792 = vld [vmem:[#allocation2 + $0x108] sm:$0x3]
    %v3793 = vld [vmem:[#allocation2 + $0x110] sm:$0xff]
    %v3794 = vld [vmem:[#allocation2 + $0x118] sm:$0x3]
    %v3795 = vld [vmem:[#allocation2 + $0x120] sm:$0xff]
    %v3796 = vld [vmem:[#allocation2 + $0x128] sm:$0x3]
    %v3797 = vld [vmem:[#allocation2 + $0x130] sm:$0xff]
    %v3798 = vld [vmem:[#allocation2 + $0x138] sm:$0x3]
    %v3799 = vld [vmem:[%s3] sm:$0xf]
    %v3800 = vld [vmem:[%s3 + $0x4] sm:$0xf]
    %v3801 = vld [vmem:[%s3 + $0x8] sm:$0xf]
    %v3802 = vld [vmem:[%s3 + $0xc] sm:$0xf]
    %v3803 = vld [vmem:[%s3 + $0x10] sm:$0xf]
    %v3804 = vld [vmem:[%s3 + $0x14] sm:$0xf]
    %v3805 = vld [vmem:[%s3 + $0x18] sm:$0xf]
    %v3806 = vld [vmem:[%s3 + $0x1c] sm:$0xf]
    %v3807 = vld [vmem:[%s3 + $0x20] sm:$0xf]
    %v3808 = vpack.c.bf16 %v3761, %v3759
    %v3809 = vpack.c.bf16 %v3765, %v3763
    %v3810 = vpack.c.bf16 %v3769, %v3767
    %v3811 = vpack.c.bf16 %v3773, %v3771
    %v3812 = vpack.c.bf16 %v3781, %v3779
    %v3813 = vpack.c.bf16 %v3785, %v3783
    %v3814 = vpack.c.bf16 %v3789, %v3787
    %v3815 = vpack.c.bf16 %v3793, %v3791
    %vm3848 = vcmask 1046528
    %v3849 = vrot.slane %v3759, 1
    %v3850 = vrot.slane %v3760, 1
    %v3851 = vsel %vm3848, %v3849, %v3850
    %v3852 = vrot.slane %v3761, 1
    %v3853 = vrot.slane %v3762, 1
    %v3854 = vsel %vm3848, %v3852, %v3853
    %v3855 = vrot.slane %v3763, 1
    %v3856 = vrot.slane %v3764, 1
    %v3857 = vsel %vm3848, %v3855, %v3856
    %v3858 = vrot.slane %v3765, 1
    %v3859 = vrot.slane %v3766, 1
    %v3860 = vsel %vm3848, %v3858, %v3859
    %v3861 = vrot.slane %v3767, 1
    %v3862 = vrot.slane %v3768, 1
    %v3863 = vsel %vm3848, %v3861, %v3862
    %v3864 = vrot.slane %v3769, 1
    %v3865 = vrot.slane %v3770, 1
    %v3866 = vsel %vm3848, %v3864, %v3865
    %v3867 = vrot.slane %v3771, 1
    %v3868 = vrot.slane %v3772, 1
    %v3869 = vsel %vm3848, %v3867, %v3868
    %v3870 = vrot.slane %v3773, 1
    %v3871 = vrot.slane %v3774, 1
    %v3872 = vsel %vm3848, %v3870, %v3871
    %v3873 = vrot.slane %v3779, 1
    %v3874 = vrot.slane %v3780, 1
    %v3875 = vsel %vm3848, %v3873, %v3874
    %v3876 = vrot.slane %v3781, 1
    %v3877 = vrot.slane %v3782, 1
    %v3878 = vsel %vm3848, %v3876, %v3877
    %v3879 = vrot.slane %v3783, 1
    %v3880 = vrot.slane %v3784, 1
    %v3881 = vsel %vm3848, %v3879, %v3880
    %v3882 = vrot.slane %v3785, 1
    %v3883 = vrot.slane %v3786, 1
    %v3884 = vsel %vm3848, %v3882, %v3883
    %v3885 = vrot.slane %v3787, 1
    %v3886 = vrot.slane %v3788, 1
    %v3887 = vsel %vm3848, %v3885, %v3886
    %v3888 = vrot.slane %v3789, 1
    %v3889 = vrot.slane %v3790, 1
    %v3890 = vsel %vm3848, %v3888, %v3889
    %v3891 = vrot.slane %v3791, 1
    %v3892 = vrot.slane %v3792, 1
    %v3893 = vsel %vm3848, %v3891, %v3892
    %v3894 = vrot.slane %v3793, 1
    %v3895 = vrot.slane %v3794, 1
    %v3896 = vsel %vm3848, %v3894, %v3895
    %v3913 = vpack.c.bf16 %v3854, %v3851
    %v3914 = vpack.c.bf16 %v3860, %v3857
    %v3915 = vpack.c.bf16 %v3866, %v3863
    %v3916 = vpack.c.bf16 %v3872, %v3869
    %v3917 = vpack.c.bf16 %v3878, %v3875
    %v3918 = vpack.c.bf16 %v3884, %v3881
    %v3919 = vpack.c.bf16 %v3890, %v3887
    %v3920 = vpack.c.bf16 %v3896, %v3893
    %v3922 = vsel %vm2925, %v3913, 0
    %v3925 = vsel %vm2925, %v3914, 0
    %v3928 = vsel %vm2925, %v3915, 0
    %v3931 = vsel %vm2925, %v3916, 0
    %v3934 = vsel %vm2925, %v3917, 0
    %v3937 = vsel %vm2925, %v3918, 0
    %v3940 = vsel %vm2925, %v3919, 0
    %v3943 = vsel %vm2925, %v3920, 0
    %vm3945 = vcmask 1043456
    %v3947 = vsel %vm3945, %v3800, 0
    %3949 = vmatprep.subr.bf16.mxu0 0
    %3950 = vmatpush1.bf16.msra.mxu0 0
    %3951 = vmatprep.subr.bf16.mxu0 0
    %3952 = vmatpush1.bf16.msra.mxu0 0
    %3953 = vmatprep.subr.bf16.mxu0 0
    %3954 = vmatpush1.bf16.msra.mxu0 0
    %3955 = vmatprep.subr.bf16.mxu0 0
    %3956 = vmatpush1.bf16.msra.mxu0 0
    %3957 = vmatprep.subr.bf16.mxu0 0
    %3958 = vmatpush1.bf16.msra.mxu0 0
    %3959 = vmatprep.subr.bf16.mxu0 0
    %3960 = vmatpush1.bf16.msra.mxu0 0
    %3961 = vmatprep.subr.bf16.mxu0 0
    %3962 = vmatpush1.bf16.msra.mxu0 0
    %3963 = vmatprep.subr.bf16.mxu0 0
    %3964 = vmatpush1.bf16.msra.mxu0 %v3947
    %3965 = vmatprep.subr.bf16.mxu0 0
    %3966 = vmatpush2.bf16.msra.mxu0 0
    %3967 = vmatprep.subr.bf16.mxu0 0
    %3968 = vmatpush2.bf16.msra.mxu0 0
    %3969 = vmatprep.subr.bf16.mxu0 0
    %3970 = vmatpush2.bf16.msra.mxu0 0
    %3971 = vmatprep.subr.bf16.mxu0 0
    %3972 = vmatpush2.bf16.msra.mxu0 0
    %3973 = vmatprep.subr.bf16.mxu0 0
    %3974 = vmatpush2.bf16.msra.mxu0 0
    %3975 = vmatprep.subr.bf16.mxu0 0
    %3976 = vmatpush2.bf16.msra.mxu0 0
    %3977 = vmatprep.subr.bf16.mxu0 0
    %3978 = vmatpush2.bf16.msra.mxu0 0
    %3979 = vmatprep.subr.bf16.mxu0 0
    %3980 = vmatpush2.bf16.msra.mxu0 0
    %3981 = vmatprep.mubr.bf16.mxu0 0
    %3982 = vmatmul.mubr.bf16.gmra.mxu0 %v3922
    %v3983 = vpop.f32.mrf.mxu0
    %v3984 = vadd.f32 0.0, %v3983
    %v3985 = vpop.f32.mrf.mxu0
    %v3986 = vpop.f32.mrf.mxu0
    %v3987 = vadd.f32 0.0, %v3986
    %v3988 = vpop.f32.mrf.mxu0
    %3989 = vmatprep.mubr.bf16.mxu0 0
    %3990 = vmatmul.mubr.bf16.gmra.mxu0 %v3925
    %v3991 = vpop.f32.mrf.mxu0
    %v3992 = vadd.f32 0.0, %v3991
    %v3993 = vpop.f32.mrf.mxu0
    %v3994 = vpop.f32.mrf.mxu0
    %v3995 = vadd.f32 0.0, %v3994
    %v3996 = vpop.f32.mrf.mxu0
    %3997 = vmatprep.mubr.bf16.mxu0 0
    %3998 = vmatmul.mubr.bf16.gmra.mxu0 %v3928
    %v3999 = vpop.f32.mrf.mxu0
    %v4000 = vadd.f32 0.0, %v3999
    %v4001 = vpop.f32.mrf.mxu0
    %v4002 = vpop.f32.mrf.mxu0
    %v4003 = vadd.f32 0.0, %v4002
    %v4004 = vpop.f32.mrf.mxu0
    %4005 = vmatprep.mubr.bf16.mxu0 0
    %4006 = vmatmul.mubr.bf16.gmra.mxu0 %v3931
    %v4007 = vpop.f32.mrf.mxu0
    %v4008 = vadd.f32 0.0, %v4007
    %v4009 = vpop.f32.mrf.mxu0
    %v4010 = vpop.f32.mrf.mxu0
    %v4011 = vadd.f32 0.0, %v4010
    %v4012 = vpop.f32.mrf.mxu0
    %4013 = vmatprep.mubr.bf16.mxu0 0
    %4014 = vmatmul.mubr.bf16.gmra.mxu0 %v3934
    %v4015 = vpop.f32.mrf.mxu0
    %v4016 = vadd.f32 0.0, %v4015
    %v4017 = vpop.f32.mrf.mxu0
    %v4018 = vpop.f32.mrf.mxu0
    %v4019 = vadd.f32 0.0, %v4018
    %v4020 = vpop.f32.mrf.mxu0
    %4021 = vmatprep.mubr.bf16.mxu0 0
    %4022 = vmatmul.mubr.bf16.gmra.mxu0 %v3937
    %v4023 = vpop.f32.mrf.mxu0
    %v4024 = vadd.f32 0.0, %v4023
    %v4025 = vpop.f32.mrf.mxu0
    %v4026 = vpop.f32.mrf.mxu0
    %v4027 = vadd.f32 0.0, %v4026
    %v4028 = vpop.f32.mrf.mxu0
    %4029 = vmatprep.mubr.bf16.mxu0 0
    %4030 = vmatmul.mubr.bf16.gmra.mxu0 %v3940
    %v4031 = vpop.f32.mrf.mxu0
    %v4032 = vadd.f32 0.0, %v4031
    %v4033 = vpop.f32.mrf.mxu0
    %v4034 = vpop.f32.mrf.mxu0
    %v4035 = vadd.f32 0.0, %v4034
    %v4036 = vpop.f32.mrf.mxu0
    %4037 = vmatprep.mubr.bf16.mxu0 0
    %4038 = vmatmul.mubr.bf16.gmra.mxu0 %v3943
    %v4039 = vpop.f32.mrf.mxu0
    %v4040 = vadd.f32 0.0, %v4039
    %v4041 = vpop.f32.mrf.mxu0
    %v4042 = vpop.f32.mrf.mxu0
    %v4043 = vadd.f32 0.0, %v4042
    %v4044 = vpop.f32.mrf.mxu0
    %4045 = vdwg.mxu0
    %v4047 = vsel %vm2925, %v3808, 0
    %v4050 = vsel %vm2925, %v3809, 0
    %v4053 = vsel %vm2925, %v3810, 0
    %v4056 = vsel %vm2925, %v3811, 0
    %v4059 = vsel %vm2925, %v3812, 0
    %v4062 = vsel %vm2925, %v3813, 0
    %v4065 = vsel %vm2925, %v3814, 0
    %v4068 = vsel %vm2925, %v3815, 0
    %v4071 = vsel %vm3945, %v3799, 0
    %4073 = vmatprep.subr.bf16.mxu0 0
    %4074 = vmatpush1.bf16.msra.mxu0 0
    %4075 = vmatprep.subr.bf16.mxu0 0
    %4076 = vmatpush1.bf16.msra.mxu0 0
    %4077 = vmatprep.subr.bf16.mxu0 0
    %4078 = vmatpush1.bf16.msra.mxu0 0
    %4079 = vmatprep.subr.bf16.mxu0 0
    %4080 = vmatpush1.bf16.msra.mxu0 0
    %4081 = vmatprep.subr.bf16.mxu0 0
    %4082 = vmatpush1.bf16.msra.mxu0 0
    %4083 = vmatprep.subr.bf16.mxu0 0
    %4084 = vmatpush1.bf16.msra.mxu0 0
    %4085 = vmatprep.subr.bf16.mxu0 0
    %4086 = vmatpush1.bf16.msra.mxu0 0
    %4087 = vmatprep.subr.bf16.mxu0 0
    %4088 = vmatpush1.bf16.msra.mxu0 %v4071
    %4089 = vmatprep.subr.bf16.mxu0 0
    %4090 = vmatpush2.bf16.msra.mxu0 0
    %4091 = vmatprep.subr.bf16.mxu0 0
    %4092 = vmatpush2.bf16.msra.mxu0 0
    %4093 = vmatprep.subr.bf16.mxu0 0
    %4094 = vmatpush2.bf16.msra.mxu0 0
    %4095 = vmatprep.subr.bf16.mxu0 0
    %4096 = vmatpush2.bf16.msra.mxu0 0
    %4097 = vmatprep.subr.bf16.mxu0 0
    %4098 = vmatpush2.bf16.msra.mxu0 0
    %4099 = vmatprep.subr.bf16.mxu0 0
    %4100 = vmatpush2.bf16.msra.mxu0 0
    %4101 = vmatprep.subr.bf16.mxu0 0
    %4102 = vmatpush2.bf16.msra.mxu0 0
    %4103 = vmatprep.subr.bf16.mxu0 0
    %4104 = vmatpush2.bf16.msra.mxu0 0
    %4105 = vmatprep.mubr.bf16.mxu0 0
    %4106 = vmatmul.mubr.bf16.gmra.mxu0 %v4047
    %v4107 = vpop.f32.mrf.mxu0
    %v4108 = vadd.f32 %v3984, %v4107
    %v4109 = vpop.f32.mrf.mxu0
    %v4110 = vpop.f32.mrf.mxu0
    %v4111 = vadd.f32 %v3987, %v4110
    %v4112 = vpop.f32.mrf.mxu0
    %4113 = vmatprep.mubr.bf16.mxu0 0
    %4114 = vmatmul.mubr.bf16.gmra.mxu0 %v4050
    %v4115 = vpop.f32.mrf.mxu0
    %v4116 = vadd.f32 %v3992, %v4115
    %v4117 = vpop.f32.mrf.mxu0
    %v4118 = vpop.f32.mrf.mxu0
    %v4119 = vadd.f32 %v3995, %v4118
    %v4120 = vpop.f32.mrf.mxu0
    %4121 = vmatprep.mubr.bf16.mxu0 0
    %4122 = vmatmul.mubr.bf16.gmra.mxu0 %v4053
    %v4123 = vpop.f32.mrf.mxu0
    %v4124 = vadd.f32 %v4000, %v4123
    %v4125 = vpop.f32.mrf.mxu0
    %v4126 = vpop.f32.mrf.mxu0
    %v4127 = vadd.f32 %v4003, %v4126
    %v4128 = vpop.f32.mrf.mxu0
    %4129 = vmatprep.mubr.bf16.mxu0 0
    %4130 = vmatmul.mubr.bf16.gmra.mxu0 %v4056
    %v4131 = vpop.f32.mrf.mxu0
    %v4132 = vadd.f32 %v4008, %v4131
    %v4133 = vpop.f32.mrf.mxu0
    %v4134 = vpop.f32.mrf.mxu0
    %v4135 = vadd.f32 %v4011, %v4134
    %v4136 = vpop.f32.mrf.mxu0
    %4137 = vmatprep.mubr.bf16.mxu0 0
    %4138 = vmatmul.mubr.bf16.gmra.mxu0 %v4059
    %v4139 = vpop.f32.mrf.mxu0
    %v4140 = vadd.f32 %v4016, %v4139
    %v4141 = vpop.f32.mrf.mxu0
    %v4142 = vpop.f32.mrf.mxu0
    %v4143 = vadd.f32 %v4019, %v4142
    %v4144 = vpop.f32.mrf.mxu0
    %4145 = vmatprep.mubr.bf16.mxu0 0
    %4146 = vmatmul.mubr.bf16.gmra.mxu0 %v4062
    %v4147 = vpop.f32.mrf.mxu0
    %v4148 = vadd.f32 %v4024, %v4147
    %v4149 = vpop.f32.mrf.mxu0
    %v4150 = vpop.f32.mrf.mxu0
    %v4151 = vadd.f32 %v4027, %v4150
    %v4152 = vpop.f32.mrf.mxu0
    %4153 = vmatprep.mubr.bf16.mxu0 0
    %4154 = vmatmul.mubr.bf16.gmra.mxu0 %v4065
    %v4155 = vpop.f32.mrf.mxu0
    %v4156 = vadd.f32 %v4032, %v4155
    %v4157 = vpop.f32.mrf.mxu0
    %v4158 = vpop.f32.mrf.mxu0
    %v4159 = vadd.f32 %v4035, %v4158
    %v4160 = vpop.f32.mrf.mxu0
    %4161 = vmatprep.mubr.bf16.mxu0 0
    %4162 = vmatmul.mubr.bf16.gmra.mxu0 %v4068
    %v4163 = vpop.f32.mrf.mxu0
    %v4164 = vadd.f32 %v4040, %v4163
    %v4165 = vpop.f32.mrf.mxu0
    %v4166 = vpop.f32.mrf.mxu0
    %v4167 = vadd.f32 %v4043, %v4166
    %v4168 = vpop.f32.mrf.mxu0
    %4169 = vdwg.mxu0
    %vm4170 = vcmask 1045504
    %v4171 = vrot.slane %v3759, 2
    %v4172 = vrot.slane %v3760, 2
    %v4173 = vsel %vm4170, %v4171, %v4172
    %v4174 = vrot.slane %v3761, 2
    %v4175 = vrot.slane %v3762, 2
    %v4176 = vsel %vm4170, %v4174, %v4175
    %v4177 = vrot.slane %v3763, 2
    %v4178 = vrot.slane %v3764, 2
    %v4179 = vsel %vm4170, %v4177, %v4178
    %v4180 = vrot.slane %v3765, 2
    %v4181 = vrot.slane %v3766, 2
    %v4182 = vsel %vm4170, %v4180, %v4181
    %v4183 = vrot.slane %v3767, 2
    %v4184 = vrot.slane %v3768, 2
    %v4185 = vsel %vm4170, %v4183, %v4184
    %v4186 = vrot.slane %v3769, 2
    %v4187 = vrot.slane %v3770, 2
    %v4188 = vsel %vm4170, %v4186, %v4187
    %v4189 = vrot.slane %v3771, 2
    %v4190 = vrot.slane %v3772, 2
    %v4191 = vsel %vm4170, %v4189, %v4190
    %v4192 = vrot.slane %v3773, 2
    %v4193 = vrot.slane %v3774, 2
    %v4194 = vsel %vm4170, %v4192, %v4193
    %v4195 = vrot.slane %v3779, 2
    %v4196 = vrot.slane %v3780, 2
    %v4197 = vsel %vm4170, %v4195, %v4196
    %v4198 = vrot.slane %v3781, 2
    %v4199 = vrot.slane %v3782, 2
    %v4200 = vsel %vm4170, %v4198, %v4199
    %v4201 = vrot.slane %v3783, 2
    %v4202 = vrot.slane %v3784, 2
    %v4203 = vsel %vm4170, %v4201, %v4202
    %v4204 = vrot.slane %v3785, 2
    %v4205 = vrot.slane %v3786, 2
    %v4206 = vsel %vm4170, %v4204, %v4205
    %v4207 = vrot.slane %v3787, 2
    %v4208 = vrot.slane %v3788, 2
    %v4209 = vsel %vm4170, %v4207, %v4208
    %v4210 = vrot.slane %v3789, 2
    %v4211 = vrot.slane %v3790, 2
    %v4212 = vsel %vm4170, %v4210, %v4211
    %v4213 = vrot.slane %v3791, 2
    %v4214 = vrot.slane %v3792, 2
    %v4215 = vsel %vm4170, %v4213, %v4214
    %v4216 = vrot.slane %v3793, 2
    %v4217 = vrot.slane %v3794, 2
    %v4218 = vsel %vm4170, %v4216, %v4217
    %v4235 = vpack.c.bf16 %v4176, %v4173
    %v4236 = vpack.c.bf16 %v4182, %v4179
    %v4237 = vpack.c.bf16 %v4188, %v4185
    %v4238 = vpack.c.bf16 %v4194, %v4191
    %v4239 = vpack.c.bf16 %v4200, %v4197
    %v4240 = vpack.c.bf16 %v4206, %v4203
    %v4241 = vpack.c.bf16 %v4212, %v4209
    %v4242 = vpack.c.bf16 %v4218, %v4215
    %v4244 = vsel %vm2925, %v4235, 0
    %v4247 = vsel %vm2925, %v4236, 0
    %v4250 = vsel %vm2925, %v4237, 0
    %v4253 = vsel %vm2925, %v4238, 0
    %v4256 = vsel %vm2925, %v4239, 0
    %v4259 = vsel %vm2925, %v4240, 0
    %v4262 = vsel %vm2925, %v4241, 0
    %v4265 = vsel %vm2925, %v4242, 0
    %v4268 = vsel %vm3945, %v3801, 0
    %4270 = vmatprep.subr.bf16.mxu0 0
    %4271 = vmatpush1.bf16.msra.mxu0 0
    %4272 = vmatprep.subr.bf16.mxu0 0
    %4273 = vmatpush1.bf16.msra.mxu0 0
    %4274 = vmatprep.subr.bf16.mxu0 0
    %4275 = vmatpush1.bf16.msra.mxu0 0
    %4276 = vmatprep.subr.bf16.mxu0 0
    %4277 = vmatpush1.bf16.msra.mxu0 0
    %4278 = vmatprep.subr.bf16.mxu0 0
    %4279 = vmatpush1.bf16.msra.mxu0 0
    %4280 = vmatprep.subr.bf16.mxu0 0
    %4281 = vmatpush1.bf16.msra.mxu0 0
    %4282 = vmatprep.subr.bf16.mxu0 0
    %4283 = vmatpush1.bf16.msra.mxu0 0
    %4284 = vmatprep.subr.bf16.mxu0 0
    %4285 = vmatpush1.bf16.msra.mxu0 %v4268
    %4286 = vmatprep.subr.bf16.mxu0 0
    %4287 = vmatpush2.bf16.msra.mxu0 0
    %4288 = vmatprep.subr.bf16.mxu0 0
    %4289 = vmatpush2.bf16.msra.mxu0 0
    %4290 = vmatprep.subr.bf16.mxu0 0
    %4291 = vmatpush2.bf16.msra.mxu0 0
    %4292 = vmatprep.subr.bf16.mxu0 0
    %4293 = vmatpush2.bf16.msra.mxu0 0
    %4294 = vmatprep.subr.bf16.mxu0 0
    %4295 = vmatpush2.bf16.msra.mxu0 0
    %4296 = vmatprep.subr.bf16.mxu0 0
    %4297 = vmatpush2.bf16.msra.mxu0 0
    %4298 = vmatprep.subr.bf16.mxu0 0
    %4299 = vmatpush2.bf16.msra.mxu0 0
    %4300 = vmatprep.subr.bf16.mxu0 0
    %4301 = vmatpush2.bf16.msra.mxu0 0
    %4302 = vmatprep.mubr.bf16.mxu0 0
    %4303 = vmatmul.mubr.bf16.gmra.mxu0 %v4244
    %v4304 = vpop.f32.mrf.mxu0
    %v4305 = vadd.f32 0.0, %v4304
    %v4306 = vpop.f32.mrf.mxu0
    %v4307 = vpop.f32.mrf.mxu0
    %v4308 = vadd.f32 0.0, %v4307
    %v4309 = vpop.f32.mrf.mxu0
    %4310 = vmatprep.mubr.bf16.mxu0 0
    %4311 = vmatmul.mubr.bf16.gmra.mxu0 %v4247
    %v4312 = vpop.f32.mrf.mxu0
    %v4313 = vadd.f32 0.0, %v4312
    %v4314 = vpop.f32.mrf.mxu0
    %v4315 = vpop.f32.mrf.mxu0
    %v4316 = vadd.f32 0.0, %v4315
    %v4317 = vpop.f32.mrf.mxu0
    %4318 = vmatprep.mubr.bf16.mxu0 0
    %4319 = vmatmul.mubr.bf16.gmra.mxu0 %v4250
    %v4320 = vpop.f32.mrf.mxu0
    %v4321 = vadd.f32 0.0, %v4320
    %v4322 = vpop.f32.mrf.mxu0
    %v4323 = vpop.f32.mrf.mxu0
    %v4324 = vadd.f32 0.0, %v4323
    %v4325 = vpop.f32.mrf.mxu0
    %4326 = vmatprep.mubr.bf16.mxu0 0
    %4327 = vmatmul.mubr.bf16.gmra.mxu0 %v4253
    %v4328 = vpop.f32.mrf.mxu0
    %v4329 = vadd.f32 0.0, %v4328
    %v4330 = vpop.f32.mrf.mxu0
    %v4331 = vpop.f32.mrf.mxu0
    %v4332 = vadd.f32 0.0, %v4331
    %v4333 = vpop.f32.mrf.mxu0
    %4334 = vmatprep.mubr.bf16.mxu0 0
    %4335 = vmatmul.mubr.bf16.gmra.mxu0 %v4256
    %v4336 = vpop.f32.mrf.mxu0
    %v4337 = vadd.f32 0.0, %v4336
    %v4338 = vpop.f32.mrf.mxu0
    %v4339 = vpop.f32.mrf.mxu0
    %v4340 = vadd.f32 0.0, %v4339
    %v4341 = vpop.f32.mrf.mxu0
    %4342 = vmatprep.mubr.bf16.mxu0 0
    %4343 = vmatmul.mubr.bf16.gmra.mxu0 %v4259
    %v4344 = vpop.f32.mrf.mxu0
    %v4345 = vadd.f32 0.0, %v4344
    %v4346 = vpop.f32.mrf.mxu0
    %v4347 = vpop.f32.mrf.mxu0
    %v4348 = vadd.f32 0.0, %v4347
    %v4349 = vpop.f32.mrf.mxu0
    %4350 = vmatprep.mubr.bf16.mxu0 0
    %4351 = vmatmul.mubr.bf16.gmra.mxu0 %v4262
    %v4352 = vpop.f32.mrf.mxu0
    %v4353 = vadd.f32 0.0, %v4352
    %v4354 = vpop.f32.mrf.mxu0
    %v4355 = vpop.f32.mrf.mxu0
    %v4356 = vadd.f32 0.0, %v4355
    %v4357 = vpop.f32.mrf.mxu0
    %4358 = vmatprep.mubr.bf16.mxu0 0
    %4359 = vmatmul.mubr.bf16.gmra.mxu0 %v4265
    %v4360 = vpop.f32.mrf.mxu0
    %v4361 = vadd.f32 0.0, %v4360
    %v4362 = vpop.f32.mrf.mxu0
    %v4363 = vpop.f32.mrf.mxu0
    %v4364 = vadd.f32 0.0, %v4363
    %v4365 = vpop.f32.mrf.mxu0
    %4366 = vdwg.mxu0
    %v4367 = vadd.f32 %v4108, %v4305
    %v4368 = vadd.f32 %v4111, %v4308
    %v4369 = vadd.f32 %v4116, %v4313
    %v4370 = vadd.f32 %v4119, %v4316
    %v4371 = vadd.f32 %v4124, %v4321
    %v4372 = vadd.f32 %v4127, %v4324
    %v4373 = vadd.f32 %v4132, %v4329
    %v4374 = vadd.f32 %v4135, %v4332
    %v4375 = vadd.f32 %v4140, %v4337
    %v4376 = vadd.f32 %v4143, %v4340
    %v4377 = vadd.f32 %v4148, %v4345
    %v4378 = vadd.f32 %v4151, %v4348
    %v4379 = vadd.f32 %v4156, %v4353
    %v4380 = vadd.f32 %v4159, %v4356
    %v4381 = vadd.f32 %v4164, %v4361
    %v4382 = vadd.f32 %v4167, %v4364
    %v4383 = vpack.c.bf16 %v3763, %v3761
    %v4384 = vpack.c.bf16 %v3767, %v3765
    %v4385 = vpack.c.bf16 %v3771, %v3769
    %v4386 = vpack.c.bf16 %v3775, %v3773
    %v4387 = vpack.c.bf16 %v3783, %v3781
    %v4388 = vpack.c.bf16 %v3787, %v3785
    %v4389 = vpack.c.bf16 %v3791, %v3789
    %v4390 = vpack.c.bf16 %v3795, %v3793
    %v4392 = vsel %vm2925, %v4383, 0
    %v4395 = vsel %vm2925, %v4384, 0
    %v4398 = vsel %vm2925, %v4385, 0
    %v4401 = vsel %vm2925, %v4386, 0
    %v4404 = vsel %vm2925, %v4387, 0
    %v4407 = vsel %vm2925, %v4388, 0
    %v4410 = vsel %vm2925, %v4389, 0
    %v4413 = vsel %vm2925, %v4390, 0
    %v4416 = vsel %vm3945, %v3802, 0
    %4418 = vmatprep.subr.bf16.mxu0 0
    %4419 = vmatpush1.bf16.msra.mxu0 0
    %4420 = vmatprep.subr.bf16.mxu0 0
    %4421 = vmatpush1.bf16.msra.mxu0 0
    %4422 = vmatprep.subr.bf16.mxu0 0
    %4423 = vmatpush1.bf16.msra.mxu0 0
    %4424 = vmatprep.subr.bf16.mxu0 0
    %4425 = vmatpush1.bf16.msra.mxu0 0
    %4426 = vmatprep.subr.bf16.mxu0 0
    %4427 = vmatpush1.bf16.msra.mxu0 0
    %4428 = vmatprep.subr.bf16.mxu0 0
    %4429 = vmatpush1.bf16.msra.mxu0 0
    %4430 = vmatprep.subr.bf16.mxu0 0
    %4431 = vmatpush1.bf16.msra.mxu0 0
    %4432 = vmatprep.subr.bf16.mxu0 0
    %4433 = vmatpush1.bf16.msra.mxu0 %v4416
    %4434 = vmatprep.subr.bf16.mxu0 0
    %4435 = vmatpush2.bf16.msra.mxu0 0
    %4436 = vmatprep.subr.bf16.mxu0 0
    %4437 = vmatpush2.bf16.msra.mxu0 0
    %4438 = vmatprep.subr.bf16.mxu0 0
    %4439 = vmatpush2.bf16.msra.mxu0 0
    %4440 = vmatprep.subr.bf16.mxu0 0
    %4441 = vmatpush2.bf16.msra.mxu0 0
    %4442 = vmatprep.subr.bf16.mxu0 0
    %4443 = vmatpush2.bf16.msra.mxu0 0
    %4444 = vmatprep.subr.bf16.mxu0 0
    %4445 = vmatpush2.bf16.msra.mxu0 0
    %4446 = vmatprep.subr.bf16.mxu0 0
    %4447 = vmatpush2.bf16.msra.mxu0 0
    %4448 = vmatprep.subr.bf16.mxu0 0
    %4449 = vmatpush2.bf16.msra.mxu0 0
    %4450 = vmatprep.mubr.bf16.mxu0 0
    %4451 = vmatmul.mubr.bf16.gmra.mxu0 %v4392
    %v4452 = vpop.f32.mrf.mxu0
    %v4453 = vadd.f32 0.0, %v4452
    %v4454 = vpop.f32.mrf.mxu0
    %v4455 = vpop.f32.mrf.mxu0
    %v4456 = vadd.f32 0.0, %v4455
    %v4457 = vpop.f32.mrf.mxu0
    %4458 = vmatprep.mubr.bf16.mxu0 0
    %4459 = vmatmul.mubr.bf16.gmra.mxu0 %v4395
    %v4460 = vpop.f32.mrf.mxu0
    %v4461 = vadd.f32 0.0, %v4460
    %v4462 = vpop.f32.mrf.mxu0
    %v4463 = vpop.f32.mrf.mxu0
    %v4464 = vadd.f32 0.0, %v4463
    %v4465 = vpop.f32.mrf.mxu0
    %4466 = vmatprep.mubr.bf16.mxu0 0
    %4467 = vmatmul.mubr.bf16.gmra.mxu0 %v4398
    %v4468 = vpop.f32.mrf.mxu0
    %v4469 = vadd.f32 0.0, %v4468
    %v4470 = vpop.f32.mrf.mxu0
    %v4471 = vpop.f32.mrf.mxu0
    %v4472 = vadd.f32 0.0, %v4471
    %v4473 = vpop.f32.mrf.mxu0
    %4474 = vmatprep.mubr.bf16.mxu0 0
    %4475 = vmatmul.mubr.bf16.gmra.mxu0 %v4401
    %v4476 = vpop.f32.mrf.mxu0
    %v4477 = vadd.f32 0.0, %v4476
    %v4478 = vpop.f32.mrf.mxu0
    %v4479 = vpop.f32.mrf.mxu0
    %v4480 = vadd.f32 0.0, %v4479
    %v4481 = vpop.f32.mrf.mxu0
    %4482 = vmatprep.mubr.bf16.mxu0 0
    %4483 = vmatmul.mubr.bf16.gmra.mxu0 %v4404
    %v4484 = vpop.f32.mrf.mxu0
    %v4485 = vadd.f32 0.0, %v4484
    %v4486 = vpop.f32.mrf.mxu0
    %v4487 = vpop.f32.mrf.mxu0
    %v4488 = vadd.f32 0.0, %v4487
    %v4489 = vpop.f32.mrf.mxu0
    %4490 = vmatprep.mubr.bf16.mxu0 0
    %4491 = vmatmul.mubr.bf16.gmra.mxu0 %v4407
    %v4492 = vpop.f32.mrf.mxu0
    %v4493 = vadd.f32 0.0, %v4492
    %v4494 = vpop.f32.mrf.mxu0
    %v4495 = vpop.f32.mrf.mxu0
    %v4496 = vadd.f32 0.0, %v4495
    %v4497 = vpop.f32.mrf.mxu0
    %4498 = vmatprep.mubr.bf16.mxu0 0
    %4499 = vmatmul.mubr.bf16.gmra.mxu0 %v4410
    %v4500 = vpop.f32.mrf.mxu0
    %v4501 = vadd.f32 0.0, %v4500
    %v4502 = vpop.f32.mrf.mxu0
    %v4503 = vpop.f32.mrf.mxu0
    %v4504 = vadd.f32 0.0, %v4503
    %v4505 = vpop.f32.mrf.mxu0
    %4506 = vmatprep.mubr.bf16.mxu0 0
    %4507 = vmatmul.mubr.bf16.gmra.mxu0 %v4413
    %v4508 = vpop.f32.mrf.mxu0
    %v4509 = vadd.f32 0.0, %v4508
    %v4510 = vpop.f32.mrf.mxu0
    %v4511 = vpop.f32.mrf.mxu0
    %v4512 = vadd.f32 0.0, %v4511
    %v4513 = vpop.f32.mrf.mxu0
    %4514 = vdwg.mxu0
    %v4515 = vadd.f32 %v4367, %v4453
    %v4516 = vadd.f32 %v4368, %v4456
    %v4517 = vadd.f32 %v4369, %v4461
    %v4518 = vadd.f32 %v4370, %v4464
    %v4519 = vadd.f32 %v4371, %v4469
    %v4520 = vadd.f32 %v4372, %v4472
    %v4521 = vadd.f32 %v4373, %v4477
    %v4522 = vadd.f32 %v4374, %v4480
    %v4523 = vadd.f32 %v4375, %v4485
    %v4524 = vadd.f32 %v4376, %v4488
    %v4525 = vadd.f32 %v4377, %v4493
    %v4526 = vadd.f32 %v4378, %v4496
    %v4527 = vadd.f32 %v4379, %v4501
    %v4528 = vadd.f32 %v4380, %v4504
    %v4529 = vadd.f32 %v4381, %v4509
    %v4530 = vadd.f32 %v4382, %v4512
    %v4535 = vrot.slane %v3775, 1
    %v4536 = vrot.slane %v3776, 1
    %v4537 = vsel %vm3848, %v4535, %v4536
    %v4538 = vrot.slane %v3795, 1
    %v4539 = vrot.slane %v3796, 1
    %v4540 = vsel %vm3848, %v4538, %v4539
    %v4543 = vpack.c.bf16 %v3857, %v3854
    %v4544 = vpack.c.bf16 %v3863, %v3860
    %v4545 = vpack.c.bf16 %v3869, %v3866
    %v4546 = vpack.c.bf16 %v4537, %v3872
    %v4547 = vpack.c.bf16 %v3881, %v3878
    %v4548 = vpack.c.bf16 %v3887, %v3884
    %v4549 = vpack.c.bf16 %v3893, %v3890
    %v4550 = vpack.c.bf16 %v4540, %v3896
    %v4552 = vsel %vm2925, %v4543, 0
    %v4555 = vsel %vm2925, %v4544, 0
    %v4558 = vsel %vm2925, %v4545, 0
    %v4561 = vsel %vm2925, %v4546, 0
    %v4564 = vsel %vm2925, %v4547, 0
    %v4567 = vsel %vm2925, %v4548, 0
    %v4570 = vsel %vm2925, %v4549, 0
    %v4573 = vsel %vm2925, %v4550, 0
    %v4576 = vsel %vm3945, %v3803, 0
    %4578 = vmatprep.subr.bf16.mxu0 0
    %4579 = vmatpush1.bf16.msra.mxu0 0
    %4580 = vmatprep.subr.bf16.mxu0 0
    %4581 = vmatpush1.bf16.msra.mxu0 0
    %4582 = vmatprep.subr.bf16.mxu0 0
    %4583 = vmatpush1.bf16.msra.mxu0 0
    %4584 = vmatprep.subr.bf16.mxu0 0
    %4585 = vmatpush1.bf16.msra.mxu0 0
    %4586 = vmatprep.subr.bf16.mxu0 0
    %4587 = vmatpush1.bf16.msra.mxu0 0
    %4588 = vmatprep.subr.bf16.mxu0 0
    %4589 = vmatpush1.bf16.msra.mxu0 0
    %4590 = vmatprep.subr.bf16.mxu0 0
    %4591 = vmatpush1.bf16.msra.mxu0 0
    %4592 = vmatprep.subr.bf16.mxu0 0
    %4593 = vmatpush1.bf16.msra.mxu0 %v4576
    %4594 = vmatprep.subr.bf16.mxu0 0
    %4595 = vmatpush2.bf16.msra.mxu0 0
    %4596 = vmatprep.subr.bf16.mxu0 0
    %4597 = vmatpush2.bf16.msra.mxu0 0
    %4598 = vmatprep.subr.bf16.mxu0 0
    %4599 = vmatpush2.bf16.msra.mxu0 0
    %4600 = vmatprep.subr.bf16.mxu0 0
    %4601 = vmatpush2.bf16.msra.mxu0 0
    %4602 = vmatprep.subr.bf16.mxu0 0
    %4603 = vmatpush2.bf16.msra.mxu0 0
    %4604 = vmatprep.subr.bf16.mxu0 0
    %4605 = vmatpush2.bf16.msra.mxu0 0
    %4606 = vmatprep.subr.bf16.mxu0 0
    %4607 = vmatpush2.bf16.msra.mxu0 0
    %4608 = vmatprep.subr.bf16.mxu0 0
    %4609 = vmatpush2.bf16.msra.mxu0 0
    %4610 = vmatprep.mubr.bf16.mxu0 0
    %4611 = vmatmul.mubr.bf16.gmra.mxu0 %v4552
    %v4612 = vpop.f32.mrf.mxu0
    %v4613 = vadd.f32 0.0, %v4612
    %v4614 = vpop.f32.mrf.mxu0
    %v4615 = vpop.f32.mrf.mxu0
    %v4616 = vadd.f32 0.0, %v4615
    %v4617 = vpop.f32.mrf.mxu0
    %4618 = vmatprep.mubr.bf16.mxu0 0
    %4619 = vmatmul.mubr.bf16.gmra.mxu0 %v4555
    %v4620 = vpop.f32.mrf.mxu0
    %v4621 = vadd.f32 0.0, %v4620
    %v4622 = vpop.f32.mrf.mxu0
    %v4623 = vpop.f32.mrf.mxu0
    %v4624 = vadd.f32 0.0, %v4623
    %v4625 = vpop.f32.mrf.mxu0
    %4626 = vmatprep.mubr.bf16.mxu0 0
    %4627 = vmatmul.mubr.bf16.gmra.mxu0 %v4558
    %v4628 = vpop.f32.mrf.mxu0
    %v4629 = vadd.f32 0.0, %v4628
    %v4630 = vpop.f32.mrf.mxu0
    %v4631 = vpop.f32.mrf.mxu0
    %v4632 = vadd.f32 0.0, %v4631
    %v4633 = vpop.f32.mrf.mxu0
    %4634 = vmatprep.mubr.bf16.mxu0 0
    %4635 = vmatmul.mubr.bf16.gmra.mxu0 %v4561
    %v4636 = vpop.f32.mrf.mxu0
    %v4637 = vadd.f32 0.0, %v4636
    %v4638 = vpop.f32.mrf.mxu0
    %v4639 = vpop.f32.mrf.mxu0
    %v4640 = vadd.f32 0.0, %v4639
    %v4641 = vpop.f32.mrf.mxu0
    %4642 = vmatprep.mubr.bf16.mxu0 0
    %4643 = vmatmul.mubr.bf16.gmra.mxu0 %v4564
    %v4644 = vpop.f32.mrf.mxu0
    %v4645 = vadd.f32 0.0, %v4644
    %v4646 = vpop.f32.mrf.mxu0
    %v4647 = vpop.f32.mrf.mxu0
    %v4648 = vadd.f32 0.0, %v4647
    %v4649 = vpop.f32.mrf.mxu0
    %4650 = vmatprep.mubr.bf16.mxu0 0
    %4651 = vmatmul.mubr.bf16.gmra.mxu0 %v4567
    %v4652 = vpop.f32.mrf.mxu0
    %v4653 = vadd.f32 0.0, %v4652
    %v4654 = vpop.f32.mrf.mxu0
    %v4655 = vpop.f32.mrf.mxu0
    %v4656 = vadd.f32 0.0, %v4655
    %v4657 = vpop.f32.mrf.mxu0
    %4658 = vmatprep.mubr.bf16.mxu0 0
    %4659 = vmatmul.mubr.bf16.gmra.mxu0 %v4570
    %v4660 = vpop.f32.mrf.mxu0
    %v4661 = vadd.f32 0.0, %v4660
    %v4662 = vpop.f32.mrf.mxu0
    %v4663 = vpop.f32.mrf.mxu0
    %v4664 = vadd.f32 0.0, %v4663
    %v4665 = vpop.f32.mrf.mxu0
    %4666 = vmatprep.mubr.bf16.mxu0 0
    %4667 = vmatmul.mubr.bf16.gmra.mxu0 %v4573
    %v4668 = vpop.f32.mrf.mxu0
    %v4669 = vadd.f32 0.0, %v4668
    %v4670 = vpop.f32.mrf.mxu0
    %v4671 = vpop.f32.mrf.mxu0
    %v4672 = vadd.f32 0.0, %v4671
    %v4673 = vpop.f32.mrf.mxu0
    %4674 = vdwg.mxu0
    %v4675 = vadd.f32 %v4515, %v4613
    %v4676 = vadd.f32 %v4516, %v4616
    %v4677 = vadd.f32 %v4517, %v4621
    %v4678 = vadd.f32 %v4518, %v4624
    %v4679 = vadd.f32 %v4519, %v4629
    %v4680 = vadd.f32 %v4520, %v4632
    %v4681 = vadd.f32 %v4521, %v4637
    %v4682 = vadd.f32 %v4522, %v4640
    %v4683 = vadd.f32 %v4523, %v4645
    %v4684 = vadd.f32 %v4524, %v4648
    %v4685 = vadd.f32 %v4525, %v4653
    %v4686 = vadd.f32 %v4526, %v4656
    %v4687 = vadd.f32 %v4527, %v4661
    %v4688 = vadd.f32 %v4528, %v4664
    %v4689 = vadd.f32 %v4529, %v4669
    %v4690 = vadd.f32 %v4530, %v4672
    %v4691 = vrot.slane %v3775, 2
    %v4692 = vrot.slane %v3776, 2
    %v4693 = vsel %vm4170, %v4691, %v4692
    %v4694 = vrot.slane %v3795, 2
    %v4695 = vrot.slane %v3796, 2
    %v4696 = vsel %vm4170, %v4694, %v4695
    %v4699 = vpack.c.bf16 %v4179, %v4176
    %v4700 = vpack.c.bf16 %v4185, %v4182
    %v4701 = vpack.c.bf16 %v4191, %v4188
    %v4702 = vpack.c.bf16 %v4693, %v4194
    %v4703 = vpack.c.bf16 %v4203, %v4200
    %v4704 = vpack.c.bf16 %v4209, %v4206
    %v4705 = vpack.c.bf16 %v4215, %v4212
    %v4706 = vpack.c.bf16 %v4696, %v4218
    %v4708 = vsel %vm2925, %v4699, 0
    %v4711 = vsel %vm2925, %v4700, 0
    %v4714 = vsel %vm2925, %v4701, 0
    %v4717 = vsel %vm2925, %v4702, 0
    %v4720 = vsel %vm2925, %v4703, 0
    %v4723 = vsel %vm2925, %v4704, 0
    %v4726 = vsel %vm2925, %v4705, 0
    %v4729 = vsel %vm2925, %v4706, 0
    %v4732 = vsel %vm3945, %v3804, 0
    %4734 = vmatprep.subr.bf16.mxu0 0
    %4735 = vmatpush1.bf16.msra.mxu0 0
    %4736 = vmatprep.subr.bf16.mxu0 0
    %4737 = vmatpush1.bf16.msra.mxu0 0
    %4738 = vmatprep.subr.bf16.mxu0 0
    %4739 = vmatpush1.bf16.msra.mxu0 0
    %4740 = vmatprep.subr.bf16.mxu0 0
    %4741 = vmatpush1.bf16.msra.mxu0 0
    %4742 = vmatprep.subr.bf16.mxu0 0
    %4743 = vmatpush1.bf16.msra.mxu0 0
    %4744 = vmatprep.subr.bf16.mxu0 0
    %4745 = vmatpush1.bf16.msra.mxu0 0
    %4746 = vmatprep.subr.bf16.mxu0 0
    %4747 = vmatpush1.bf16.msra.mxu0 0
    %4748 = vmatprep.subr.bf16.mxu0 0
    %4749 = vmatpush1.bf16.msra.mxu0 %v4732
    %4750 = vmatprep.subr.bf16.mxu0 0
    %4751 = vmatpush2.bf16.msra.mxu0 0
    %4752 = vmatprep.subr.bf16.mxu0 0
    %4753 = vmatpush2.bf16.msra.mxu0 0
    %4754 = vmatprep.subr.bf16.mxu0 0
    %4755 = vmatpush2.bf16.msra.mxu0 0
    %4756 = vmatprep.subr.bf16.mxu0 0
    %4757 = vmatpush2.bf16.msra.mxu0 0
    %4758 = vmatprep.subr.bf16.mxu0 0
    %4759 = vmatpush2.bf16.msra.mxu0 0
    %4760 = vmatprep.subr.bf16.mxu0 0
    %4761 = vmatpush2.bf16.msra.mxu0 0
    %4762 = vmatprep.subr.bf16.mxu0 0
    %4763 = vmatpush2.bf16.msra.mxu0 0
    %4764 = vmatprep.subr.bf16.mxu0 0
    %4765 = vmatpush2.bf16.msra.mxu0 0
    %4766 = vmatprep.mubr.bf16.mxu0 0
    %4767 = vmatmul.mubr.bf16.gmra.mxu0 %v4708
    %v4768 = vpop.f32.mrf.mxu0
    %v4769 = vadd.f32 0.0, %v4768
    %v4770 = vpop.f32.mrf.mxu0
    %v4771 = vpop.f32.mrf.mxu0
    %v4772 = vadd.f32 0.0, %v4771
    %v4773 = vpop.f32.mrf.mxu0
    %4774 = vmatprep.mubr.bf16.mxu0 0
    %4775 = vmatmul.mubr.bf16.gmra.mxu0 %v4711
    %v4776 = vpop.f32.mrf.mxu0
    %v4777 = vadd.f32 0.0, %v4776
    %v4778 = vpop.f32.mrf.mxu0
    %v4779 = vpop.f32.mrf.mxu0
    %v4780 = vadd.f32 0.0, %v4779
    %v4781 = vpop.f32.mrf.mxu0
    %4782 = vmatprep.mubr.bf16.mxu0 0
    %4783 = vmatmul.mubr.bf16.gmra.mxu0 %v4714
    %v4784 = vpop.f32.mrf.mxu0
    %v4785 = vadd.f32 0.0, %v4784
    %v4786 = vpop.f32.mrf.mxu0
    %v4787 = vpop.f32.mrf.mxu0
    %v4788 = vadd.f32 0.0, %v4787
    %v4789 = vpop.f32.mrf.mxu0
    %4790 = vmatprep.mubr.bf16.mxu0 0
    %4791 = vmatmul.mubr.bf16.gmra.mxu0 %v4717
    %v4792 = vpop.f32.mrf.mxu0
    %v4793 = vadd.f32 0.0, %v4792
    %v4794 = vpop.f32.mrf.mxu0
    %v4795 = vpop.f32.mrf.mxu0
    %v4796 = vadd.f32 0.0, %v4795
    %v4797 = vpop.f32.mrf.mxu0
    %4798 = vmatprep.mubr.bf16.mxu0 0
    %4799 = vmatmul.mubr.bf16.gmra.mxu0 %v4720
    %v4800 = vpop.f32.mrf.mxu0
    %v4801 = vadd.f32 0.0, %v4800
    %v4802 = vpop.f32.mrf.mxu0
    %v4803 = vpop.f32.mrf.mxu0
    %v4804 = vadd.f32 0.0, %v4803
    %v4805 = vpop.f32.mrf.mxu0
    %4806 = vmatprep.mubr.bf16.mxu0 0
    %4807 = vmatmul.mubr.bf16.gmra.mxu0 %v4723
    %v4808 = vpop.f32.mrf.mxu0
    %v4809 = vadd.f32 0.0, %v4808
    %v4810 = vpop.f32.mrf.mxu0
    %v4811 = vpop.f32.mrf.mxu0
    %v4812 = vadd.f32 0.0, %v4811
    %v4813 = vpop.f32.mrf.mxu0
    %4814 = vmatprep.mubr.bf16.mxu0 0
    %4815 = vmatmul.mubr.bf16.gmra.mxu0 %v4726
    %v4816 = vpop.f32.mrf.mxu0
    %v4817 = vadd.f32 0.0, %v4816
    %v4818 = vpop.f32.mrf.mxu0
    %v4819 = vpop.f32.mrf.mxu0
    %v4820 = vadd.f32 0.0, %v4819
    %v4821 = vpop.f32.mrf.mxu0
    %4822 = vmatprep.mubr.bf16.mxu0 0
    %4823 = vmatmul.mubr.bf16.gmra.mxu0 %v4729
    %v4824 = vpop.f32.mrf.mxu0
    %v4825 = vadd.f32 0.0, %v4824
    %v4826 = vpop.f32.mrf.mxu0
    %v4827 = vpop.f32.mrf.mxu0
    %v4828 = vadd.f32 0.0, %v4827
    %v4829 = vpop.f32.mrf.mxu0
    %4830 = vdwg.mxu0
    %v4831 = vadd.f32 %v4675, %v4769
    %v4832 = vadd.f32 %v4676, %v4772
    %v4833 = vadd.f32 %v4677, %v4777
    %v4834 = vadd.f32 %v4678, %v4780
    %v4835 = vadd.f32 %v4679, %v4785
    %v4836 = vadd.f32 %v4680, %v4788
    %v4837 = vadd.f32 %v4681, %v4793
    %v4838 = vadd.f32 %v4682, %v4796
    %v4839 = vadd.f32 %v4683, %v4801
    %v4840 = vadd.f32 %v4684, %v4804
    %v4841 = vadd.f32 %v4685, %v4809
    %v4842 = vadd.f32 %v4686, %v4812
    %v4843 = vadd.f32 %v4687, %v4817
    %v4844 = vadd.f32 %v4688, %v4820
    %v4845 = vadd.f32 %v4689, %v4825
    %v4846 = vadd.f32 %v4690, %v4828
    %v4847 = vpack.c.bf16 %v3777, %v3775
    %v4848 = vpack.c.bf16 %v3797, %v3795
    %v4850 = vsel %vm2925, %v4847, 0
    %v4853 = vsel %vm2925, %v4848, 0
    %v4856 = vsel %vm3945, %v3805, 0
    %4858 = vmatprep.subr.bf16.mxu0 0
    %4859 = vmatpush1.bf16.msra.mxu0 0
    %4860 = vmatprep.subr.bf16.mxu0 0
    %4861 = vmatpush1.bf16.msra.mxu0 0
    %4862 = vmatprep.subr.bf16.mxu0 0
    %4863 = vmatpush1.bf16.msra.mxu0 0
    %4864 = vmatprep.subr.bf16.mxu0 0
    %4865 = vmatpush1.bf16.msra.mxu0 0
    %4866 = vmatprep.subr.bf16.mxu0 0
    %4867 = vmatpush1.bf16.msra.mxu0 0
    %4868 = vmatprep.subr.bf16.mxu0 0
    %4869 = vmatpush1.bf16.msra.mxu0 0
    %4870 = vmatprep.subr.bf16.mxu0 0
    %4871 = vmatpush1.bf16.msra.mxu0 0
    %4872 = vmatprep.subr.bf16.mxu0 0
    %4873 = vmatpush1.bf16.msra.mxu0 %v4856
    %4874 = vmatprep.subr.bf16.mxu0 0
    %4875 = vmatpush2.bf16.msra.mxu0 0
    %4876 = vmatprep.subr.bf16.mxu0 0
    %4877 = vmatpush2.bf16.msra.mxu0 0
    %4878 = vmatprep.subr.bf16.mxu0 0
    %4879 = vmatpush2.bf16.msra.mxu0 0
    %4880 = vmatprep.subr.bf16.mxu0 0
    %4881 = vmatpush2.bf16.msra.mxu0 0
    %4882 = vmatprep.subr.bf16.mxu0 0
    %4883 = vmatpush2.bf16.msra.mxu0 0
    %4884 = vmatprep.subr.bf16.mxu0 0
    %4885 = vmatpush2.bf16.msra.mxu0 0
    %4886 = vmatprep.subr.bf16.mxu0 0
    %4887 = vmatpush2.bf16.msra.mxu0 0
    %4888 = vmatprep.subr.bf16.mxu0 0
    %4889 = vmatpush2.bf16.msra.mxu0 0
    %4890 = vmatprep.mubr.bf16.mxu0 0
    %4891 = vmatmul.mubr.bf16.gmra.mxu0 %v4050
    %v4892 = vpop.f32.mrf.mxu0
    %v4893 = vadd.f32 0.0, %v4892
    %v4894 = vpop.f32.mrf.mxu0
    %v4895 = vpop.f32.mrf.mxu0
    %v4896 = vadd.f32 0.0, %v4895
    %v4897 = vpop.f32.mrf.mxu0
    %4898 = vmatprep.mubr.bf16.mxu0 0
    %4899 = vmatmul.mubr.bf16.gmra.mxu0 %v4053
    %v4900 = vpop.f32.mrf.mxu0
    %v4901 = vadd.f32 0.0, %v4900
    %v4902 = vpop.f32.mrf.mxu0
    %v4903 = vpop.f32.mrf.mxu0
    %v4904 = vadd.f32 0.0, %v4903
    %v4905 = vpop.f32.mrf.mxu0
    %4906 = vmatprep.mubr.bf16.mxu0 0
    %4907 = vmatmul.mubr.bf16.gmra.mxu0 %v4056
    %v4908 = vpop.f32.mrf.mxu0
    %v4909 = vadd.f32 0.0, %v4908
    %v4910 = vpop.f32.mrf.mxu0
    %v4911 = vpop.f32.mrf.mxu0
    %v4912 = vadd.f32 0.0, %v4911
    %v4913 = vpop.f32.mrf.mxu0
    %4914 = vmatprep.mubr.bf16.mxu0 0
    %4915 = vmatmul.mubr.bf16.gmra.mxu0 %v4850
    %v4916 = vpop.f32.mrf.mxu0
    %v4917 = vadd.f32 0.0, %v4916
    %v4918 = vpop.f32.mrf.mxu0
    %v4919 = vpop.f32.mrf.mxu0
    %v4920 = vadd.f32 0.0, %v4919
    %v4921 = vpop.f32.mrf.mxu0
    %4922 = vmatprep.mubr.bf16.mxu0 0
    %4923 = vmatmul.mubr.bf16.gmra.mxu0 %v4062
    %v4924 = vpop.f32.mrf.mxu0
    %v4925 = vadd.f32 0.0, %v4924
    %v4926 = vpop.f32.mrf.mxu0
    %v4927 = vpop.f32.mrf.mxu0
    %v4928 = vadd.f32 0.0, %v4927
    %v4929 = vpop.f32.mrf.mxu0
    %4930 = vmatprep.mubr.bf16.mxu0 0
    %4931 = vmatmul.mubr.bf16.gmra.mxu0 %v4065
    %v4932 = vpop.f32.mrf.mxu0
    %v4933 = vadd.f32 0.0, %v4932
    %v4934 = vpop.f32.mrf.mxu0
    %v4935 = vpop.f32.mrf.mxu0
    %v4936 = vadd.f32 0.0, %v4935
    %v4937 = vpop.f32.mrf.mxu0
    %4938 = vmatprep.mubr.bf16.mxu0 0
    %4939 = vmatmul.mubr.bf16.gmra.mxu0 %v4068
    %v4940 = vpop.f32.mrf.mxu0
    %v4941 = vadd.f32 0.0, %v4940
    %v4942 = vpop.f32.mrf.mxu0
    %v4943 = vpop.f32.mrf.mxu0
    %v4944 = vadd.f32 0.0, %v4943
    %v4945 = vpop.f32.mrf.mxu0
    %4946 = vmatprep.mubr.bf16.mxu0 0
    %4947 = vmatmul.mubr.bf16.gmra.mxu0 %v4853
    %v4948 = vpop.f32.mrf.mxu0
    %v4949 = vadd.f32 0.0, %v4948
    %v4950 = vpop.f32.mrf.mxu0
    %v4951 = vpop.f32.mrf.mxu0
    %v4952 = vadd.f32 0.0, %v4951
    %v4953 = vpop.f32.mrf.mxu0
    %4954 = vdwg.mxu0
    %v4955 = vadd.f32 %v4831, %v4893
    %v4956 = vadd.f32 %v4832, %v4896
    %v4957 = vadd.f32 %v4833, %v4901
    %v4958 = vadd.f32 %v4834, %v4904
    %v4959 = vadd.f32 %v4835, %v4909
    %v4960 = vadd.f32 %v4836, %v4912
    %v4961 = vadd.f32 %v4837, %v4917
    %v4962 = vadd.f32 %v4838, %v4920
    %v4963 = vadd.f32 %v4839, %v4925
    %v4964 = vadd.f32 %v4840, %v4928
    %v4965 = vadd.f32 %v4841, %v4933
    %v4966 = vadd.f32 %v4842, %v4936
    %v4967 = vadd.f32 %v4843, %v4941
    %v4968 = vadd.f32 %v4844, %v4944
    %v4969 = vadd.f32 %v4845, %v4949
    %v4970 = vadd.f32 %v4846, %v4952
    %v4975 = vrot.slane %v3777, 1
    %v4976 = vrot.slane %v3778, 1
    %v4977 = vsel %vm3848, %v4975, %v4976
    %v4978 = vrot.slane %v3797, 1
    %v4979 = vrot.slane %v3798, 1
    %v4980 = vsel %vm3848, %v4978, %v4979
    %v4983 = vpack.c.bf16 %v4977, %v4537
    %v4984 = vpack.c.bf16 %v4980, %v4540
    %v4986 = vsel %vm2925, %v4983, 0
    %v4989 = vsel %vm2925, %v4984, 0
    %v4992 = vsel %vm3945, %v3806, 0
    %4994 = vmatprep.subr.bf16.mxu0 0
    %4995 = vmatpush1.bf16.msra.mxu0 0
    %4996 = vmatprep.subr.bf16.mxu0 0
    %4997 = vmatpush1.bf16.msra.mxu0 0
    %4998 = vmatprep.subr.bf16.mxu0 0
    %4999 = vmatpush1.bf16.msra.mxu0 0
    %5000 = vmatprep.subr.bf16.mxu0 0
    %5001 = vmatpush1.bf16.msra.mxu0 0
    %5002 = vmatprep.subr.bf16.mxu0 0
    %5003 = vmatpush1.bf16.msra.mxu0 0
    %5004 = vmatprep.subr.bf16.mxu0 0
    %5005 = vmatpush1.bf16.msra.mxu0 0
    %5006 = vmatprep.subr.bf16.mxu0 0
    %5007 = vmatpush1.bf16.msra.mxu0 0
    %5008 = vmatprep.subr.bf16.mxu0 0
    %5009 = vmatpush1.bf16.msra.mxu0 %v4992
    %5010 = vmatprep.subr.bf16.mxu0 0
    %5011 = vmatpush2.bf16.msra.mxu0 0
    %5012 = vmatprep.subr.bf16.mxu0 0
    %5013 = vmatpush2.bf16.msra.mxu0 0
    %5014 = vmatprep.subr.bf16.mxu0 0
    %5015 = vmatpush2.bf16.msra.mxu0 0
    %5016 = vmatprep.subr.bf16.mxu0 0
    %5017 = vmatpush2.bf16.msra.mxu0 0
    %5018 = vmatprep.subr.bf16.mxu0 0
    %5019 = vmatpush2.bf16.msra.mxu0 0
    %5020 = vmatprep.subr.bf16.mxu0 0
    %5021 = vmatpush2.bf16.msra.mxu0 0
    %5022 = vmatprep.subr.bf16.mxu0 0
    %5023 = vmatpush2.bf16.msra.mxu0 0
    %5024 = vmatprep.subr.bf16.mxu0 0
    %5025 = vmatpush2.bf16.msra.mxu0 0
    %5026 = vmatprep.mubr.bf16.mxu0 0
    %5027 = vmatmul.mubr.bf16.gmra.mxu0 %v3925
    %v5028 = vpop.f32.mrf.mxu0
    %v5029 = vadd.f32 0.0, %v5028
    %v5030 = vpop.f32.mrf.mxu0
    %v5031 = vpop.f32.mrf.mxu0
    %v5032 = vadd.f32 0.0, %v5031
    %v5033 = vpop.f32.mrf.mxu0
    %5034 = vmatprep.mubr.bf16.mxu0 0
    %5035 = vmatmul.mubr.bf16.gmra.mxu0 %v3928
    %v5036 = vpop.f32.mrf.mxu0
    %v5037 = vadd.f32 0.0, %v5036
    %v5038 = vpop.f32.mrf.mxu0
    %v5039 = vpop.f32.mrf.mxu0
    %v5040 = vadd.f32 0.0, %v5039
    %v5041 = vpop.f32.mrf.mxu0
    %5042 = vmatprep.mubr.bf16.mxu0 0
    %5043 = vmatmul.mubr.bf16.gmra.mxu0 %v3931
    %v5044 = vpop.f32.mrf.mxu0
    %v5045 = vadd.f32 0.0, %v5044
    %v5046 = vpop.f32.mrf.mxu0
    %v5047 = vpop.f32.mrf.mxu0
    %v5048 = vadd.f32 0.0, %v5047
    %v5049 = vpop.f32.mrf.mxu0
    %5050 = vmatprep.mubr.bf16.mxu0 0
    %5051 = vmatmul.mubr.bf16.gmra.mxu0 %v4986
    %v5052 = vpop.f32.mrf.mxu0
    %v5053 = vadd.f32 0.0, %v5052
    %v5054 = vpop.f32.mrf.mxu0
    %v5055 = vpop.f32.mrf.mxu0
    %v5056 = vadd.f32 0.0, %v5055
    %v5057 = vpop.f32.mrf.mxu0
    %5058 = vmatprep.mubr.bf16.mxu0 0
    %5059 = vmatmul.mubr.bf16.gmra.mxu0 %v3937
    %v5060 = vpop.f32.mrf.mxu0
    %v5061 = vadd.f32 0.0, %v5060
    %v5062 = vpop.f32.mrf.mxu0
    %v5063 = vpop.f32.mrf.mxu0
    %v5064 = vadd.f32 0.0, %v5063
    %v5065 = vpop.f32.mrf.mxu0
    %5066 = vmatprep.mubr.bf16.mxu0 0
    %5067 = vmatmul.mubr.bf16.gmra.mxu0 %v3940
    %v5068 = vpop.f32.mrf.mxu0
    %v5069 = vadd.f32 0.0, %v5068
    %v5070 = vpop.f32.mrf.mxu0
    %v5071 = vpop.f32.mrf.mxu0
    %v5072 = vadd.f32 0.0, %v5071
    %v5073 = vpop.f32.mrf.mxu0
    %5074 = vmatprep.mubr.bf16.mxu0 0
    %5075 = vmatmul.mubr.bf16.gmra.mxu0 %v3943
    %v5076 = vpop.f32.mrf.mxu0
    %v5077 = vadd.f32 0.0, %v5076
    %v5078 = vpop.f32.mrf.mxu0
    %v5079 = vpop.f32.mrf.mxu0
    %v5080 = vadd.f32 0.0, %v5079
    %v5081 = vpop.f32.mrf.mxu0
    %5082 = vmatprep.mubr.bf16.mxu0 0
    %5083 = vmatmul.mubr.bf16.gmra.mxu0 %v4989
    %v5084 = vpop.f32.mrf.mxu0
    %v5085 = vadd.f32 0.0, %v5084
    %v5086 = vpop.f32.mrf.mxu0
    %v5087 = vpop.f32.mrf.mxu0
    %v5088 = vadd.f32 0.0, %v5087
    %v5089 = vpop.f32.mrf.mxu0
    %5090 = vdwg.mxu0
    %v5091 = vadd.f32 %v4955, %v5029
    %v5092 = vadd.f32 %v4956, %v5032
    %v5093 = vadd.f32 %v4957, %v5037
    %v5094 = vadd.f32 %v4958, %v5040
    %v5095 = vadd.f32 %v4959, %v5045
    %v5096 = vadd.f32 %v4960, %v5048
    %v5097 = vadd.f32 %v4961, %v5053
    %v5098 = vadd.f32 %v4962, %v5056
    %v5099 = vadd.f32 %v4963, %v5061
    %v5100 = vadd.f32 %v4964, %v5064
    %v5101 = vadd.f32 %v4965, %v5069
    %v5102 = vadd.f32 %v4966, %v5072
    %v5103 = vadd.f32 %v4967, %v5077
    %v5104 = vadd.f32 %v4968, %v5080
    %v5105 = vadd.f32 %v4969, %v5085
    %v5106 = vadd.f32 %v4970, %v5088
    %v5107 = vrot.slane %v3777, 2
    %v5108 = vrot.slane %v3778, 2
    %v5109 = vsel %vm4170, %v5107, %v5108
    %v5110 = vrot.slane %v3797, 2
    %v5111 = vrot.slane %v3798, 2
    %v5112 = vsel %vm4170, %v5110, %v5111
    %v5115 = vpack.c.bf16 %v5109, %v4693
    %v5116 = vpack.c.bf16 %v5112, %v4696
    %v5118 = vsel %vm2925, %v5115, 0
    %v5121 = vsel %vm2925, %v5116, 0
    %v5124 = vsel %vm3945, %v3807, 0
    %5126 = vmatprep.subr.bf16.mxu0 0
    %5127 = vmatpush1.bf16.msra.mxu0 0
    %5128 = vmatprep.subr.bf16.mxu0 0
    %5129 = vmatpush1.bf16.msra.mxu0 0
    %5130 = vmatprep.subr.bf16.mxu0 0
    %5131 = vmatpush1.bf16.msra.mxu0 0
    %5132 = vmatprep.subr.bf16.mxu0 0
    %5133 = vmatpush1.bf16.msra.mxu0 0
    %5134 = vmatprep.subr.bf16.mxu0 0
    %5135 = vmatpush1.bf16.msra.mxu0 0
    %5136 = vmatprep.subr.bf16.mxu0 0
    %5137 = vmatpush1.bf16.msra.mxu0 0
    %5138 = vmatprep.subr.bf16.mxu0 0
    %5139 = vmatpush1.bf16.msra.mxu0 0
    %5140 = vmatprep.subr.bf16.mxu0 0
    %5141 = vmatpush1.bf16.msra.mxu0 %v5124
    %5142 = vmatprep.subr.bf16.mxu0 0
    %5143 = vmatpush2.bf16.msra.mxu0 0
    %5144 = vmatprep.subr.bf16.mxu0 0
    %5145 = vmatpush2.bf16.msra.mxu0 0
    %5146 = vmatprep.subr.bf16.mxu0 0
    %5147 = vmatpush2.bf16.msra.mxu0 0
    %5148 = vmatprep.subr.bf16.mxu0 0
    %5149 = vmatpush2.bf16.msra.mxu0 0
    %5150 = vmatprep.subr.bf16.mxu0 0
    %5151 = vmatpush2.bf16.msra.mxu0 0
    %5152 = vmatprep.subr.bf16.mxu0 0
    %5153 = vmatpush2.bf16.msra.mxu0 0
    %5154 = vmatprep.subr.bf16.mxu0 0
    %5155 = vmatpush2.bf16.msra.mxu0 0
    %5156 = vmatprep.subr.bf16.mxu0 0
    %5157 = vmatpush2.bf16.msra.mxu0 0
    %5158 = vmatprep.mubr.bf16.mxu0 0
    %5159 = vmatmul.mubr.bf16.gmra.mxu0 %v4247
    %v5160 = vpop.f32.mrf.mxu0
    %v5161 = vadd.f32 0.0, %v5160
    %v5162 = vpop.f32.mrf.mxu0
    %v5163 = vpop.f32.mrf.mxu0
    %v5164 = vadd.f32 0.0, %v5163
    %v5165 = vpop.f32.mrf.mxu0
    %5166 = vmatprep.mubr.bf16.mxu0 0
    %5167 = vmatmul.mubr.bf16.gmra.mxu0 %v4250
    %v5168 = vpop.f32.mrf.mxu0
    %v5169 = vadd.f32 0.0, %v5168
    %v5170 = vpop.f32.mrf.mxu0
    %v5171 = vpop.f32.mrf.mxu0
    %v5172 = vadd.f32 0.0, %v5171
    %v5173 = vpop.f32.mrf.mxu0
    %5174 = vmatprep.mubr.bf16.mxu0 0
    %5175 = vmatmul.mubr.bf16.gmra.mxu0 %v4253
    %v5176 = vpop.f32.mrf.mxu0
    %v5177 = vadd.f32 0.0, %v5176
    %v5178 = vpop.f32.mrf.mxu0
    %v5179 = vpop.f32.mrf.mxu0
    %v5180 = vadd.f32 0.0, %v5179
    %v5181 = vpop.f32.mrf.mxu0
    %5182 = vmatprep.mubr.bf16.mxu0 0
    %5183 = vmatmul.mubr.bf16.gmra.mxu0 %v5118
    %v5184 = vpop.f32.mrf.mxu0
    %v5185 = vadd.f32 0.0, %v5184
    %v5186 = vpop.f32.mrf.mxu0
    %v5187 = vpop.f32.mrf.mxu0
    %v5188 = vadd.f32 0.0, %v5187
    %v5189 = vpop.f32.mrf.mxu0
    %5190 = vmatprep.mubr.bf16.mxu0 0
    %5191 = vmatmul.mubr.bf16.gmra.mxu0 %v4259
    %v5192 = vpop.f32.mrf.mxu0
    %v5193 = vadd.f32 0.0, %v5192
    %v5194 = vpop.f32.mrf.mxu0
    %v5195 = vpop.f32.mrf.mxu0
    %v5196 = vadd.f32 0.0, %v5195
    %v5197 = vpop.f32.mrf.mxu0
    %5198 = vmatprep.mubr.bf16.mxu0 0
    %5199 = vmatmul.mubr.bf16.gmra.mxu0 %v4262
    %v5200 = vpop.f32.mrf.mxu0
    %v5201 = vadd.f32 0.0, %v5200
    %v5202 = vpop.f32.mrf.mxu0
    %v5203 = vpop.f32.mrf.mxu0
    %v5204 = vadd.f32 0.0, %v5203
    %v5205 = vpop.f32.mrf.mxu0
    %5206 = vmatprep.mubr.bf16.mxu0 0
    %5207 = vmatmul.mubr.bf16.gmra.mxu0 %v4265
    %v5208 = vpop.f32.mrf.mxu0
    %v5209 = vadd.f32 0.0, %v5208
    %v5210 = vpop.f32.mrf.mxu0
    %v5211 = vpop.f32.mrf.mxu0
    %v5212 = vadd.f32 0.0, %v5211
    %v5213 = vpop.f32.mrf.mxu0
    %5214 = vmatprep.mubr.bf16.mxu0 0
    %5215 = vmatmul.mubr.bf16.gmra.mxu0 %v5121
    %v5216 = vpop.f32.mrf.mxu0
    %v5217 = vadd.f32 0.0, %v5216
    %v5218 = vpop.f32.mrf.mxu0
    %v5219 = vpop.f32.mrf.mxu0
    %v5220 = vadd.f32 0.0, %v5219
    %v5221 = vpop.f32.mrf.mxu0
    %5222 = vdwg.mxu0
    %v5223 = vadd.f32 %v5091, %v5161
    %v5224 = vadd.f32 %v5092, %v5164
    %v5225 = vadd.f32 %v5093, %v5169
    %v5226 = vadd.f32 %v5094, %v5172
    %v5227 = vadd.f32 %v5095, %v5177
    %v5228 = vadd.f32 %v5096, %v5180
    %v5229 = vadd.f32 %v5097, %v5185
    %v5230 = vadd.f32 %v5098, %v5188
    %v5231 = vadd.f32 %v5099, %v5193
    %v5232 = vadd.f32 %v5100, %v5196
    %v5233 = vadd.f32 %v5101, %v5201
    %v5234 = vadd.f32 %v5102, %v5204
    %v5235 = vadd.f32 %v5103, %v5209
    %v5236 = vadd.f32 %v5104, %v5212
    %v5237 = vadd.f32 %v5105, %v5217
    %v5238 = vadd.f32 %v5106, %v5220
    %v5239 = vld [vmem:[%s4] sm:$0x1]
    %v5241 = vlaneseq
    %v5242 = vshrl.u32 %v5241, 7
    %v5243 = vsub.s32 0, %v5242
    %v5244 = vrot.slane %v5239, %v5243
    %v5246 = vadd.f32 %v5223, %v5244
    %v5247 = vadd.f32 %v5224, %v5244
    %v5248 = vadd.f32 %v5225, %v5244
    %v5249 = vadd.f32 %v5226, %v5244
    %v5250 = vadd.f32 %v5227, %v5244
    %v5251 = vadd.f32 %v5228, %v5244
    %v5252 = vadd.f32 %v5229, %v5244
    %v5253 = vadd.f32 %v5230, %v5244
    %v5254 = vadd.f32 %v5231, %v5244
    %v5255 = vadd.f32 %v5232, %v5244
    %v5256 = vadd.f32 %v5233, %v5244
    %v5257 = vadd.f32 %v5234, %v5244
    %v5258 = vadd.f32 %v5235, %v5244
    %v5259 = vadd.f32 %v5236, %v5244
    %v5260 = vadd.f32 %v5237, %v5244
    %v5261 = vadd.f32 %v5238, %v5244
    %v5262 = vmax.f32 %v5246, 0.0
    %v5263 = vmax.f32 %v5247, 0.0
    %v5264 = vmax.f32 %v5248, 0.0
    %v5265 = vmax.f32 %v5249, 0.0
    %v5266 = vmax.f32 %v5250, 0.0
    %v5267 = vmax.f32 %v5251, 0.0
    %v5268 = vmax.f32 %v5252, 0.0
    %v5269 = vmax.f32 %v5253, 0.0
    %v5270 = vmax.f32 %v5254, 0.0
    %v5271 = vmax.f32 %v5255, 0.0
    %v5272 = vmax.f32 %v5256, 0.0
    %v5273 = vmax.f32 %v5257, 0.0
    %v5274 = vmax.f32 %v5258, 0.0
    %v5275 = vmax.f32 %v5259, 0.0
    %v5276 = vmax.f32 %v5260, 0.0
    %v5277 = vmax.f32 %v5261, 0.0
    %v5294 = vcombine.high %v5262, %v5262
    %v5296 = vunpack.c.l.s4 1983009808
    %v5297 = vunpack.c.0.s8 %v5296
    %v5298 = vlaneseq
    %v5299 = vshrl.u32 %v5298, 7
    %v5300 = vsub.s32 %v5297, %v5299
    %v5301 = vrot.slane %v5262, %v5300
    %v5303 = vunpack.c.l.s4 1983009808
    %v5304 = vunpack.c.0.s8 %v5303
    %v5305 = vlaneseq
    %v5306 = vshrl.u32 %v5305, 7
    %v5307 = vsub.s32 %v5304, %v5306
    %v5308 = vrot.slane %v5294, %v5307
    %v5309 = vcombine.high %v5301, %v5301
    %v5310 = vcombine.high %v5308, %v5308
    %v5311 = vcombine.high %v5263, %v5263
    %v5313 = vunpack.c.l.s4 1983009808
    %v5314 = vunpack.c.0.s8 %v5313
    %v5315 = vlaneseq
    %v5316 = vshrl.u32 %v5315, 7
    %v5317 = vsub.s32 %v5314, %v5316
    %v5318 = vrot.slane %v5263, %v5317
    %v5320 = vunpack.c.l.s4 1983009808
    %v5321 = vunpack.c.0.s8 %v5320
    %v5322 = vlaneseq
    %v5323 = vshrl.u32 %v5322, 7
    %v5324 = vsub.s32 %v5321, %v5323
    %v5325 = vrot.slane %v5311, %v5324
    %v5326 = vcombine.high %v5318, %v5318
    %v5327 = vcombine.high %v5325, %v5325
    %v5328 = vcombine.high %v5264, %v5264
    %v5330 = vunpack.c.l.s4 1983009808
    %v5331 = vunpack.c.0.s8 %v5330
    %v5332 = vlaneseq
    %v5333 = vshrl.u32 %v5332, 7
    %v5334 = vsub.s32 %v5331, %v5333
    %v5335 = vrot.slane %v5264, %v5334
    %v5337 = vunpack.c.l.s4 1983009808
    %v5338 = vunpack.c.0.s8 %v5337
    %v5339 = vlaneseq
    %v5340 = vshrl.u32 %v5339, 7
    %v5341 = vsub.s32 %v5338, %v5340
    %v5342 = vrot.slane %v5328, %v5341
    %v5343 = vcombine.high %v5335, %v5335
    %v5344 = vcombine.high %v5342, %v5342
    %v5345 = vcombine.high %v5265, %v5265
    %v5347 = vunpack.c.l.s4 1983009808
    %v5348 = vunpack.c.0.s8 %v5347
    %v5349 = vlaneseq
    %v5350 = vshrl.u32 %v5349, 7
    %v5351 = vsub.s32 %v5348, %v5350
    %v5352 = vrot.slane %v5265, %v5351
    %v5354 = vunpack.c.l.s4 1983009808
    %v5355 = vunpack.c.0.s8 %v5354
    %v5356 = vlaneseq
    %v5357 = vshrl.u32 %v5356, 7
    %v5358 = vsub.s32 %v5355, %v5357
    %v5359 = vrot.slane %v5345, %v5358
    %v5360 = vcombine.high %v5352, %v5352
    %v5361 = vcombine.high %v5359, %v5359
    %v5362 = vcombine.high %v5266, %v5266
    %v5364 = vunpack.c.l.s4 1983009808
    %v5365 = vunpack.c.0.s8 %v5364
    %v5366 = vlaneseq
    %v5367 = vshrl.u32 %v5366, 7
    %v5368 = vsub.s32 %v5365, %v5367
    %v5369 = vrot.slane %v5266, %v5368
    %v5371 = vunpack.c.l.s4 1983009808
    %v5372 = vunpack.c.0.s8 %v5371
    %v5373 = vlaneseq
    %v5374 = vshrl.u32 %v5373, 7
    %v5375 = vsub.s32 %v5372, %v5374
    %v5376 = vrot.slane %v5362, %v5375
    %v5377 = vcombine.high %v5369, %v5369
    %v5378 = vcombine.high %v5376, %v5376
    %v5379 = vcombine.high %v5267, %v5267
    %v5381 = vunpack.c.l.s4 1983009808
    %v5382 = vunpack.c.0.s8 %v5381
    %v5383 = vlaneseq
    %v5384 = vshrl.u32 %v5383, 7
    %v5385 = vsub.s32 %v5382, %v5384
    %v5386 = vrot.slane %v5267, %v5385
    %v5388 = vunpack.c.l.s4 1983009808
    %v5389 = vunpack.c.0.s8 %v5388
    %v5390 = vlaneseq
    %v5391 = vshrl.u32 %v5390, 7
    %v5392 = vsub.s32 %v5389, %v5391
    %v5393 = vrot.slane %v5379, %v5392
    %v5394 = vcombine.high %v5386, %v5386
    %v5395 = vcombine.high %v5393, %v5393
    %v5396 = vcombine.high %v5268, %v5268
    %v5398 = vunpack.c.l.s4 1983009808
    %v5399 = vunpack.c.0.s8 %v5398
    %v5400 = vlaneseq
    %v5401 = vshrl.u32 %v5400, 7
    %v5402 = vsub.s32 %v5399, %v5401
    %v5403 = vrot.slane %v5268, %v5402
    %v5405 = vunpack.c.l.s4 1983009808
    %v5406 = vunpack.c.0.s8 %v5405
    %v5407 = vlaneseq
    %v5408 = vshrl.u32 %v5407, 7
    %v5409 = vsub.s32 %v5406, %v5408
    %v5410 = vrot.slane %v5396, %v5409
    %v5411 = vcombine.high %v5403, %v5403
    %v5412 = vcombine.high %v5410, %v5410
    %v5413 = vcombine.high %v5269, %v5269
    %v5415 = vunpack.c.l.s4 1983009808
    %v5416 = vunpack.c.0.s8 %v5415
    %v5417 = vlaneseq
    %v5418 = vshrl.u32 %v5417, 7
    %v5419 = vsub.s32 %v5416, %v5418
    %v5420 = vrot.slane %v5269, %v5419
    %v5422 = vunpack.c.l.s4 1983009808
    %v5423 = vunpack.c.0.s8 %v5422
    %v5424 = vlaneseq
    %v5425 = vshrl.u32 %v5424, 7
    %v5426 = vsub.s32 %v5423, %v5425
    %v5427 = vrot.slane %v5413, %v5426
    %v5428 = vcombine.high %v5420, %v5420
    %v5429 = vcombine.high %v5427, %v5427
    %v5430 = vcombine.high %v5270, %v5270
    %v5432 = vunpack.c.l.s4 1983009808
    %v5433 = vunpack.c.0.s8 %v5432
    %v5434 = vlaneseq
    %v5435 = vshrl.u32 %v5434, 7
    %v5436 = vsub.s32 %v5433, %v5435
    %v5437 = vrot.slane %v5270, %v5436
    %v5439 = vunpack.c.l.s4 1983009808
    %v5440 = vunpack.c.0.s8 %v5439
    %v5441 = vlaneseq
    %v5442 = vshrl.u32 %v5441, 7
    %v5443 = vsub.s32 %v5440, %v5442
    %v5444 = vrot.slane %v5430, %v5443
    %v5445 = vcombine.high %v5437, %v5437
    %v5446 = vcombine.high %v5444, %v5444
    %v5447 = vcombine.high %v5271, %v5271
    %v5449 = vunpack.c.l.s4 1983009808
    %v5450 = vunpack.c.0.s8 %v5449
    %v5451 = vlaneseq
    %v5452 = vshrl.u32 %v5451, 7
    %v5453 = vsub.s32 %v5450, %v5452
    %v5454 = vrot.slane %v5271, %v5453
    %v5456 = vunpack.c.l.s4 1983009808
    %v5457 = vunpack.c.0.s8 %v5456
    %v5458 = vlaneseq
    %v5459 = vshrl.u32 %v5458, 7
    %v5460 = vsub.s32 %v5457, %v5459
    %v5461 = vrot.slane %v5447, %v5460
    %v5462 = vcombine.high %v5454, %v5454
    %v5463 = vcombine.high %v5461, %v5461
    %v5464 = vcombine.high %v5272, %v5272
    %v5466 = vunpack.c.l.s4 1983009808
    %v5467 = vunpack.c.0.s8 %v5466
    %v5468 = vlaneseq
    %v5469 = vshrl.u32 %v5468, 7
    %v5470 = vsub.s32 %v5467, %v5469
    %v5471 = vrot.slane %v5272, %v5470
    %v5473 = vunpack.c.l.s4 1983009808
    %v5474 = vunpack.c.0.s8 %v5473
    %v5475 = vlaneseq
    %v5476 = vshrl.u32 %v5475, 7
    %v5477 = vsub.s32 %v5474, %v5476
    %v5478 = vrot.slane %v5464, %v5477
    %v5479 = vcombine.high %v5471, %v5471
    %v5480 = vcombine.high %v5478, %v5478
    %v5481 = vcombine.high %v5273, %v5273
    %v5483 = vunpack.c.l.s4 1983009808
    %v5484 = vunpack.c.0.s8 %v5483
    %v5485 = vlaneseq
    %v5486 = vshrl.u32 %v5485, 7
    %v5487 = vsub.s32 %v5484, %v5486
    %v5488 = vrot.slane %v5273, %v5487
    %v5490 = vunpack.c.l.s4 1983009808
    %v5491 = vunpack.c.0.s8 %v5490
    %v5492 = vlaneseq
    %v5493 = vshrl.u32 %v5492, 7
    %v5494 = vsub.s32 %v5491, %v5493
    %v5495 = vrot.slane %v5481, %v5494
    %v5496 = vcombine.high %v5488, %v5488
    %v5497 = vcombine.high %v5495, %v5495
    %v5498 = vcombine.high %v5274, %v5274
    %v5500 = vunpack.c.l.s4 1983009808
    %v5501 = vunpack.c.0.s8 %v5500
    %v5502 = vlaneseq
    %v5503 = vshrl.u32 %v5502, 7
    %v5504 = vsub.s32 %v5501, %v5503
    %v5505 = vrot.slane %v5274, %v5504
    %v5507 = vunpack.c.l.s4 1983009808
    %v5508 = vunpack.c.0.s8 %v5507
    %v5509 = vlaneseq
    %v5510 = vshrl.u32 %v5509, 7
    %v5511 = vsub.s32 %v5508, %v5510
    %v5512 = vrot.slane %v5498, %v5511
    %v5513 = vcombine.high %v5505, %v5505
    %v5514 = vcombine.high %v5512, %v5512
    %v5515 = vcombine.high %v5275, %v5275
    %v5517 = vunpack.c.l.s4 1983009808
    %v5518 = vunpack.c.0.s8 %v5517
    %v5519 = vlaneseq
    %v5520 = vshrl.u32 %v5519, 7
    %v5521 = vsub.s32 %v5518, %v5520
    %v5522 = vrot.slane %v5275, %v5521
    %v5524 = vunpack.c.l.s4 1983009808
    %v5525 = vunpack.c.0.s8 %v5524
    %v5526 = vlaneseq
    %v5527 = vshrl.u32 %v5526, 7
    %v5528 = vsub.s32 %v5525, %v5527
    %v5529 = vrot.slane %v5515, %v5528
    %v5530 = vcombine.high %v5522, %v5522
    %v5531 = vcombine.high %v5529, %v5529
    %v5532 = vcombine.high %v5276, %v5276
    %v5534 = vunpack.c.l.s4 1983009808
    %v5535 = vunpack.c.0.s8 %v5534
    %v5536 = vlaneseq
    %v5537 = vshrl.u32 %v5536, 7
    %v5538 = vsub.s32 %v5535, %v5537
    %v5539 = vrot.slane %v5276, %v5538
    %v5541 = vunpack.c.l.s4 1983009808
    %v5542 = vunpack.c.0.s8 %v5541
    %v5543 = vlaneseq
    %v5544 = vshrl.u32 %v5543, 7
    %v5545 = vsub.s32 %v5542, %v5544
    %v5546 = vrot.slane %v5532, %v5545
    %v5547 = vcombine.high %v5539, %v5539
    %v5548 = vcombine.high %v5546, %v5546
    %v5549 = vcombine.high %v5277, %v5277
    %v5551 = vunpack.c.l.s4 1983009808
    %v5552 = vunpack.c.0.s8 %v5551
    %v5553 = vlaneseq
    %v5554 = vshrl.u32 %v5553, 7
    %v5555 = vsub.s32 %v5552, %v5554
    %v5556 = vrot.slane %v5277, %v5555
    %v5558 = vunpack.c.l.s4 1983009808
    %v5559 = vunpack.c.0.s8 %v5558
    %v5560 = vlaneseq
    %v5561 = vshrl.u32 %v5560, 7
    %v5562 = vsub.s32 %v5559, %v5561
    %v5563 = vrot.slane %v5549, %v5562
    %v5564 = vcombine.high %v5556, %v5556
    %v5565 = vcombine.high %v5563, %v5563
    %v5630 = vmax.f32 %v5301, %v5318
    %v5631 = vmax.f32 %v5309, %v5326
    %v5632 = vmax.f32 %v5308, %v5325
    %v5633 = vmax.f32 %v5310, %v5327
    %v5634 = vmax.f32 %v5335, %v5352
    %v5635 = vmax.f32 %v5343, %v5360
    %v5636 = vmax.f32 %v5342, %v5359
    %v5637 = vmax.f32 %v5344, %v5361
    %v5638 = vmax.f32 %v5369, %v5386
    %v5639 = vmax.f32 %v5377, %v5394
    %v5640 = vmax.f32 %v5376, %v5393
    %v5641 = vmax.f32 %v5378, %v5395
    %v5642 = vmax.f32 %v5403, %v5420
    %v5643 = vmax.f32 %v5411, %v5428
    %v5644 = vmax.f32 %v5410, %v5427
    %v5645 = vmax.f32 %v5412, %v5429
    %v5646 = vmax.f32 %v5437, %v5454
    %v5647 = vmax.f32 %v5445, %v5462
    %v5648 = vmax.f32 %v5444, %v5461
    %v5649 = vmax.f32 %v5446, %v5463
    %v5650 = vmax.f32 %v5471, %v5488
    %v5651 = vmax.f32 %v5479, %v5496
    %v5652 = vmax.f32 %v5478, %v5495
    %v5653 = vmax.f32 %v5480, %v5497
    %v5654 = vmax.f32 %v5505, %v5522
    %v5655 = vmax.f32 %v5513, %v5530
    %v5656 = vmax.f32 %v5512, %v5529
    %v5657 = vmax.f32 %v5514, %v5531
    %v5658 = vmax.f32 %v5539, %v5556
    %v5659 = vmax.f32 %v5547, %v5564
    %v5660 = vmax.f32 %v5546, %v5563
    %v5661 = vmax.f32 %v5548, %v5565
    %v5694 = vrot.slane %v5630, 7
    %v5695 = vrot.slane %v5694, 2
    %v5696 = vrot.slane %v5631, 7
    %v5697 = vrot.slane %v5696, 2
    %v5698 = vrot.slane %v5632, 7
    %v5699 = vrot.slane %v5698, 2
    %v5700 = vrot.slane %v5633, 7
    %v5701 = vrot.slane %v5700, 2
    %v5702 = vrot.slane %v5634, 7
    %v5703 = vrot.slane %v5702, 2
    %v5704 = vrot.slane %v5635, 7
    %v5705 = vrot.slane %v5704, 2
    %v5706 = vrot.slane %v5636, 7
    %v5707 = vrot.slane %v5706, 2
    %v5708 = vrot.slane %v5637, 7
    %v5709 = vrot.slane %v5708, 2
    %v5710 = vrot.slane %v5638, 7
    %v5711 = vrot.slane %v5710, 2
    %v5712 = vrot.slane %v5639, 7
    %v5713 = vrot.slane %v5712, 2
    %v5714 = vrot.slane %v5640, 7
    %v5715 = vrot.slane %v5714, 2
    %v5716 = vrot.slane %v5641, 7
    %v5717 = vrot.slane %v5716, 2
    %v5718 = vrot.slane %v5642, 7
    %v5719 = vrot.slane %v5718, 2
    %v5720 = vrot.slane %v5643, 7
    %v5721 = vrot.slane %v5720, 2
    %v5722 = vrot.slane %v5644, 7
    %v5723 = vrot.slane %v5722, 2
    %v5724 = vrot.slane %v5645, 7
    %v5725 = vrot.slane %v5724, 2
    %v5726 = vrot.slane %v5646, 7
    %v5727 = vrot.slane %v5726, 2
    %v5728 = vrot.slane %v5647, 7
    %v5729 = vrot.slane %v5728, 2
    %v5730 = vrot.slane %v5648, 7
    %v5731 = vrot.slane %v5730, 2
    %v5732 = vrot.slane %v5649, 7
    %v5733 = vrot.slane %v5732, 2
    %v5734 = vrot.slane %v5650, 7
    %v5735 = vrot.slane %v5734, 2
    %v5736 = vrot.slane %v5651, 7
    %v5737 = vrot.slane %v5736, 2
    %v5738 = vrot.slane %v5652, 7
    %v5739 = vrot.slane %v5738, 2
    %v5740 = vrot.slane %v5653, 7
    %v5741 = vrot.slane %v5740, 2
    %v5742 = vrot.slane %v5654, 7
    %v5743 = vrot.slane %v5742, 2
    %v5744 = vrot.slane %v5655, 7
    %v5745 = vrot.slane %v5744, 2
    %v5746 = vrot.slane %v5656, 7
    %v5747 = vrot.slane %v5746, 2
    %v5748 = vrot.slane %v5657, 7
    %v5749 = vrot.slane %v5748, 2
    %v5750 = vrot.slane %v5658, 7
    %v5751 = vrot.slane %v5750, 2
    %v5752 = vrot.slane %v5659, 7
    %v5753 = vrot.slane %v5752, 2
    %v5754 = vrot.slane %v5660, 7
    %v5755 = vrot.slane %v5754, 2
    %v5756 = vrot.slane %v5661, 7
    %v5757 = vrot.slane %v5756, 2
    %v5790 = vmax.f32 %v5630, %v5695
    %v5791 = vmax.f32 %v5631, %v5697
    %v5792 = vmax.f32 %v5632, %v5699
    %v5793 = vmax.f32 %v5633, %v5701
    %v5794 = vmax.f32 %v5634, %v5703
    %v5795 = vmax.f32 %v5635, %v5705
    %v5796 = vmax.f32 %v5636, %v5707
    %v5797 = vmax.f32 %v5637, %v5709
    %v5798 = vmax.f32 %v5638, %v5711
    %v5799 = vmax.f32 %v5639, %v5713
    %v5800 = vmax.f32 %v5640, %v5715
    %v5801 = vmax.f32 %v5641, %v5717
    %v5802 = vmax.f32 %v5642, %v5719
    %v5803 = vmax.f32 %v5643, %v5721
    %v5804 = vmax.f32 %v5644, %v5723
    %v5805 = vmax.f32 %v5645, %v5725
    %v5806 = vmax.f32 %v5646, %v5727
    %v5807 = vmax.f32 %v5647, %v5729
    %v5808 = vmax.f32 %v5648, %v5731
    %v5809 = vmax.f32 %v5649, %v5733
    %v5810 = vmax.f32 %v5650, %v5735
    %v5811 = vmax.f32 %v5651, %v5737
    %v5812 = vmax.f32 %v5652, %v5739
    %v5813 = vmax.f32 %v5653, %v5741
    %v5814 = vmax.f32 %v5654, %v5743
    %v5815 = vmax.f32 %v5655, %v5745
    %v5816 = vmax.f32 %v5656, %v5747
    %v5817 = vmax.f32 %v5657, %v5749
    %v5818 = vmax.f32 %v5658, %v5751
    %v5819 = vmax.f32 %v5659, %v5753
    %v5820 = vmax.f32 %v5660, %v5755
    %v5821 = vmax.f32 %v5661, %v5757
    %v5822 = vld [vmem:[%s5] sm:$0xf]
    %v5823 = vld [vmem:[%s5 + $0x4] sm:$0xf]
    %v5824 = vld [vmem:[%s5 + $0x8] sm:$0xf]
    %v5825 = vld [vmem:[%s5 + $0xc] sm:$0xf]
    %v5826 = vld [vmem:[%s5 + $0x10] sm:$0xf]
    %v5827 = vld [vmem:[%s5 + $0x14] sm:$0xf]
    %v5828 = vld [vmem:[%s5 + $0x18] sm:$0xf]
    %v5829 = vld [vmem:[%s5 + $0x1c] sm:$0xf]
    %v5830 = vld [vmem:[%s5 + $0x20] sm:$0xf]
    %v5831 = vld [vmem:[%s5 + $0x24] sm:$0xf]
    %v5832 = vld [vmem:[%s5 + $0x28] sm:$0xf]
    %v5833 = vld [vmem:[%s5 + $0x2c] sm:$0xf]
    %v5834 = vld [vmem:[%s5 + $0x30] sm:$0xf]
    %v5835 = vld [vmem:[%s5 + $0x34] sm:$0xf]
    %v5836 = vld [vmem:[%s5 + $0x38] sm:$0xf]
    %v5837 = vld [vmem:[%s5 + $0x3c] sm:$0xf]
    %v5838 = vld [vmem:[%s5 + $0x40] sm:$0xf]
    %v5839 = vld [vmem:[%s5 + $0x44] sm:$0xf]
    %v5840 = vld [vmem:[%s5 + $0x48] sm:$0xf]
    %v5841 = vld [vmem:[%s5 + $0x4c] sm:$0xf]
    %v5842 = vld [vmem:[%s5 + $0x50] sm:$0xf]
    %v5843 = vld [vmem:[%s5 + $0x54] sm:$0xf]
    %v5844 = vld [vmem:[%s5 + $0x58] sm:$0xf]
    %v5845 = vld [vmem:[%s5 + $0x5c] sm:$0xf]
    %v5846 = vld [vmem:[%s5 + $0x60] sm:$0xf]
    %v5847 = vld [vmem:[%s5 + $0x64] sm:$0xf]
    %v5848 = vld [vmem:[%s5 + $0x68] sm:$0xf]
    %v5849 = vld [vmem:[%s5 + $0x6c] sm:$0xf]
    %v5850 = vld [vmem:[%s5 + $0x70] sm:$0xf]
    %v5851 = vld [vmem:[%s5 + $0x74] sm:$0xf]
    %v5852 = vld [vmem:[%s5 + $0x78] sm:$0xf]
    %v5853 = vld [vmem:[%s5 + $0x7c] sm:$0xf]
    %v5854 = vpack.c.bf16 %v5790, %v5790
    %v5855 = vpack.c.bf16 %v5806, %v5806
    %v5856 = vpack.c.bf16 %v5791, %v5791
    %v5857 = vpack.c.bf16 %v5807, %v5807
    %v5860 = vunpack.c.l.b16 %v5856
    %v5861 = vunpack.c.l.b16 %v5857
    %v5862 = vrot.slane %v5861, 7
    %v5863 = vsel %vm3607, %v5862, %v5860
    %v5864 = vpack.c.b16 %v5863, %v5863
    %v5867 = vunpack.c.l.b16 %v5824
    %v5868 = vunpack.c.l.b16 %v5825
    %v5869 = vpack.c.b16 %v5868, %v5867
    %vm5871 = vcmask 130048
    %v5873 = vsel %vm5871, %v5864, 0
    %5875 = vmatprep.subr.bf16.mxu0 0
    %5876 = vmatpush1.bf16.msra.mxu0 0
    %5877 = vmatprep.subr.bf16.mxu0 0
    %5878 = vmatpush1.bf16.msra.mxu0 0
    %5879 = vmatprep.subr.bf16.mxu0 0
    %5880 = vmatpush1.bf16.msra.mxu0 0
    %5881 = vmatprep.subr.bf16.mxu0 0
    %5882 = vmatpush1.bf16.msra.mxu0 0
    %5883 = vmatprep.subr.bf16.mxu0 0
    %5884 = vmatpush1.bf16.msra.mxu0 0
    %5885 = vmatprep.subr.bf16.mxu0 0
    %5886 = vmatpush1.bf16.msra.mxu0 0
    %5887 = vmatprep.subr.bf16.mxu0 0
    %5888 = vmatpush1.bf16.msra.mxu0 0
    %5889 = vmatprep.subr.bf16.mxu0 0
    %5890 = vmatpush1.bf16.msra.mxu0 %v5869
    %5891 = vmatprep.subr.bf16.mxu0 0
    %5892 = vmatpush2.bf16.msra.mxu0 0
    %5893 = vmatprep.subr.bf16.mxu0 0
    %5894 = vmatpush2.bf16.msra.mxu0 0
    %5895 = vmatprep.subr.bf16.mxu0 0
    %5896 = vmatpush2.bf16.msra.mxu0 0
    %5897 = vmatprep.subr.bf16.mxu0 0
    %5898 = vmatpush2.bf16.msra.mxu0 0
    %5899 = vmatprep.subr.bf16.mxu0 0
    %5900 = vmatpush2.bf16.msra.mxu0 0
    %5901 = vmatprep.subr.bf16.mxu0 0
    %5902 = vmatpush2.bf16.msra.mxu0 0
    %5903 = vmatprep.subr.bf16.mxu0 0
    %5904 = vmatpush2.bf16.msra.mxu0 0
    %5905 = vmatprep.subr.bf16.mxu0 0
    %5906 = vmatpush2.bf16.msra.mxu0 0
    %5907 = vmatprep.mubr.bf16.mxu0 0
    %5908 = vmatmul.mubr.bf16.gmra.mxu0 %v5873
    %v5909 = vpop.f32.mrf.mxu0
    %v5910 = vadd.f32 0.0, %v5909
    %v5911 = vpop.f32.mrf.mxu0
    %v5912 = vpop.f32.mrf.mxu0
    %v5913 = vpop.f32.mrf.mxu0
    %5914 = vdwg.mxu0
    %v5917 = vunpack.c.l.b16 %v5854
    %v5918 = vunpack.c.l.b16 %v5855
    %v5919 = vrot.slane %v5918, 7
    %v5920 = vsel %vm3607, %v5919, %v5917
    %v5921 = vpack.c.b16 %v5920, %v5920
    %v5924 = vunpack.c.l.b16 %v5822
    %v5925 = vunpack.c.l.b16 %v5823
    %v5926 = vpack.c.b16 %v5925, %v5924
    %v5929 = vsel %vm5871, %v5921, 0
    %5931 = vmatprep.subr.bf16.mxu0 0
    %5932 = vmatpush1.bf16.msra.mxu0 0
    %5933 = vmatprep.subr.bf16.mxu0 0
    %5934 = vmatpush1.bf16.msra.mxu0 0
    %5935 = vmatprep.subr.bf16.mxu0 0
    %5936 = vmatpush1.bf16.msra.mxu0 0
    %5937 = vmatprep.subr.bf16.mxu0 0
    %5938 = vmatpush1.bf16.msra.mxu0 0
    %5939 = vmatprep.subr.bf16.mxu0 0
    %5940 = vmatpush1.bf16.msra.mxu0 0
    %5941 = vmatprep.subr.bf16.mxu0 0
    %5942 = vmatpush1.bf16.msra.mxu0 0
    %5943 = vmatprep.subr.bf16.mxu0 0
    %5944 = vmatpush1.bf16.msra.mxu0 0
    %5945 = vmatprep.subr.bf16.mxu0 0
    %5946 = vmatpush1.bf16.msra.mxu0 %v5926
    %5947 = vmatprep.subr.bf16.mxu0 0
    %5948 = vmatpush2.bf16.msra.mxu0 0
    %5949 = vmatprep.subr.bf16.mxu0 0
    %5950 = vmatpush2.bf16.msra.mxu0 0
    %5951 = vmatprep.subr.bf16.mxu0 0
    %5952 = vmatpush2.bf16.msra.mxu0 0
    %5953 = vmatprep.subr.bf16.mxu0 0
    %5954 = vmatpush2.bf16.msra.mxu0 0
    %5955 = vmatprep.subr.bf16.mxu0 0
    %5956 = vmatpush2.bf16.msra.mxu0 0
    %5957 = vmatprep.subr.bf16.mxu0 0
    %5958 = vmatpush2.bf16.msra.mxu0 0
    %5959 = vmatprep.subr.bf16.mxu0 0
    %5960 = vmatpush2.bf16.msra.mxu0 0
    %5961 = vmatprep.subr.bf16.mxu0 0
    %5962 = vmatpush2.bf16.msra.mxu0 0
    %5963 = vmatprep.mubr.bf16.mxu0 0
    %5964 = vmatmul.mubr.bf16.gmra.mxu0 %v5929
    %v5965 = vpop.f32.mrf.mxu0
    %v5966 = vadd.f32 %v5910, %v5965
    %v5967 = vpop.f32.mrf.mxu0
    %v5968 = vpop.f32.mrf.mxu0
    %v5969 = vpop.f32.mrf.mxu0
    %5970 = vdwg.mxu0
    %v5971 = vpack.c.bf16 %v5792, %v5792
    %v5972 = vpack.c.bf16 %v5808, %v5808
    %v5975 = vunpack.c.l.b16 %v5971
    %v5976 = vunpack.c.l.b16 %v5972
    %v5977 = vrot.slane %v5976, 7
    %v5978 = vsel %vm3607, %v5977, %v5975
    %v5979 = vpack.c.b16 %v5978, %v5978
    %v5982 = vunpack.c.l.b16 %v5826
    %v5983 = vunpack.c.l.b16 %v5827
    %v5984 = vpack.c.b16 %v5983, %v5982
    %v5987 = vsel %vm5871, %v5979, 0
    %5989 = vmatprep.subr.bf16.mxu0 0
    %5990 = vmatpush1.bf16.msra.mxu0 0
    %5991 = vmatprep.subr.bf16.mxu0 0
    %5992 = vmatpush1.bf16.msra.mxu0 0
    %5993 = vmatprep.subr.bf16.mxu0 0
    %5994 = vmatpush1.bf16.msra.mxu0 0
    %5995 = vmatprep.subr.bf16.mxu0 0
    %5996 = vmatpush1.bf16.msra.mxu0 0
    %5997 = vmatprep.subr.bf16.mxu0 0
    %5998 = vmatpush1.bf16.msra.mxu0 0
    %5999 = vmatprep.subr.bf16.mxu0 0
    %6000 = vmatpush1.bf16.msra.mxu0 0
    %6001 = vmatprep.subr.bf16.mxu0 0
    %6002 = vmatpush1.bf16.msra.mxu0 0
    %6003 = vmatprep.subr.bf16.mxu0 0
    %6004 = vmatpush1.bf16.msra.mxu0 %v5984
    %6005 = vmatprep.subr.bf16.mxu0 0
    %6006 = vmatpush2.bf16.msra.mxu0 0
    %6007 = vmatprep.subr.bf16.mxu0 0
    %6008 = vmatpush2.bf16.msra.mxu0 0
    %6009 = vmatprep.subr.bf16.mxu0 0
    %6010 = vmatpush2.bf16.msra.mxu0 0
    %6011 = vmatprep.subr.bf16.mxu0 0
    %6012 = vmatpush2.bf16.msra.mxu0 0
    %6013 = vmatprep.subr.bf16.mxu0 0
    %6014 = vmatpush2.bf16.msra.mxu0 0
    %6015 = vmatprep.subr.bf16.mxu0 0
    %6016 = vmatpush2.bf16.msra.mxu0 0
    %6017 = vmatprep.subr.bf16.mxu0 0
    %6018 = vmatpush2.bf16.msra.mxu0 0
    %6019 = vmatprep.subr.bf16.mxu0 0
    %6020 = vmatpush2.bf16.msra.mxu0 0
    %6021 = vmatprep.mubr.bf16.mxu0 0
    %6022 = vmatmul.mubr.bf16.gmra.mxu0 %v5987
    %v6023 = vpop.f32.mrf.mxu0
    %v6024 = vadd.f32 0.0, %v6023
    %v6025 = vpop.f32.mrf.mxu0
    %v6026 = vpop.f32.mrf.mxu0
    %v6027 = vpop.f32.mrf.mxu0
    %6028 = vdwg.mxu0
    %v6029 = vadd.f32 %v5966, %v6024
    %v6030 = vpack.c.bf16 %v5793, %v5793
    %v6031 = vpack.c.bf16 %v5809, %v5809
    %v6034 = vunpack.c.l.b16 %v6030
    %v6035 = vunpack.c.l.b16 %v6031
    %v6036 = vrot.slane %v6035, 7
    %v6037 = vsel %vm3607, %v6036, %v6034
    %v6038 = vpack.c.b16 %v6037, %v6037
    %v6041 = vunpack.c.l.b16 %v5828
    %v6042 = vunpack.c.l.b16 %v5829
    %v6043 = vpack.c.b16 %v6042, %v6041
    %v6046 = vsel %vm5871, %v6038, 0
    %6048 = vmatprep.subr.bf16.mxu0 0
    %6049 = vmatpush1.bf16.msra.mxu0 0
    %6050 = vmatprep.subr.bf16.mxu0 0
    %6051 = vmatpush1.bf16.msra.mxu0 0
    %6052 = vmatprep.subr.bf16.mxu0 0
    %6053 = vmatpush1.bf16.msra.mxu0 0
    %6054 = vmatprep.subr.bf16.mxu0 0
    %6055 = vmatpush1.bf16.msra.mxu0 0
    %6056 = vmatprep.subr.bf16.mxu0 0
    %6057 = vmatpush1.bf16.msra.mxu0 0
    %6058 = vmatprep.subr.bf16.mxu0 0
    %6059 = vmatpush1.bf16.msra.mxu0 0
    %6060 = vmatprep.subr.bf16.mxu0 0
    %6061 = vmatpush1.bf16.msra.mxu0 0
    %6062 = vmatprep.subr.bf16.mxu0 0
    %6063 = vmatpush1.bf16.msra.mxu0 %v6043
    %6064 = vmatprep.subr.bf16.mxu0 0
    %6065 = vmatpush2.bf16.msra.mxu0 0
    %6066 = vmatprep.subr.bf16.mxu0 0
    %6067 = vmatpush2.bf16.msra.mxu0 0
    %6068 = vmatprep.subr.bf16.mxu0 0
    %6069 = vmatpush2.bf16.msra.mxu0 0
    %6070 = vmatprep.subr.bf16.mxu0 0
    %6071 = vmatpush2.bf16.msra.mxu0 0
    %6072 = vmatprep.subr.bf16.mxu0 0
    %6073 = vmatpush2.bf16.msra.mxu0 0
    %6074 = vmatprep.subr.bf16.mxu0 0
    %6075 = vmatpush2.bf16.msra.mxu0 0
    %6076 = vmatprep.subr.bf16.mxu0 0
    %6077 = vmatpush2.bf16.msra.mxu0 0
    %6078 = vmatprep.subr.bf16.mxu0 0
    %6079 = vmatpush2.bf16.msra.mxu0 0
    %6080 = vmatprep.mubr.bf16.mxu0 0
    %6081 = vmatmul.mubr.bf16.gmra.mxu0 %v6046
    %v6082 = vpop.f32.mrf.mxu0
    %v6083 = vadd.f32 0.0, %v6082
    %v6084 = vpop.f32.mrf.mxu0
    %v6085 = vpop.f32.mrf.mxu0
    %v6086 = vpop.f32.mrf.mxu0
    %6087 = vdwg.mxu0
    %v6088 = vadd.f32 %v6029, %v6083
    %v6089 = vpack.c.bf16 %v5794, %v5794
    %v6090 = vpack.c.bf16 %v5810, %v5810
    %v6093 = vunpack.c.l.b16 %v6089
    %v6094 = vunpack.c.l.b16 %v6090
    %v6095 = vrot.slane %v6094, 7
    %v6096 = vsel %vm3607, %v6095, %v6093
    %v6097 = vpack.c.b16 %v6096, %v6096
    %v6100 = vunpack.c.l.b16 %v5830
    %v6101 = vunpack.c.l.b16 %v5831
    %v6102 = vpack.c.b16 %v6101, %v6100
    %v6105 = vsel %vm5871, %v6097, 0
    %6107 = vmatprep.subr.bf16.mxu0 0
    %6108 = vmatpush1.bf16.msra.mxu0 0
    %6109 = vmatprep.subr.bf16.mxu0 0
    %6110 = vmatpush1.bf16.msra.mxu0 0
    %6111 = vmatprep.subr.bf16.mxu0 0
    %6112 = vmatpush1.bf16.msra.mxu0 0
    %6113 = vmatprep.subr.bf16.mxu0 0
    %6114 = vmatpush1.bf16.msra.mxu0 0
    %6115 = vmatprep.subr.bf16.mxu0 0
    %6116 = vmatpush1.bf16.msra.mxu0 0
    %6117 = vmatprep.subr.bf16.mxu0 0
    %6118 = vmatpush1.bf16.msra.mxu0 0
    %6119 = vmatprep.subr.bf16.mxu0 0
    %6120 = vmatpush1.bf16.msra.mxu0 0
    %6121 = vmatprep.subr.bf16.mxu0 0
    %6122 = vmatpush1.bf16.msra.mxu0 %v6102
    %6123 = vmatprep.subr.bf16.mxu0 0
    %6124 = vmatpush2.bf16.msra.mxu0 0
    %6125 = vmatprep.subr.bf16.mxu0 0
    %6126 = vmatpush2.bf16.msra.mxu0 0
    %6127 = vmatprep.subr.bf16.mxu0 0
    %6128 = vmatpush2.bf16.msra.mxu0 0
    %6129 = vmatprep.subr.bf16.mxu0 0
    %6130 = vmatpush2.bf16.msra.mxu0 0
    %6131 = vmatprep.subr.bf16.mxu0 0
    %6132 = vmatpush2.bf16.msra.mxu0 0
    %6133 = vmatprep.subr.bf16.mxu0 0
    %6134 = vmatpush2.bf16.msra.mxu0 0
    %6135 = vmatprep.subr.bf16.mxu0 0
    %6136 = vmatpush2.bf16.msra.mxu0 0
    %6137 = vmatprep.subr.bf16.mxu0 0
    %6138 = vmatpush2.bf16.msra.mxu0 0
    %6139 = vmatprep.mubr.bf16.mxu0 0
    %6140 = vmatmul.mubr.bf16.gmra.mxu0 %v6105
    %v6141 = vpop.f32.mrf.mxu0
    %v6142 = vadd.f32 0.0, %v6141
    %v6143 = vpop.f32.mrf.mxu0
    %v6144 = vpop.f32.mrf.mxu0
    %v6145 = vpop.f32.mrf.mxu0
    %6146 = vdwg.mxu0
    %v6147 = vadd.f32 %v6088, %v6142
    %v6148 = vpack.c.bf16 %v5795, %v5795
    %v6149 = vpack.c.bf16 %v5811, %v5811
    %v6152 = vunpack.c.l.b16 %v6148
    %v6153 = vunpack.c.l.b16 %v6149
    %v6154 = vrot.slane %v6153, 7
    %v6155 = vsel %vm3607, %v6154, %v6152
    %v6156 = vpack.c.b16 %v6155, %v6155
    %v6159 = vunpack.c.l.b16 %v5832
    %v6160 = vunpack.c.l.b16 %v5833
    %v6161 = vpack.c.b16 %v6160, %v6159
    %v6164 = vsel %vm5871, %v6156, 0
    %6166 = vmatprep.subr.bf16.mxu0 0
    %6167 = vmatpush1.bf16.msra.mxu0 0
    %6168 = vmatprep.subr.bf16.mxu0 0
    %6169 = vmatpush1.bf16.msra.mxu0 0
    %6170 = vmatprep.subr.bf16.mxu0 0
    %6171 = vmatpush1.bf16.msra.mxu0 0
    %6172 = vmatprep.subr.bf16.mxu0 0
    %6173 = vmatpush1.bf16.msra.mxu0 0
    %6174 = vmatprep.subr.bf16.mxu0 0
    %6175 = vmatpush1.bf16.msra.mxu0 0
    %6176 = vmatprep.subr.bf16.mxu0 0
    %6177 = vmatpush1.bf16.msra.mxu0 0
    %6178 = vmatprep.subr.bf16.mxu0 0
    %6179 = vmatpush1.bf16.msra.mxu0 0
    %6180 = vmatprep.subr.bf16.mxu0 0
    %6181 = vmatpush1.bf16.msra.mxu0 %v6161
    %6182 = vmatprep.subr.bf16.mxu0 0
    %6183 = vmatpush2.bf16.msra.mxu0 0
    %6184 = vmatprep.subr.bf16.mxu0 0
    %6185 = vmatpush2.bf16.msra.mxu0 0
    %6186 = vmatprep.subr.bf16.mxu0 0
    %6187 = vmatpush2.bf16.msra.mxu0 0
    %6188 = vmatprep.subr.bf16.mxu0 0
    %6189 = vmatpush2.bf16.msra.mxu0 0
    %6190 = vmatprep.subr.bf16.mxu0 0
    %6191 = vmatpush2.bf16.msra.mxu0 0
    %6192 = vmatprep.subr.bf16.mxu0 0
    %6193 = vmatpush2.bf16.msra.mxu0 0
    %6194 = vmatprep.subr.bf16.mxu0 0
    %6195 = vmatpush2.bf16.msra.mxu0 0
    %6196 = vmatprep.subr.bf16.mxu0 0
    %6197 = vmatpush2.bf16.msra.mxu0 0
    %6198 = vmatprep.mubr.bf16.mxu0 0
    %6199 = vmatmul.mubr.bf16.gmra.mxu0 %v6164
    %v6200 = vpop.f32.mrf.mxu0
    %v6201 = vadd.f32 0.0, %v6200
    %v6202 = vpop.f32.mrf.mxu0
    %v6203 = vpop.f32.mrf.mxu0
    %v6204 = vpop.f32.mrf.mxu0
    %6205 = vdwg.mxu0
    %v6206 = vadd.f32 %v6147, %v6201
    %v6207 = vpack.c.bf16 %v5796, %v5796
    %v6208 = vpack.c.bf16 %v5812, %v5812
    %v6211 = vunpack.c.l.b16 %v6207
    %v6212 = vunpack.c.l.b16 %v6208
    %v6213 = vrot.slane %v6212, 7
    %v6214 = vsel %vm3607, %v6213, %v6211
    %v6215 = vpack.c.b16 %v6214, %v6214
    %v6218 = vunpack.c.l.b16 %v5834
    %v6219 = vunpack.c.l.b16 %v5835
    %v6220 = vpack.c.b16 %v6219, %v6218
    %v6223 = vsel %vm5871, %v6215, 0
    %6225 = vmatprep.subr.bf16.mxu0 0
    %6226 = vmatpush1.bf16.msra.mxu0 0
    %6227 = vmatprep.subr.bf16.mxu0 0
    %6228 = vmatpush1.bf16.msra.mxu0 0
    %6229 = vmatprep.subr.bf16.mxu0 0
    %6230 = vmatpush1.bf16.msra.mxu0 0
    %6231 = vmatprep.subr.bf16.mxu0 0
    %6232 = vmatpush1.bf16.msra.mxu0 0
    %6233 = vmatprep.subr.bf16.mxu0 0
    %6234 = vmatpush1.bf16.msra.mxu0 0
    %6235 = vmatprep.subr.bf16.mxu0 0
    %6236 = vmatpush1.bf16.msra.mxu0 0
    %6237 = vmatprep.subr.bf16.mxu0 0
    %6238 = vmatpush1.bf16.msra.mxu0 0
    %6239 = vmatprep.subr.bf16.mxu0 0
    %6240 = vmatpush1.bf16.msra.mxu0 %v6220
    %6241 = vmatprep.subr.bf16.mxu0 0
    %6242 = vmatpush2.bf16.msra.mxu0 0
    %6243 = vmatprep.subr.bf16.mxu0 0
    %6244 = vmatpush2.bf16.msra.mxu0 0
    %6245 = vmatprep.subr.bf16.mxu0 0
    %6246 = vmatpush2.bf16.msra.mxu0 0
    %6247 = vmatprep.subr.bf16.mxu0 0
    %6248 = vmatpush2.bf16.msra.mxu0 0
    %6249 = vmatprep.subr.bf16.mxu0 0
    %6250 = vmatpush2.bf16.msra.mxu0 0
    %6251 = vmatprep.subr.bf16.mxu0 0
    %6252 = vmatpush2.bf16.msra.mxu0 0
    %6253 = vmatprep.subr.bf16.mxu0 0
    %6254 = vmatpush2.bf16.msra.mxu0 0
    %6255 = vmatprep.subr.bf16.mxu0 0
    %6256 = vmatpush2.bf16.msra.mxu0 0
    %6257 = vmatprep.mubr.bf16.mxu0 0
    %6258 = vmatmul.mubr.bf16.gmra.mxu0 %v6223
    %v6259 = vpop.f32.mrf.mxu0
    %v6260 = vadd.f32 0.0, %v6259
    %v6261 = vpop.f32.mrf.mxu0
    %v6262 = vpop.f32.mrf.mxu0
    %v6263 = vpop.f32.mrf.mxu0
    %6264 = vdwg.mxu0
    %v6265 = vadd.f32 %v6206, %v6260
    %v6266 = vpack.c.bf16 %v5797, %v5797
    %v6267 = vpack.c.bf16 %v5813, %v5813
    %v6270 = vunpack.c.l.b16 %v6266
    %v6271 = vunpack.c.l.b16 %v6267
    %v6272 = vrot.slane %v6271, 7
    %v6273 = vsel %vm3607, %v6272, %v6270
    %v6274 = vpack.c.b16 %v6273, %v6273
    %v6277 = vunpack.c.l.b16 %v5836
    %v6278 = vunpack.c.l.b16 %v5837
    %v6279 = vpack.c.b16 %v6278, %v6277
    %v6282 = vsel %vm5871, %v6274, 0
    %6284 = vmatprep.subr.bf16.mxu0 0
    %6285 = vmatpush1.bf16.msra.mxu0 0
    %6286 = vmatprep.subr.bf16.mxu0 0
    %6287 = vmatpush1.bf16.msra.mxu0 0
    %6288 = vmatprep.subr.bf16.mxu0 0
    %6289 = vmatpush1.bf16.msra.mxu0 0
    %6290 = vmatprep.subr.bf16.mxu0 0
    %6291 = vmatpush1.bf16.msra.mxu0 0
    %6292 = vmatprep.subr.bf16.mxu0 0
    %6293 = vmatpush1.bf16.msra.mxu0 0
    %6294 = vmatprep.subr.bf16.mxu0 0
    %6295 = vmatpush1.bf16.msra.mxu0 0
    %6296 = vmatprep.subr.bf16.mxu0 0
    %6297 = vmatpush1.bf16.msra.mxu0 0
    %6298 = vmatprep.subr.bf16.mxu0 0
    %6299 = vmatpush1.bf16.msra.mxu0 %v6279
    %6300 = vmatprep.subr.bf16.mxu0 0
    %6301 = vmatpush2.bf16.msra.mxu0 0
    %6302 = vmatprep.subr.bf16.mxu0 0
    %6303 = vmatpush2.bf16.msra.mxu0 0
    %6304 = vmatprep.subr.bf16.mxu0 0
    %6305 = vmatpush2.bf16.msra.mxu0 0
    %6306 = vmatprep.subr.bf16.mxu0 0
    %6307 = vmatpush2.bf16.msra.mxu0 0
    %6308 = vmatprep.subr.bf16.mxu0 0
    %6309 = vmatpush2.bf16.msra.mxu0 0
    %6310 = vmatprep.subr.bf16.mxu0 0
    %6311 = vmatpush2.bf16.msra.mxu0 0
    %6312 = vmatprep.subr.bf16.mxu0 0
    %6313 = vmatpush2.bf16.msra.mxu0 0
    %6314 = vmatprep.subr.bf16.mxu0 0
    %6315 = vmatpush2.bf16.msra.mxu0 0
    %6316 = vmatprep.mubr.bf16.mxu0 0
    %6317 = vmatmul.mubr.bf16.gmra.mxu0 %v6282
    %v6318 = vpop.f32.mrf.mxu0
    %v6319 = vadd.f32 0.0, %v6318
    %v6320 = vpop.f32.mrf.mxu0
    %v6321 = vpop.f32.mrf.mxu0
    %v6322 = vpop.f32.mrf.mxu0
    %6323 = vdwg.mxu0
    %v6324 = vadd.f32 %v6265, %v6319
    %v6325 = vpack.c.bf16 %v5798, %v5798
    %v6326 = vpack.c.bf16 %v5814, %v5814
    %v6329 = vunpack.c.l.b16 %v6325
    %v6330 = vunpack.c.l.b16 %v6326
    %v6331 = vrot.slane %v6330, 7
    %v6332 = vsel %vm3607, %v6331, %v6329
    %v6333 = vpack.c.b16 %v6332, %v6332
    %v6336 = vunpack.c.l.b16 %v5838
    %v6337 = vunpack.c.l.b16 %v5839
    %v6338 = vpack.c.b16 %v6337, %v6336
    %v6341 = vsel %vm5871, %v6333, 0
    %6343 = vmatprep.subr.bf16.mxu0 0
    %6344 = vmatpush1.bf16.msra.mxu0 0
    %6345 = vmatprep.subr.bf16.mxu0 0
    %6346 = vmatpush1.bf16.msra.mxu0 0
    %6347 = vmatprep.subr.bf16.mxu0 0
    %6348 = vmatpush1.bf16.msra.mxu0 0
    %6349 = vmatprep.subr.bf16.mxu0 0
    %6350 = vmatpush1.bf16.msra.mxu0 0
    %6351 = vmatprep.subr.bf16.mxu0 0
    %6352 = vmatpush1.bf16.msra.mxu0 0
    %6353 = vmatprep.subr.bf16.mxu0 0
    %6354 = vmatpush1.bf16.msra.mxu0 0
    %6355 = vmatprep.subr.bf16.mxu0 0
    %6356 = vmatpush1.bf16.msra.mxu0 0
    %6357 = vmatprep.subr.bf16.mxu0 0
    %6358 = vmatpush1.bf16.msra.mxu0 %v6338
    %6359 = vmatprep.subr.bf16.mxu0 0
    %6360 = vmatpush2.bf16.msra.mxu0 0
    %6361 = vmatprep.subr.bf16.mxu0 0
    %6362 = vmatpush2.bf16.msra.mxu0 0
    %6363 = vmatprep.subr.bf16.mxu0 0
    %6364 = vmatpush2.bf16.msra.mxu0 0
    %6365 = vmatprep.subr.bf16.mxu0 0
    %6366 = vmatpush2.bf16.msra.mxu0 0
    %6367 = vmatprep.subr.bf16.mxu0 0
    %6368 = vmatpush2.bf16.msra.mxu0 0
    %6369 = vmatprep.subr.bf16.mxu0 0
    %6370 = vmatpush2.bf16.msra.mxu0 0
    %6371 = vmatprep.subr.bf16.mxu0 0
    %6372 = vmatpush2.bf16.msra.mxu0 0
    %6373 = vmatprep.subr.bf16.mxu0 0
    %6374 = vmatpush2.bf16.msra.mxu0 0
    %6375 = vmatprep.mubr.bf16.mxu0 0
    %6376 = vmatmul.mubr.bf16.gmra.mxu0 %v6341
    %v6377 = vpop.f32.mrf.mxu0
    %v6378 = vadd.f32 0.0, %v6377
    %v6379 = vpop.f32.mrf.mxu0
    %v6380 = vpop.f32.mrf.mxu0
    %v6381 = vpop.f32.mrf.mxu0
    %6382 = vdwg.mxu0
    %v6383 = vadd.f32 %v6324, %v6378
    %v6384 = vpack.c.bf16 %v5799, %v5799
    %v6385 = vpack.c.bf16 %v5815, %v5815
    %v6388 = vunpack.c.l.b16 %v6384
    %v6389 = vunpack.c.l.b16 %v6385
    %v6390 = vrot.slane %v6389, 7
    %v6391 = vsel %vm3607, %v6390, %v6388
    %v6392 = vpack.c.b16 %v6391, %v6391
    %v6395 = vunpack.c.l.b16 %v5840
    %v6396 = vunpack.c.l.b16 %v5841
    %v6397 = vpack.c.b16 %v6396, %v6395
    %v6400 = vsel %vm5871, %v6392, 0
    %6402 = vmatprep.subr.bf16.mxu0 0
    %6403 = vmatpush1.bf16.msra.mxu0 0
    %6404 = vmatprep.subr.bf16.mxu0 0
    %6405 = vmatpush1.bf16.msra.mxu0 0
    %6406 = vmatprep.subr.bf16.mxu0 0
    %6407 = vmatpush1.bf16.msra.mxu0 0
    %6408 = vmatprep.subr.bf16.mxu0 0
    %6409 = vmatpush1.bf16.msra.mxu0 0
    %6410 = vmatprep.subr.bf16.mxu0 0
    %6411 = vmatpush1.bf16.msra.mxu0 0
    %6412 = vmatprep.subr.bf16.mxu0 0
    %6413 = vmatpush1.bf16.msra.mxu0 0
    %6414 = vmatprep.subr.bf16.mxu0 0
    %6415 = vmatpush1.bf16.msra.mxu0 0
    %6416 = vmatprep.subr.bf16.mxu0 0
    %6417 = vmatpush1.bf16.msra.mxu0 %v6397
    %6418 = vmatprep.subr.bf16.mxu0 0
    %6419 = vmatpush2.bf16.msra.mxu0 0
    %6420 = vmatprep.subr.bf16.mxu0 0
    %6421 = vmatpush2.bf16.msra.mxu0 0
    %6422 = vmatprep.subr.bf16.mxu0 0
    %6423 = vmatpush2.bf16.msra.mxu0 0
    %6424 = vmatprep.subr.bf16.mxu0 0
    %6425 = vmatpush2.bf16.msra.mxu0 0
    %6426 = vmatprep.subr.bf16.mxu0 0
    %6427 = vmatpush2.bf16.msra.mxu0 0
    %6428 = vmatprep.subr.bf16.mxu0 0
    %6429 = vmatpush2.bf16.msra.mxu0 0
    %6430 = vmatprep.subr.bf16.mxu0 0
    %6431 = vmatpush2.bf16.msra.mxu0 0
    %6432 = vmatprep.subr.bf16.mxu0 0
    %6433 = vmatpush2.bf16.msra.mxu0 0
    %6434 = vmatprep.mubr.bf16.mxu0 0
    %6435 = vmatmul.mubr.bf16.gmra.mxu0 %v6400
    %v6436 = vpop.f32.mrf.mxu0
    %v6437 = vadd.f32 0.0, %v6436
    %v6438 = vpop.f32.mrf.mxu0
    %v6439 = vpop.f32.mrf.mxu0
    %v6440 = vpop.f32.mrf.mxu0
    %6441 = vdwg.mxu0
    %v6442 = vadd.f32 %v6383, %v6437
    %v6443 = vpack.c.bf16 %v5800, %v5800
    %v6444 = vpack.c.bf16 %v5816, %v5816
    %v6447 = vunpack.c.l.b16 %v6443
    %v6448 = vunpack.c.l.b16 %v6444
    %v6449 = vrot.slane %v6448, 7
    %v6450 = vsel %vm3607, %v6449, %v6447
    %v6451 = vpack.c.b16 %v6450, %v6450
    %v6454 = vunpack.c.l.b16 %v5842
    %v6455 = vunpack.c.l.b16 %v5843
    %v6456 = vpack.c.b16 %v6455, %v6454
    %v6459 = vsel %vm5871, %v6451, 0
    %6461 = vmatprep.subr.bf16.mxu0 0
    %6462 = vmatpush1.bf16.msra.mxu0 0
    %6463 = vmatprep.subr.bf16.mxu0 0
    %6464 = vmatpush1.bf16.msra.mxu0 0
    %6465 = vmatprep.subr.bf16.mxu0 0
    %6466 = vmatpush1.bf16.msra.mxu0 0
    %6467 = vmatprep.subr.bf16.mxu0 0
    %6468 = vmatpush1.bf16.msra.mxu0 0
    %6469 = vmatprep.subr.bf16.mxu0 0
    %6470 = vmatpush1.bf16.msra.mxu0 0
    %6471 = vmatprep.subr.bf16.mxu0 0
    %6472 = vmatpush1.bf16.msra.mxu0 0
    %6473 = vmatprep.subr.bf16.mxu0 0
    %6474 = vmatpush1.bf16.msra.mxu0 0
    %6475 = vmatprep.subr.bf16.mxu0 0
    %6476 = vmatpush1.bf16.msra.mxu0 %v6456
    %6477 = vmatprep.subr.bf16.mxu0 0
    %6478 = vmatpush2.bf16.msra.mxu0 0
    %6479 = vmatprep.subr.bf16.mxu0 0
    %6480 = vmatpush2.bf16.msra.mxu0 0
    %6481 = vmatprep.subr.bf16.mxu0 0
    %6482 = vmatpush2.bf16.msra.mxu0 0
    %6483 = vmatprep.subr.bf16.mxu0 0
    %6484 = vmatpush2.bf16.msra.mxu0 0
    %6485 = vmatprep.subr.bf16.mxu0 0
    %6486 = vmatpush2.bf16.msra.mxu0 0
    %6487 = vmatprep.subr.bf16.mxu0 0
    %6488 = vmatpush2.bf16.msra.mxu0 0
    %6489 = vmatprep.subr.bf16.mxu0 0
    %6490 = vmatpush2.bf16.msra.mxu0 0
    %6491 = vmatprep.subr.bf16.mxu0 0
    %6492 = vmatpush2.bf16.msra.mxu0 0
    %6493 = vmatprep.mubr.bf16.mxu0 0
    %6494 = vmatmul.mubr.bf16.gmra.mxu0 %v6459
    %v6495 = vpop.f32.mrf.mxu0
    %v6496 = vadd.f32 0.0, %v6495
    %v6497 = vpop.f32.mrf.mxu0
    %v6498 = vpop.f32.mrf.mxu0
    %v6499 = vpop.f32.mrf.mxu0
    %6500 = vdwg.mxu0
    %v6501 = vadd.f32 %v6442, %v6496
    %v6502 = vpack.c.bf16 %v5801, %v5801
    %v6503 = vpack.c.bf16 %v5817, %v5817
    %v6506 = vunpack.c.l.b16 %v6502
    %v6507 = vunpack.c.l.b16 %v6503
    %v6508 = vrot.slane %v6507, 7
    %v6509 = vsel %vm3607, %v6508, %v6506
    %v6510 = vpack.c.b16 %v6509, %v6509
    %v6513 = vunpack.c.l.b16 %v5844
    %v6514 = vunpack.c.l.b16 %v5845
    %v6515 = vpack.c.b16 %v6514, %v6513
    %v6518 = vsel %vm5871, %v6510, 0
    %6520 = vmatprep.subr.bf16.mxu0 0
    %6521 = vmatpush1.bf16.msra.mxu0 0
    %6522 = vmatprep.subr.bf16.mxu0 0
    %6523 = vmatpush1.bf16.msra.mxu0 0
    %6524 = vmatprep.subr.bf16.mxu0 0
    %6525 = vmatpush1.bf16.msra.mxu0 0
    %6526 = vmatprep.subr.bf16.mxu0 0
    %6527 = vmatpush1.bf16.msra.mxu0 0
    %6528 = vmatprep.subr.bf16.mxu0 0
    %6529 = vmatpush1.bf16.msra.mxu0 0
    %6530 = vmatprep.subr.bf16.mxu0 0
    %6531 = vmatpush1.bf16.msra.mxu0 0
    %6532 = vmatprep.subr.bf16.mxu0 0
    %6533 = vmatpush1.bf16.msra.mxu0 0
    %6534 = vmatprep.subr.bf16.mxu0 0
    %6535 = vmatpush1.bf16.msra.mxu0 %v6515
    %6536 = vmatprep.subr.bf16.mxu0 0
    %6537 = vmatpush2.bf16.msra.mxu0 0
    %6538 = vmatprep.subr.bf16.mxu0 0
    %6539 = vmatpush2.bf16.msra.mxu0 0
    %6540 = vmatprep.subr.bf16.mxu0 0
    %6541 = vmatpush2.bf16.msra.mxu0 0
    %6542 = vmatprep.subr.bf16.mxu0 0
    %6543 = vmatpush2.bf16.msra.mxu0 0
    %6544 = vmatprep.subr.bf16.mxu0 0
    %6545 = vmatpush2.bf16.msra.mxu0 0
    %6546 = vmatprep.subr.bf16.mxu0 0
    %6547 = vmatpush2.bf16.msra.mxu0 0
    %6548 = vmatprep.subr.bf16.mxu0 0
    %6549 = vmatpush2.bf16.msra.mxu0 0
    %6550 = vmatprep.subr.bf16.mxu0 0
    %6551 = vmatpush2.bf16.msra.mxu0 0
    %6552 = vmatprep.mubr.bf16.mxu0 0
    %6553 = vmatmul.mubr.bf16.gmra.mxu0 %v6518
    %v6554 = vpop.f32.mrf.mxu0
    %v6555 = vadd.f32 0.0, %v6554
    %v6556 = vpop.f32.mrf.mxu0
    %v6557 = vpop.f32.mrf.mxu0
    %v6558 = vpop.f32.mrf.mxu0
    %6559 = vdwg.mxu0
    %v6560 = vadd.f32 %v6501, %v6555
    %v6561 = vpack.c.bf16 %v5802, %v5802
    %v6562 = vpack.c.bf16 %v5818, %v5818
    %v6565 = vunpack.c.l.b16 %v6561
    %v6566 = vunpack.c.l.b16 %v6562
    %v6567 = vrot.slane %v6566, 7
    %v6568 = vsel %vm3607, %v6567, %v6565
    %v6569 = vpack.c.b16 %v6568, %v6568
    %v6572 = vunpack.c.l.b16 %v5846
    %v6573 = vunpack.c.l.b16 %v5847
    %v6574 = vpack.c.b16 %v6573, %v6572
    %v6577 = vsel %vm5871, %v6569, 0
    %6579 = vmatprep.subr.bf16.mxu0 0
    %6580 = vmatpush1.bf16.msra.mxu0 0
    %6581 = vmatprep.subr.bf16.mxu0 0
    %6582 = vmatpush1.bf16.msra.mxu0 0
    %6583 = vmatprep.subr.bf16.mxu0 0
    %6584 = vmatpush1.bf16.msra.mxu0 0
    %6585 = vmatprep.subr.bf16.mxu0 0
    %6586 = vmatpush1.bf16.msra.mxu0 0
    %6587 = vmatprep.subr.bf16.mxu0 0
    %6588 = vmatpush1.bf16.msra.mxu0 0
    %6589 = vmatprep.subr.bf16.mxu0 0
    %6590 = vmatpush1.bf16.msra.mxu0 0
    %6591 = vmatprep.subr.bf16.mxu0 0
    %6592 = vmatpush1.bf16.msra.mxu0 0
    %6593 = vmatprep.subr.bf16.mxu0 0
    %6594 = vmatpush1.bf16.msra.mxu0 %v6574
    %6595 = vmatprep.subr.bf16.mxu0 0
    %6596 = vmatpush2.bf16.msra.mxu0 0
    %6597 = vmatprep.subr.bf16.mxu0 0
    %6598 = vmatpush2.bf16.msra.mxu0 0
    %6599 = vmatprep.subr.bf16.mxu0 0
    %6600 = vmatpush2.bf16.msra.mxu0 0
    %6601 = vmatprep.subr.bf16.mxu0 0
    %6602 = vmatpush2.bf16.msra.mxu0 0
    %6603 = vmatprep.subr.bf16.mxu0 0
    %6604 = vmatpush2.bf16.msra.mxu0 0
    %6605 = vmatprep.subr.bf16.mxu0 0
    %6606 = vmatpush2.bf16.msra.mxu0 0
    %6607 = vmatprep.subr.bf16.mxu0 0
    %6608 = vmatpush2.bf16.msra.mxu0 0
    %6609 = vmatprep.subr.bf16.mxu0 0
    %6610 = vmatpush2.bf16.msra.mxu0 0
    %6611 = vmatprep.mubr.bf16.mxu0 0
    %6612 = vmatmul.mubr.bf16.gmra.mxu0 %v6577
    %v6613 = vpop.f32.mrf.mxu0
    %v6614 = vadd.f32 0.0, %v6613
    %v6615 = vpop.f32.mrf.mxu0
    %v6616 = vpop.f32.mrf.mxu0
    %v6617 = vpop.f32.mrf.mxu0
    %6618 = vdwg.mxu0
    %v6619 = vadd.f32 %v6560, %v6614
    %v6620 = vpack.c.bf16 %v5803, %v5803
    %v6621 = vpack.c.bf16 %v5819, %v5819
    %v6624 = vunpack.c.l.b16 %v6620
    %v6625 = vunpack.c.l.b16 %v6621
    %v6626 = vrot.slane %v6625, 7
    %v6627 = vsel %vm3607, %v6626, %v6624
    %v6628 = vpack.c.b16 %v6627, %v6627
    %v6631 = vunpack.c.l.b16 %v5848
    %v6632 = vunpack.c.l.b16 %v5849
    %v6633 = vpack.c.b16 %v6632, %v6631
    %v6636 = vsel %vm5871, %v6628, 0
    %6638 = vmatprep.subr.bf16.mxu0 0
    %6639 = vmatpush1.bf16.msra.mxu0 0
    %6640 = vmatprep.subr.bf16.mxu0 0
    %6641 = vmatpush1.bf16.msra.mxu0 0
    %6642 = vmatprep.subr.bf16.mxu0 0
    %6643 = vmatpush1.bf16.msra.mxu0 0
    %6644 = vmatprep.subr.bf16.mxu0 0
    %6645 = vmatpush1.bf16.msra.mxu0 0
    %6646 = vmatprep.subr.bf16.mxu0 0
    %6647 = vmatpush1.bf16.msra.mxu0 0
    %6648 = vmatprep.subr.bf16.mxu0 0
    %6649 = vmatpush1.bf16.msra.mxu0 0
    %6650 = vmatprep.subr.bf16.mxu0 0
    %6651 = vmatpush1.bf16.msra.mxu0 0
    %6652 = vmatprep.subr.bf16.mxu0 0
    %6653 = vmatpush1.bf16.msra.mxu0 %v6633
    %6654 = vmatprep.subr.bf16.mxu0 0
    %6655 = vmatpush2.bf16.msra.mxu0 0
    %6656 = vmatprep.subr.bf16.mxu0 0
    %6657 = vmatpush2.bf16.msra.mxu0 0
    %6658 = vmatprep.subr.bf16.mxu0 0
    %6659 = vmatpush2.bf16.msra.mxu0 0
    %6660 = vmatprep.subr.bf16.mxu0 0
    %6661 = vmatpush2.bf16.msra.mxu0 0
    %6662 = vmatprep.subr.bf16.mxu0 0
    %6663 = vmatpush2.bf16.msra.mxu0 0
    %6664 = vmatprep.subr.bf16.mxu0 0
    %6665 = vmatpush2.bf16.msra.mxu0 0
    %6666 = vmatprep.subr.bf16.mxu0 0
    %6667 = vmatpush2.bf16.msra.mxu0 0
    %6668 = vmatprep.subr.bf16.mxu0 0
    %6669 = vmatpush2.bf16.msra.mxu0 0
    %6670 = vmatprep.mubr.bf16.mxu0 0
    %6671 = vmatmul.mubr.bf16.gmra.mxu0 %v6636
    %v6672 = vpop.f32.mrf.mxu0
    %v6673 = vadd.f32 0.0, %v6672
    %v6674 = vpop.f32.mrf.mxu0
    %v6675 = vpop.f32.mrf.mxu0
    %v6676 = vpop.f32.mrf.mxu0
    %6677 = vdwg.mxu0
    %v6678 = vadd.f32 %v6619, %v6673
    %v6679 = vpack.c.bf16 %v5804, %v5804
    %v6680 = vpack.c.bf16 %v5820, %v5820
    %v6683 = vunpack.c.l.b16 %v6679
    %v6684 = vunpack.c.l.b16 %v6680
    %v6685 = vrot.slane %v6684, 7
    %v6686 = vsel %vm3607, %v6685, %v6683
    %v6687 = vpack.c.b16 %v6686, %v6686
    %v6690 = vunpack.c.l.b16 %v5850
    %v6691 = vunpack.c.l.b16 %v5851
    %v6692 = vpack.c.b16 %v6691, %v6690
    %v6695 = vsel %vm5871, %v6687, 0
    %6697 = vmatprep.subr.bf16.mxu0 0
    %6698 = vmatpush1.bf16.msra.mxu0 0
    %6699 = vmatprep.subr.bf16.mxu0 0
    %6700 = vmatpush1.bf16.msra.mxu0 0
    %6701 = vmatprep.subr.bf16.mxu0 0
    %6702 = vmatpush1.bf16.msra.mxu0 0
    %6703 = vmatprep.subr.bf16.mxu0 0
    %6704 = vmatpush1.bf16.msra.mxu0 0
    %6705 = vmatprep.subr.bf16.mxu0 0
    %6706 = vmatpush1.bf16.msra.mxu0 0
    %6707 = vmatprep.subr.bf16.mxu0 0
    %6708 = vmatpush1.bf16.msra.mxu0 0
    %6709 = vmatprep.subr.bf16.mxu0 0
    %6710 = vmatpush1.bf16.msra.mxu0 0
    %6711 = vmatprep.subr.bf16.mxu0 0
    %6712 = vmatpush1.bf16.msra.mxu0 %v6692
    %6713 = vmatprep.subr.bf16.mxu0 0
    %6714 = vmatpush2.bf16.msra.mxu0 0
    %6715 = vmatprep.subr.bf16.mxu0 0
    %6716 = vmatpush2.bf16.msra.mxu0 0
    %6717 = vmatprep.subr.bf16.mxu0 0
    %6718 = vmatpush2.bf16.msra.mxu0 0
    %6719 = vmatprep.subr.bf16.mxu0 0
    %6720 = vmatpush2.bf16.msra.mxu0 0
    %6721 = vmatprep.subr.bf16.mxu0 0
    %6722 = vmatpush2.bf16.msra.mxu0 0
    %6723 = vmatprep.subr.bf16.mxu0 0
    %6724 = vmatpush2.bf16.msra.mxu0 0
    %6725 = vmatprep.subr.bf16.mxu0 0
    %6726 = vmatpush2.bf16.msra.mxu0 0
    %6727 = vmatprep.subr.bf16.mxu0 0
    %6728 = vmatpush2.bf16.msra.mxu0 0
    %6729 = vmatprep.mubr.bf16.mxu0 0
    %6730 = vmatmul.mubr.bf16.gmra.mxu0 %v6695
    %v6731 = vpop.f32.mrf.mxu0
    %v6732 = vadd.f32 0.0, %v6731
    %v6733 = vpop.f32.mrf.mxu0
    %v6734 = vpop.f32.mrf.mxu0
    %v6735 = vpop.f32.mrf.mxu0
    %6736 = vdwg.mxu0
    %v6737 = vadd.f32 %v6678, %v6732
    %v6738 = vpack.c.bf16 %v5805, %v5805
    %v6739 = vpack.c.bf16 %v5821, %v5821
    %v6742 = vunpack.c.l.b16 %v6738
    %v6743 = vunpack.c.l.b16 %v6739
    %v6744 = vrot.slane %v6743, 7
    %v6745 = vsel %vm3607, %v6744, %v6742
    %v6746 = vpack.c.b16 %v6745, %v6745
    %v6749 = vunpack.c.l.b16 %v5852
    %v6750 = vunpack.c.l.b16 %v5853
    %v6751 = vpack.c.b16 %v6750, %v6749
    %v6754 = vsel %vm5871, %v6746, 0
    %6756 = vmatprep.subr.bf16.mxu0 0
    %6757 = vmatpush1.bf16.msra.mxu0 0
    %6758 = vmatprep.subr.bf16.mxu0 0
    %6759 = vmatpush1.bf16.msra.mxu0 0
    %6760 = vmatprep.subr.bf16.mxu0 0
    %6761 = vmatpush1.bf16.msra.mxu0 0
    %6762 = vmatprep.subr.bf16.mxu0 0
    %6763 = vmatpush1.bf16.msra.mxu0 0
    %6764 = vmatprep.subr.bf16.mxu0 0
    %6765 = vmatpush1.bf16.msra.mxu0 0
    %6766 = vmatprep.subr.bf16.mxu0 0
    %6767 = vmatpush1.bf16.msra.mxu0 0
    %6768 = vmatprep.subr.bf16.mxu0 0
    %6769 = vmatpush1.bf16.msra.mxu0 0
    %6770 = vmatprep.subr.bf16.mxu0 0
    %6771 = vmatpush1.bf16.msra.mxu0 %v6751
    %6772 = vmatprep.subr.bf16.mxu0 0
    %6773 = vmatpush2.bf16.msra.mxu0 0
    %6774 = vmatprep.subr.bf16.mxu0 0
    %6775 = vmatpush2.bf16.msra.mxu0 0
    %6776 = vmatprep.subr.bf16.mxu0 0
    %6777 = vmatpush2.bf16.msra.mxu0 0
    %6778 = vmatprep.subr.bf16.mxu0 0
    %6779 = vmatpush2.bf16.msra.mxu0 0
    %6780 = vmatprep.subr.bf16.mxu0 0
    %6781 = vmatpush2.bf16.msra.mxu0 0
    %6782 = vmatprep.subr.bf16.mxu0 0
    %6783 = vmatpush2.bf16.msra.mxu0 0
    %6784 = vmatprep.subr.bf16.mxu0 0
    %6785 = vmatpush2.bf16.msra.mxu0 0
    %6786 = vmatprep.subr.bf16.mxu0 0
    %6787 = vmatpush2.bf16.msra.mxu0 0
    %6788 = vmatprep.mubr.bf16.mxu0 0
    %6789 = vmatmul.mubr.bf16.gmra.mxu0 %v6754
    %v6790 = vpop.f32.mrf.mxu0
    %v6791 = vadd.f32 0.0, %v6790
    %v6792 = vpop.f32.mrf.mxu0
    %v6793 = vpop.f32.mrf.mxu0
    %v6794 = vpop.f32.mrf.mxu0
    %6795 = vdwg.mxu0
    %v6796 = vadd.f32 %v6737, %v6791
    %v6797 = vld [vmem:[%s6] sm:$0x1]
    %v6799 = vlaneseq
    %v6800 = vshrl.u32 %v6799, 7
    %v6801 = vsub.s32 0, %v6800
    %v6802 = vrot.slane %v6797, %v6801
    %v6804 = vadd.f32 %v6796, %v6802
    %vm6805 = vcmask 1041408
    %v6806 = vsel %vm6805, %v6804, 0.0
    %v6807 = vrot.slane %v6806, 4
    %v6808 = vadd.f32 %v6806, %v6807
    %v6809 = vrot.slane %v6808, 2
    %v6810 = vadd.f32 %v6808, %v6809
    %v6811 = vrot.slane %v6810, 1
    %v6812 = vadd.f32 %v6810, %v6811
    %v6813 = vrcp.pop 2.0
    %v6814 = vmul.f32 %v6812, %v6813
    %v6815 = vsub.f32 %v6804, %v6814
    %v6816 = vmul.f32 %v6815, %v6815
    %v6817 = vsel %vm6805, %v6816, 0.0
    %v6818 = vrot.slane %v6817, 4
    %v6819 = vadd.f32 %v6817, %v6818
    %v6820 = vrot.slane %v6819, 2
    %v6821 = vadd.f32 %v6819, %v6820
    %v6822 = vrot.slane %v6821, 1
    %v6823 = vadd.f32 %v6821, %v6822
    %v6824 = vmul.f32 %v6823, %v6813
    %v6825 = vadd.f32 %v6824, 1e-05
    %v6826 = vrsqrt.pop %v6825
    %v6827 = vmul.f32 %v6815, %v6826
    %v6828 = vld [vmem:[%s7] sm:$0x1]
    %v6830 = vlaneseq
    %v6831 = vshrl.u32 %v6830, 7
    %v6832 = vsub.s32 0, %v6831
    %v6833 = vrot.slane %v6828, %v6832
    %v6835 = vmul.f32 %v6827, %v6833
    %v6836 = vld [vmem:[%s8] sm:$0x1]
    %v6838 = vlaneseq
    %v6839 = vshrl.u32 %v6838, 7
    %v6840 = vsub.s32 0, %v6839
    %v6841 = vrot.slane %v6836, %v6840
    %v6843 = vadd.f32 %v6835, %v6841
    %v6844 = vmax.f32 %v6843, 0.0
    %v6845 = vpack.c.bf16 %v6844, %v6844
    %v6846 = vld [vmem:[%s9] sm:$0xf]
    %v6847 = vld [vmem:[%s9 + $0x4] sm:$0xf]
    %v6848 = vld [vmem:[%s9 + $0x8] sm:$0xf]
    %v6849 = vld [vmem:[%s9 + $0xc] sm:$0xf]
    %v6850 = vld [vmem:[%s9 + $0x10] sm:$0xf]
    %v6851 = vld [vmem:[%s9 + $0x14] sm:$0xf]
    %v6852 = vld [vmem:[%s9 + $0x18] sm:$0xf]
    %v6853 = vld [vmem:[%s9 + $0x1c] sm:$0xf]
    %v6854 = vld [vmem:[%s9 + $0x20] sm:$0xf]
    %v6855 = vld [vmem:[%s9 + $0x24] sm:$0xf]
    %v6856 = vld [vmem:[%s9 + $0x28] sm:$0xf]
    %v6857 = vld [vmem:[%s9 + $0x2c] sm:$0xf]
    %v6858 = vld [vmem:[%s9 + $0x30] sm:$0xf]
    %v6859 = vld [vmem:[%s9 + $0x34] sm:$0xf]
    %v6860 = vld [vmem:[%s9 + $0x38] sm:$0xf]
    %v6861 = vld [vmem:[%s9 + $0x3c] sm:$0xf]
    %v6862 = vld [vmem:[%s10] sm:$0x1]
    %v6864 = vlaneseq
    %v6865 = vshrl.u32 %v6864, 7
    %v6866 = vsub.s32 0, %v6865
    %v6867 = vrot.slane %v6862, %v6866
    %v6885 = vunpack.c.l.b16 %v6846
    %v6886 = vunpack.c.l.b16 %v6847
    %v6887 = vunpack.c.l.b16 %v6848
    %v6888 = vunpack.c.l.b16 %v6849
    %v6889 = vunpack.c.l.b16 %v6850
    %v6890 = vunpack.c.l.b16 %v6851
    %v6891 = vunpack.c.l.b16 %v6852
    %v6892 = vunpack.c.l.b16 %v6853
    %v6893 = vunpack.c.l.b16 %v6854
    %v6894 = vunpack.c.l.b16 %v6855
    %v6895 = vunpack.c.l.b16 %v6856
    %v6896 = vunpack.c.l.b16 %v6857
    %v6897 = vunpack.c.l.b16 %v6858
    %v6898 = vunpack.c.l.b16 %v6859
    %v6899 = vunpack.c.l.b16 %v6860
    %v6900 = vunpack.c.l.b16 %v6861
    %v6901 = vpack.c.b16 %v6886, %v6885
    %v6902 = vpack.c.b16 %v6888, %v6887
    %v6903 = vpack.c.b16 %v6890, %v6889
    %v6904 = vpack.c.b16 %v6892, %v6891
    %v6905 = vpack.c.b16 %v6894, %v6893
    %v6906 = vpack.c.b16 %v6896, %v6895
    %v6907 = vpack.c.b16 %v6898, %v6897
    %v6908 = vpack.c.b16 %v6900, %v6899
    %6917 = vmatprep.subr.bf16.mxu0 0
    %6918 = vmatpush1.bf16.msra.mxu0 %v6908
    %6919 = vmatprep.subr.bf16.mxu0 0
    %6920 = vmatpush1.bf16.msra.mxu0 %v6907
    %6921 = vmatprep.subr.bf16.mxu0 0
    %6922 = vmatpush1.bf16.msra.mxu0 %v6906
    %6923 = vmatprep.subr.bf16.mxu0 0
    %6924 = vmatpush1.bf16.msra.mxu0 %v6905
    %6925 = vmatprep.subr.bf16.mxu0 0
    %6926 = vmatpush1.bf16.msra.mxu0 %v6904
    %6927 = vmatprep.subr.bf16.mxu0 0
    %6928 = vmatpush1.bf16.msra.mxu0 %v6903
    %6929 = vmatprep.subr.bf16.mxu0 0
    %6930 = vmatpush1.bf16.msra.mxu0 %v6902
    %6931 = vmatprep.subr.bf16.mxu0 0
    %6932 = vmatpush1.bf16.msra.mxu0 %v6901
    %6933 = vmatprep.subr.bf16.mxu0 0
    %6934 = vmatpush2.bf16.msra.mxu0 0
    %6935 = vmatprep.subr.bf16.mxu0 0
    %6936 = vmatpush2.bf16.msra.mxu0 0
    %6937 = vmatprep.subr.bf16.mxu0 0
    %6938 = vmatpush2.bf16.msra.mxu0 0
    %6939 = vmatprep.subr.bf16.mxu0 0
    %6940 = vmatpush2.bf16.msra.mxu0 0
    %6941 = vmatprep.subr.bf16.mxu0 0
    %6942 = vmatpush2.bf16.msra.mxu0 0
    %6943 = vmatprep.subr.bf16.mxu0 0
    %6944 = vmatpush2.bf16.msra.mxu0 0
    %6945 = vmatprep.subr.bf16.mxu0 0
    %6946 = vmatpush2.bf16.msra.mxu0 0
    %6947 = vmatprep.subr.bf16.mxu0 0
    %6948 = vmatpush2.bf16.msra.mxu0 0
    %6949 = vmatprep.mubr.bf16.mxu0 0
    %6950 = vmatmul.mubr.bf16.gmra.mxu0 %v6845
    %v6951 = vpop.f32.mrf.mxu0
    %v6952 = vadd.f32 %v6867, %v6951
    %v6953 = vpop.f32.mrf.mxu0
    %v6954 = vpop.f32.mrf.mxu0
    %v6955 = vpop.f32.mrf.mxu0
    %6956 = vdwg.mxu0
    %v6957 = vsel %vm6805, %v6952, 0.0
    %v6958 = vrot.slane %v6957, 4
    %v6959 = vadd.f32 %v6957, %v6958
    %v6960 = vrot.slane %v6959, 2
    %v6961 = vadd.f32 %v6959, %v6960
    %v6962 = vrot.slane %v6961, 1
    %v6963 = vadd.f32 %v6961, %v6962
    %v6964 = vmul.f32 %v6963, %v6813
    %v6965 = vsub.f32 %v6952, %v6964
    %v6966 = vmul.f32 %v6965, %v6965
    %v6967 = vsel %vm6805, %v6966, 0.0
    %v6968 = vrot.slane %v6967, 4
    %v6969 = vadd.f32 %v6967, %v6968
    %v6970 = vrot.slane %v6969, 2
    %v6971 = vadd.f32 %v6969, %v6970
    %v6972 = vrot.slane %v6971, 1
    %v6973 = vadd.f32 %v6971, %v6972
    %v6974 = vmul.f32 %v6973, %v6813
    %v6975 = vadd.f32 %v6974, 1e-05
    %v6976 = vrsqrt.pop %v6975
    %v6977 = vmul.f32 %v6965, %v6976
    %v6978 = vld [vmem:[%s11] sm:$0x1]
    %v6980 = vlaneseq
    %v6981 = vshrl.u32 %v6980, 7
    %v6982 = vsub.s32 0, %v6981
    %v6983 = vrot.slane %v6978, %v6982
    %v6985 = vmul.f32 %v6977, %v6983
    %v6986 = vld [vmem:[%s12] sm:$0x1]
    %v6988 = vlaneseq
    %v6989 = vshrl.u32 %v6988, 7
    %v6990 = vsub.s32 0, %v6989
    %v6991 = vrot.slane %v6986, %v6990
    %v6993 = vadd.f32 %v6985, %v6991
    %v6994 = vmax.f32 %v6993, 0.0
    %v6995 = vpack.c.bf16 %v6994, %v6994
    %v6996 = vld [vmem:[%s13] sm:$0xf]
    %v6997 = vld [vmem:[%s13 + $0x4] sm:$0xf]
    %v6998 = vld [vmem:[%s13 + $0x8] sm:$0xf]
    %v6999 = vld [vmem:[%s13 + $0xc] sm:$0xf]
    %v7000 = vld [vmem:[%s13 + $0x10] sm:$0xf]
    %v7001 = vld [vmem:[%s13 + $0x14] sm:$0xf]
    %v7002 = vld [vmem:[%s13 + $0x18] sm:$0xf]
    %v7003 = vld [vmem:[%s13 + $0x1c] sm:$0xf]
    %v7004 = vld [vmem:[%s13 + $0x20] sm:$0xf]
    %v7005 = vld [vmem:[%s13 + $0x24] sm:$0xf]
    %v7006 = vld [vmem:[%s13 + $0x28] sm:$0xf]
    %v7007 = vld [vmem:[%s13 + $0x2c] sm:$0xf]
    %v7008 = vld [vmem:[%s13 + $0x30] sm:$0xf]
    %v7009 = vld [vmem:[%s13 + $0x34] sm:$0xf]
    %v7010 = vld [vmem:[%s13 + $0x38] sm:$0xf]
    %v7011 = vld [vmem:[%s13 + $0x3c] sm:$0xf]
    %v7012 = vld [vmem:[%s14] sm:$0x1]
    %v7014 = vlaneseq
    %v7015 = vshrl.u32 %v7014, 7
    %v7016 = vsub.s32 0, %v7015
    %v7017 = vrot.slane %v7012, %v7016
    %v7035 = vunpack.c.l.b16 %v6996
    %v7036 = vunpack.c.l.b16 %v6997
    %v7037 = vunpack.c.l.b16 %v6998
    %v7038 = vunpack.c.l.b16 %v6999
    %v7039 = vunpack.c.l.b16 %v7000
    %v7040 = vunpack.c.l.b16 %v7001
    %v7041 = vunpack.c.l.b16 %v7002
    %v7042 = vunpack.c.l.b16 %v7003
    %v7043 = vunpack.c.l.b16 %v7004
    %v7044 = vunpack.c.l.b16 %v7005
    %v7045 = vunpack.c.l.b16 %v7006
    %v7046 = vunpack.c.l.b16 %v7007
    %v7047 = vunpack.c.l.b16 %v7008
    %v7048 = vunpack.c.l.b16 %v7009
    %v7049 = vunpack.c.l.b16 %v7010
    %v7050 = vunpack.c.l.b16 %v7011
    %v7051 = vpack.c.b16 %v7036, %v7035
    %v7052 = vpack.c.b16 %v7038, %v7037
    %v7053 = vpack.c.b16 %v7040, %v7039
    %v7054 = vpack.c.b16 %v7042, %v7041
    %v7055 = vpack.c.b16 %v7044, %v7043
    %v7056 = vpack.c.b16 %v7046, %v7045
    %v7057 = vpack.c.b16 %v7048, %v7047
    %v7058 = vpack.c.b16 %v7050, %v7049
    %7067 = vmatprep.subr.bf16.mxu0 0
    %7068 = vmatpush1.bf16.msra.mxu0 %v7058
    %7069 = vmatprep.subr.bf16.mxu0 0
    %7070 = vmatpush1.bf16.msra.mxu0 %v7057
    %7071 = vmatprep.subr.bf16.mxu0 0
    %7072 = vmatpush1.bf16.msra.mxu0 %v7056
    %7073 = vmatprep.subr.bf16.mxu0 0
    %7074 = vmatpush1.bf16.msra.mxu0 %v7055
    %7075 = vmatprep.subr.bf16.mxu0 0
    %7076 = vmatpush1.bf16.msra.mxu0 %v7054
    %7077 = vmatprep.subr.bf16.mxu0 0
    %7078 = vmatpush1.bf16.msra.mxu0 %v7053
    %7079 = vmatprep.subr.bf16.mxu0 0
    %7080 = vmatpush1.bf16.msra.mxu0 %v7052
    %7081 = vmatprep.subr.bf16.mxu0 0
    %7082 = vmatpush1.bf16.msra.mxu0 %v7051
    %7083 = vmatprep.subr.bf16.mxu0 0
    %7084 = vmatpush2.bf16.msra.mxu0 0
    %7085 = vmatprep.subr.bf16.mxu0 0
    %7086 = vmatpush2.bf16.msra.mxu0 0
    %7087 = vmatprep.subr.bf16.mxu0 0
    %7088 = vmatpush2.bf16.msra.mxu0 0
    %7089 = vmatprep.subr.bf16.mxu0 0
    %7090 = vmatpush2.bf16.msra.mxu0 0
    %7091 = vmatprep.subr.bf16.mxu0 0
    %7092 = vmatpush2.bf16.msra.mxu0 0
    %7093 = vmatprep.subr.bf16.mxu0 0
    %7094 = vmatpush2.bf16.msra.mxu0 0
    %7095 = vmatprep.subr.bf16.mxu0 0
    %7096 = vmatpush2.bf16.msra.mxu0 0
    %7097 = vmatprep.subr.bf16.mxu0 0
    %7098 = vmatpush2.bf16.msra.mxu0 0
    %7099 = vmatprep.mubr.bf16.mxu0 0
    %7100 = vmatmul.mubr.bf16.gmra.mxu0 %v6995
    %v7101 = vpop.f32.mrf.mxu0
    %v7102 = vadd.f32 %v7017, %v7101
    %v7103 = vpop.f32.mrf.mxu0
    %v7104 = vpop.f32.mrf.mxu0
    %v7105 = vpop.f32.mrf.mxu0
    %7106 = vdwg.mxu0
    %vm7107 = vcmask 74752
    %7108 = vst.msk [vmem:[#allocation3] sm:$0x3] %vm7107, %v7102
    // Predicated region
    $region62: #{vgg_forward.1} parent=1 // pred_check
      _
    $region63: #{vgg_forward.1} parent=1 // pred_check_branch
      %7110 = sbr.rel (0) target = $region65
    $region64: #{vgg_forward.1} parent=1 // pred_region
      %s7112 = ssub.s32 32, 32
      %7113 = vsyncadd [#allocation4], %s7112
      %s7115 = sshll.u32 [#allocation3], 4
      %s7116 = int_to_ptr.vmem [resolvable:$true] %s7115
      %7118 = dma.vmem_to_hbm [thread:$0]  %s7116, 32, %s15, [#allocation4]
    $region65: #{vgg_forward.1} parent=1 // pred_fallthru
      _
    // Predicated region
    $region66: #{vgg_forward.1} parent=1 // pred_check
      _
    $region67: #{vgg_forward.1} parent=1 // pred_check_branch
      %7120 = sbr.rel (0) target = $region69
    $region68: #{vgg_forward.1} parent=1 // pred_region
      %7121 = dma.done [#allocation4], 32
    $region69: #{vgg_forward.1} parent=1 // pred_fallthru
      _
    %7122 = vsyncpa [#allocation4], 1

</llo_original>
